<compile_context>
chip_gen: v7x
topology: tpu7x:2x2x1
jax: 0.10.0
libtpu: 0.0.40
codegen_flags: <defaults>
</compile_context>

<pallas_src>
import jax
import jax.numpy as jnp
from jax import lax
from jax.experimental import pallas as pl
from jax.experimental.pallas import tpu as pltpu

B, C, H, W = 2, 32, 16, 16
RED = 16
CR = C // RED                    # 2
OH, OW = 4, 4                    # adaptive-pool output_size
KH, KW = H // OH, W // OW        # pooling window (divisible case) = 4, 4
HW = H * W                       # 256
BHW = B * HW                     # 512
QQ = OH * OW                     # 16 pooling cells
NTAP = KH * KW                   # 16 offsets per pooling cell
SELW = NTAP * QQ + 128           # pool-operator width, padded to a 128 multiple
BN_EPS = 1e-5
SCALE_TYPE = "middle"            # enhancer = Conv3x3 + BatchNorm2d + LeakyReLU(0.2)


def _fused_kernel(x_ref, w1t_ref, b1_ref, w2_ref, b2_ref, tsp_ref,
                  wenh_ref, benh_ref, gamma_ref, beta_ref, mask_ref, sel_ref,
                  pooled_ref, amap_ref, col_ref):
    # ---------------- Phase A: channel attention (per sample, tiny) ---------
    xch_list = []
    sp_rows = []
    for b in range(B):
        xf = x_ref[b]                                             # (C, HW) lane-dense
        gap = jnp.mean(xf, axis=1, keepdims=True)                 # (C, 1)
        h = jnp.sum(w1t_ref[...] * gap, axis=0, keepdims=True) + b1_ref[...]   # (1, CR)
        h = jnp.maximum(h, 0.0)
        logit = jnp.sum(w2_ref[...] * h, axis=1, keepdims=True) + b2_ref[...]  # (C, 1)
        cw = pl.reciprocal(1.0 + jnp.exp(-logit), approx=True)    # sigmoid (EUP)
        x_ch = xf * cw                                            # (C, HW)
        xch_list.append(x_ch)
        ch_mean = jnp.mean(x_ch, axis=0, keepdims=True)           # (1, HW)
        ch_max = jnp.max(x_ch, axis=0, keepdims=True)             # (1, HW)
        sp_rows.append(jnp.concatenate([ch_mean, ch_max], axis=1))  # (1, 2*HW)

    # ------- Phase B: 7x7 spatial-attention conv as ONE MXU matmul ----------
    sp_in = jnp.concatenate(sp_rows, axis=0)                      # (B, 2*HW)
    acc = jnp.dot(sp_in, tsp_ref[...],
                  preferred_element_type=jnp.float32)             # (B, HW)
    sw = pl.reciprocal(1.0 + jnp.exp(-acc), approx=True)          # sigmoid
    amap_ref[...] = sw                                            # lane-dense store

    # attended features for both samples, side by side on the lane axis
    att = jnp.concatenate(
        [xch_list[b] * sw[b:b + 1, :] for b in range(B)], axis=1)  # (C, B*HW)

    # ---- Phase C: 3x3 enhancer conv via shift-based im2col + one matmul ----
    def shifted(a, d):
        # circular lane shift: out[:, p] = a[:, (p + d) % BHW]
        # (pltpu.roll-equivalent; wrapped positions are zeroed by the mask)
        if d == 0:
            return a
        s = d % BHW
        return jnp.concatenate([a[:, s:], a[:, :s]], axis=1)

    for kh in range(3):
        for kw in range(3):
            tap = kh * 3 + kw
            d = (kh - 1) * W + (kw - 1)
            if d == 0:
                col_ref[tap * C:(tap + 1) * C, :] = att
            else:
                col_ref[tap * C:(tap + 1) * C, :] = (
                    shifted(att, d) * mask_ref[tap:tap + 1, :])
    y = jnp.dot(wenh_ref[...], col_ref[...],
                preferred_element_type=jnp.float32) + benh_ref[...]   # (C, B*HW)

    # -------- Phase D: BatchNorm2d (training batch stats) + LeakyReLU -------
    inv_n = 1.0 / float(B * HW)
    mean = jnp.sum(y, axis=1, keepdims=True) * inv_n              # (C, 1)
    dev = y - mean
    var = jnp.sum(dev * dev, axis=1, keepdims=True) * inv_n       # biased
    scale = gamma_ref[...] * lax.rsqrt(var + BN_EPS)              # EUP rsqrt
    z = dev * scale + beta_ref[...]
    z = jnp.where(z >= 0.0, z, 0.2 * z)                           # LeakyReLU(0.2)

    # ----- Phase E: adaptive 4x4 avg+max pool via ONE gather matmul ---------
    z2 = jnp.concatenate(
        [z[:, b * HW:(b + 1) * HW] for b in range(B)], axis=0)    # (B*C, HW)
    cells = jnp.dot(z2, sel_ref[...],
                    preferred_element_type=jnp.float32)           # (B*C, SELW)
    avgp = cells[:, NTAP * QQ:NTAP * QQ + QQ]                     # avg pool (from MXU)
    parts = [cells[:, t * QQ:(t + 1) * QQ] for t in range(NTAP)]
    while len(parts) > 1:                                         # 4-deep max tree
        nxt = [jnp.maximum(parts[i], parts[i + 1])
               for i in range(0, len(parts) - 1, 2)]
        if len(parts) % 2:
            nxt.append(parts[-1])
        parts = nxt
    maxp = parts[0]                                               # (B*C, QQ)
    pooled_ref[...] = jnp.concatenate([avgp, maxp], axis=1)       # (B*C, 2*QQ)


def scale_specific_processor(x, params):
    w1, b1, w2, b2, wsp, wenh, benh, gamma, beta = params

    # ------------ wrapper-side layout plumbing / constant operators ---------
    x_flat = x.reshape(B, C, HW)

    # enhancer weight as (Cout, (kh*3+kw)*C + Cin) for the im2col matmul
    wenh_flat = jnp.transpose(wenh, (0, 2, 3, 1)).reshape(C, 9 * C)

    # 7x7 conv operator T: T[ch*HW + q, p] = wsp[0, ch, qi-pi+3, qj-pj+3] (valid taps)
    rng_h = jnp.arange(H)
    rng_w = jnp.arange(W)
    dh = rng_h[:, None] - rng_h[None, :] + 3          # [qi, pi]
    dw = rng_w[:, None] - rng_w[None, :] + 3          # [qj, pj]
    vh = (dh >= 0) & (dh < 7)
    vw = (dw >= 0) & (dw < 7)
    dh_c = jnp.clip(dh, 0, 6)
    dw_c = jnp.clip(dw, 0, 6)
    valid = (vh[:, :, None, None] & vw[None, None, :, :]).astype(jnp.float32)

    def conv_op_mat(ch):
        vals = wsp[0, ch][dh_c[:, :, None, None], dw_c[None, None, :, :]] * valid
        return vals.transpose(0, 2, 1, 3).reshape(HW, HW)         # (q, p)

    tsp = jnp.concatenate([conv_op_mat(0), conv_op_mat(1)], axis=0)   # (2*HW, HW)

    # 3x3 border masks for the shift-based im2col, tiled over the B lane blocks
    mrows = []
    for kh in range(3):
        for kw in range(3):
            mh = ((rng_h + kh - 1 >= 0) & (rng_h + kh - 1 < H)).astype(jnp.float32)
            mw = ((rng_w + kw - 1 >= 0) & (rng_w + kw - 1 < W)).astype(jnp.float32)
            mrows.append(jnp.tile((mh[:, None] * mw[None, :]).reshape(1, HW), (1, B)))
    mask9 = jnp.concatenate(mrows, axis=0)                         # (9, B*HW)

    # pooling operator: gather columns (0/1) + avg columns (1/16) + zero pad
    cols = jnp.arange(NTAP * QQ)
    t = cols // QQ
    q = cols % QQ
    kh_, kw_ = t // KW, t % KW
    oi, oj = q // OW, q % OW
    src = (oi * KH + kh_) * W + (oj * KW + kw_)
    sel_gather = (jnp.arange(HW)[:, None] == src[None, :]).astype(jnp.float32)
    r = jnp.arange(HW)
    win = ((r // W) // KH) * OW + ((r % W) // KW)
    sel_avg = (win[:, None] == jnp.arange(QQ)[None, :]).astype(jnp.float32) / float(NTAP)
    sel = jnp.concatenate(
        [sel_gather, sel_avg,
         jnp.zeros((HW, SELW - NTAP * QQ - QQ), jnp.float32)], axis=1)   # (HW, SELW)

    pooled, amap_flat = pl.pallas_call(
        _fused_kernel,
        grid=(1,),
        in_specs=[
            pl.BlockSpec((B, C, HW), lambda i: (0, 0, 0)),
            pl.BlockSpec((C, CR), lambda i: (0, 0)),
            pl.BlockSpec((1, CR), lambda i: (0, 0)),
            pl.BlockSpec((C, CR), lambda i: (0, 0)),
            pl.BlockSpec((C, 1), lambda i: (0, 0)),
            pl.BlockSpec((2 * HW, HW), lambda i: (0, 0)),
            pl.BlockSpec((C, 9 * C), lambda i: (0, 0)),
            pl.BlockSpec((C, 1), lambda i: (0, 0)),
            pl.BlockSpec((C, 1), lambda i: (0, 0)),
            pl.BlockSpec((C, 1), lambda i: (0, 0)),
            pl.BlockSpec((9, BHW), lambda i: (0, 0)),
            pl.BlockSpec((HW, SELW), lambda i: (0, 0)),
        ],
        out_specs=[
            pl.BlockSpec((B * C, 2 * QQ), lambda i: (0, 0)),
            pl.BlockSpec((B, HW), lambda i: (0, 0)),
        ],
        out_shape=[
            jax.ShapeDtypeStruct((B * C, 2 * QQ), jnp.float32),
            jax.ShapeDtypeStruct((B, HW), jnp.float32),
        ],
        scratch_shapes=[
            pltpu.VMEM((9 * C, BHW), jnp.float32),     # im2col buffer (both samples)
        ],
        compiler_params=pltpu.CompilerParams(
            dimension_semantics=("arbitrary",)),
    )(x_flat, w1.T, b1.reshape(1, CR), w2, b2.reshape(C, 1), tsp,
      wenh_flat, benh.reshape(C, 1), gamma.reshape(C, 1), beta.reshape(C, 1),
      mask9, sel)

    # (B*C, 2*QQ) -> (B, 2*C*OH*OW) == cat([avg.flatten(1), max.flatten(1)], 1)
    pooled3 = pooled.reshape(B, C, 2 * QQ)
    combined = jnp.concatenate(
        [pooled3[:, :, :QQ].reshape(B, C * QQ),
         pooled3[:, :, QQ:].reshape(B, C * QQ)], axis=1)
    amap = amap_flat.reshape(B, 1, H, W)
    return combined, amap


def reference(x, params):
    """Pure-JAX reference (lax.conv) mirroring the PyTorch forward."""
    w1, b1, w2, b2, wsp, wenh, benh, gamma, beta = params
    gap = jnp.mean(x, axis=(2, 3))                                # (B, C)
    h = jnp.maximum(gap @ w1.T + b1, 0.0)
    cw = jax.nn.sigmoid(h @ w2.T + b2)
    x_ch = x * cw[:, :, None, None]
    avg = jnp.mean(x_ch, axis=1, keepdims=True)
    mx = jnp.max(x_ch, axis=1, keepdims=True)
    sp_in = jnp.concatenate([avg, mx], axis=1)
    dn = ('NCHW', 'OIHW', 'NCHW')
    sw = jax.nn.sigmoid(lax.conv_general_dilated(
        sp_in, wsp, (1, 1), ((3, 3), (3, 3)), dimension_numbers=dn,
        precision=lax.Precision.HIGHEST))
    att = x_ch * sw
    y = lax.conv_general_dilated(
        att, wenh, (1, 1), ((1, 1), (1, 1)), dimension_numbers=dn,
        precision=lax.Precision.HIGHEST) + benh[None, :, None, None]
    mean = jnp.mean(y, axis=(0, 2, 3))
    var = jnp.var(y, axis=(0, 2, 3))
    z = (y - mean[None, :, None, None]) / jnp.sqrt(var[None, :, None, None] + BN_EPS)
    z = z * gamma[None, :, None, None] + beta[None, :, None, None]
    z = jnp.where(z >= 0.0, z, 0.2 * z)
    zr = z.reshape(B, C, OH, KH, OW, KW)
    avg_p = jnp.mean(zr, axis=(3, 5))
    max_p = jnp.max(zr, axis=(3, 5))
    combined = jnp.concatenate([avg_p.reshape(B, -1), max_p.reshape(B, -1)], axis=1)
    return combined, sw


if __name__ == "__main__":
    key = jax.random.PRNGKey(0)
    ks = jax.random.split(key, 10)
    x = jax.random.normal(ks[0], (B, C, H, W), jnp.float32)
    w1 = 0.1 * jax.random.normal(ks[1], (CR, C), jnp.float32)        # Linear(C, C//16)
    b1 = 0.1 * jax.random.normal(ks[2], (CR,), jnp.float32)
    w2 = 0.1 * jax.random.normal(ks[3], (C, CR), jnp.float32)        # Linear(C//16, C)
    b2 = 0.1 * jax.random.normal(ks[4], (C,), jnp.float32)
    wsp = 0.1 * jax.random.normal(ks[5], (1, 2, 7, 7), jnp.float32)  # Conv2d(2,1,7,pad=3,no bias)
    wenh = 0.05 * jax.random.normal(ks[6], (C, C, 3, 3), jnp.float32)  # Conv2d(C,C,3,pad=1)
    benh = 0.1 * jax.random.normal(ks[7], (C,), jnp.float32)
    gamma = 1.0 + 0.1 * jax.random.normal(ks[8], (C,), jnp.float32)  # BatchNorm2d weight
    beta = 0.1 * jax.random.normal(ks[9], (C,), jnp.float32)         # BatchNorm2d bias
    params = (w1, b1, w2, b2, wsp, wenh, benh, gamma, beta)

    fn = jax.jit(scale_specific_processor)
    combined, attention_map = fn(x, params)
    combined = jax.block_until_ready(combined)
    attention_map = jax.block_until_ready(attention_map)

    ref_combined, ref_map = reference(x, params)
    assert combined.shape == (B, 2 * C * OH * OW)
    assert attention_map.shape == (B, 1, H, W)
    err_c = float(jnp.max(jnp.abs(combined - ref_combined)))
    err_m = float(jnp.max(jnp.abs(attention_map - ref_map)))
    assert err_c < 1e-2 and err_m < 1e-2, (err_c, err_m)
    print("KERNEL_OK")
</pallas_src>

<mosaic_0001>
module attributes {stable_mosaic.version = 11 : i64} {
  func.func @_fused_kernel(%arg0: i32, %arg1: memref<2x32x256xf32, #tpu.memory_space<vmem>>, %arg2: memref<32x2xf32, #tpu.memory_space<vmem>>, %arg3: memref<1x2xf32, #tpu.memory_space<vmem>>, %arg4: memref<32x2xf32, #tpu.memory_space<vmem>>, %arg5: memref<32x1xf32, #tpu.memory_space<vmem>>, %arg6: memref<512x256xf32, #tpu.memory_space<vmem>>, %arg7: memref<32x288xf32, #tpu.memory_space<vmem>>, %arg8: memref<32x1xf32, #tpu.memory_space<vmem>>, %arg9: memref<32x1xf32, #tpu.memory_space<vmem>>, %arg10: memref<32x1xf32, #tpu.memory_space<vmem>>, %arg11: memref<9x512xf32, #tpu.memory_space<vmem>>, %arg12: memref<256x384xf32, #tpu.memory_space<vmem>>, %arg13: memref<64x32xf32, #tpu.memory_space<vmem>>, %arg14: memref<2x256xf32, #tpu.memory_space<vmem>>, %arg15: memref<288x512xf32, #tpu.memory_space<vmem>>) attributes {dimension_semantics = [#tpu.dimension_semantics<arbitrary>], iteration_bounds = array<i64: 1>, scalar_prefetch = 0 : i64, scratch_operands = 1 : i64, tpu.core_type = #tpu.core_type<tc>, window_params = [{pipeline_mode = #tpu.pipeline_mode<synchronous>, transform_indices = @transform_0, window_bounds = array<i64: 2, 32, 256>}, {pipeline_mode = #tpu.pipeline_mode<synchronous>, transform_indices = @transform_1, window_bounds = array<i64: 32, 2>}, {pipeline_mode = #tpu.pipeline_mode<synchronous>, transform_indices = @transform_2, window_bounds = array<i64: 1, 2>}, {pipeline_mode = #tpu.pipeline_mode<synchronous>, transform_indices = @transform_3, window_bounds = array<i64: 32, 2>}, {pipeline_mode = #tpu.pipeline_mode<synchronous>, transform_indices = @transform_4, window_bounds = array<i64: 32, 1>}, {pipeline_mode = #tpu.pipeline_mode<synchronous>, transform_indices = @transform_5, window_bounds = array<i64: 512, 256>}, {pipeline_mode = #tpu.pipeline_mode<synchronous>, transform_indices = @transform_6, window_bounds = array<i64: 32, 288>}, {pipeline_mode = #tpu.pipeline_mode<synchronous>, transform_indices = @transform_7, window_bounds = array<i64: 32, 1>}, {pipeline_mode = #tpu.pipeline_mode<synchronous>, transform_indices = @transform_8, window_bounds = array<i64: 32, 1>}, {pipeline_mode = #tpu.pipeline_mode<synchronous>, transform_indices = @transform_9, window_bounds = array<i64: 32, 1>}, {pipeline_mode = #tpu.pipeline_mode<synchronous>, transform_indices = @transform_10, window_bounds = array<i64: 9, 512>}, {pipeline_mode = #tpu.pipeline_mode<synchronous>, transform_indices = @transform_11, window_bounds = array<i64: 256, 384>}, {pipeline_mode = #tpu.pipeline_mode<synchronous>, transform_indices = @transform_12, window_bounds = array<i64: 64, 32>}, {pipeline_mode = #tpu.pipeline_mode<synchronous>, transform_indices = @transform_13, window_bounds = array<i64: 2, 256>}]} {
    %c0 = arith.constant 0 : index
    %c0_0 = arith.constant 0 : index
    %c0_1 = arith.constant 0 : index
    %0 = vector.load %arg1[%c0, %c0_0, %c0_1] : memref<2x32x256xf32, #tpu.memory_space<vmem>>, vector<1x32x256xf32>
    %1 = vector.shape_cast %0 : vector<1x32x256xf32> to vector<32x256xf32>
    %cst = arith.constant dense<0.000000e+00> : vector<32xf32>
    %2 = vector.multi_reduction <add>, %1, %cst [1] : vector<32x256xf32> to vector<32xf32>
    %3 = vector.shape_cast %2 : vector<32xf32> to vector<32x1xf32>
    %cst_2 = arith.constant 2.560000e+02 : f32
    %4 = vector.broadcast %cst_2 : f32 to vector<32x1xf32>
    %5 = arith.divf %3, %4 : vector<32x1xf32>
    %c0_3 = arith.constant 0 : index
    %c0_4 = arith.constant 0 : index
    %6 = vector.load %arg2[%c0_3, %c0_4] : memref<32x2xf32, #tpu.memory_space<vmem>>, vector<32x2xf32>
    %7 = vector.broadcast %5 : vector<32x1xf32> to vector<32x2xf32>
    %8 = arith.mulf %6, %7 : vector<32x2xf32>
    %cst_5 = arith.constant dense<0.000000e+00> : vector<2xf32>
    %9 = vector.multi_reduction <add>, %8, %cst_5 [0] : vector<32x2xf32> to vector<2xf32>
    %10 = vector.shape_cast %9 : vector<2xf32> to vector<1x2xf32>
    %c0_6 = arith.constant 0 : index
    %c0_7 = arith.constant 0 : index
    %11 = vector.load %arg3[%c0_6, %c0_7] : memref<1x2xf32, #tpu.memory_space<vmem>>, vector<1x2xf32>
    %12 = arith.addf %10, %11 : vector<1x2xf32>
    %cst_8 = arith.constant 0.000000e+00 : f32
    %13 = vector.broadcast %cst_8 : f32 to vector<1x2xf32>
    %14 = arith.maximumf %12, %13 : vector<1x2xf32>
    %c0_9 = arith.constant 0 : index
    %c0_10 = arith.constant 0 : index
    %15 = vector.load %arg4[%c0_9, %c0_10] : memref<32x2xf32, #tpu.memory_space<vmem>>, vector<32x2xf32>
    %16 = vector.broadcast %14 : vector<1x2xf32> to vector<32x2xf32>
    %17 = arith.mulf %15, %16 : vector<32x2xf32>
    %cst_11 = arith.constant dense<0.000000e+00> : vector<32xf32>
    %18 = vector.multi_reduction <add>, %17, %cst_11 [1] : vector<32x2xf32> to vector<32xf32>
    %19 = vector.shape_cast %18 : vector<32xf32> to vector<32x1xf32>
    %c0_12 = arith.constant 0 : index
    %c0_13 = arith.constant 0 : index
    %20 = vector.load %arg5[%c0_12, %c0_13] : memref<32x1xf32, #tpu.memory_space<vmem>>, vector<32x1xf32>
    %21 = arith.addf %19, %20 : vector<32x1xf32>
    %cst_14 = arith.constant 0.000000e+00 : f32
    %22 = vector.broadcast %cst_14 : f32 to vector<32x1xf32>
    %23 = arith.subf %22, %21 : vector<32x1xf32>
    %24 = math.exp %23 : vector<32x1xf32>
    %cst_15 = arith.constant 1.000000e+00 : f32
    %25 = vector.broadcast %cst_15 : f32 to vector<32x1xf32>
    %26 = arith.addf %25, %24 : vector<32x1xf32>
    %27 = tpu.reciprocal %26 {approx = true} : vector<32x1xf32> -> vector<32x1xf32>
    %28 = vector.broadcast %27 : vector<32x1xf32> to vector<32x256xf32>
    %29 = arith.mulf %1, %28 : vector<32x256xf32>
    %cst_16 = arith.constant dense<0.000000e+00> : vector<256xf32>
    %30 = vector.multi_reduction <add>, %29, %cst_16 [0] : vector<32x256xf32> to vector<256xf32>
    %31 = vector.shape_cast %30 : vector<256xf32> to vector<1x256xf32>
    %cst_17 = arith.constant 3.200000e+01 : f32
    %32 = vector.broadcast %cst_17 : f32 to vector<1x256xf32>
    %33 = arith.divf %31, %32 : vector<1x256xf32>
    %cst_18 = arith.constant dense<0xFF800000> : vector<256xf32>
    %34 = vector.multi_reduction <maximumf>, %29, %cst_18 [0] : vector<32x256xf32> to vector<256xf32>
    %35 = vector.shape_cast %34 : vector<256xf32> to vector<1x256xf32>
    %36 = tpu.concatenate %33, %35 in 1 : vector<1x256xf32>, vector<1x256xf32> -> vector<1x512xf32>
    %c1 = arith.constant 1 : index
    %c0_19 = arith.constant 0 : index
    %c0_20 = arith.constant 0 : index
    %37 = vector.load %arg1[%c1, %c0_19, %c0_20] : memref<2x32x256xf32, #tpu.memory_space<vmem>>, vector<1x32x256xf32>
    %38 = vector.shape_cast %37 : vector<1x32x256xf32> to vector<32x256xf32>
    %cst_21 = arith.constant dense<0.000000e+00> : vector<32xf32>
    %39 = vector.multi_reduction <add>, %38, %cst_21 [1] : vector<32x256xf32> to vector<32xf32>
    %40 = vector.shape_cast %39 : vector<32xf32> to vector<32x1xf32>
    %cst_22 = arith.constant 2.560000e+02 : f32
    %41 = vector.broadcast %cst_22 : f32 to vector<32x1xf32>
    %42 = arith.divf %40, %41 : vector<32x1xf32>
    %c0_23 = arith.constant 0 : index
    %c0_24 = arith.constant 0 : index
    %43 = vector.load %arg2[%c0_23, %c0_24] : memref<32x2xf32, #tpu.memory_space<vmem>>, vector<32x2xf32>
    %44 = vector.broadcast %42 : vector<32x1xf32> to vector<32x2xf32>
    %45 = arith.mulf %43, %44 : vector<32x2xf32>
    %cst_25 = arith.constant dense<0.000000e+00> : vector<2xf32>
    %46 = vector.multi_reduction <add>, %45, %cst_25 [0] : vector<32x2xf32> to vector<2xf32>
    %47 = vector.shape_cast %46 : vector<2xf32> to vector<1x2xf32>
    %c0_26 = arith.constant 0 : index
    %c0_27 = arith.constant 0 : index
    %48 = vector.load %arg3[%c0_26, %c0_27] : memref<1x2xf32, #tpu.memory_space<vmem>>, vector<1x2xf32>
    %49 = arith.addf %47, %48 : vector<1x2xf32>
    %cst_28 = arith.constant 0.000000e+00 : f32
    %50 = vector.broadcast %cst_28 : f32 to vector<1x2xf32>
    %51 = arith.maximumf %49, %50 : vector<1x2xf32>
    %c0_29 = arith.constant 0 : index
    %c0_30 = arith.constant 0 : index
    %52 = vector.load %arg4[%c0_29, %c0_30] : memref<32x2xf32, #tpu.memory_space<vmem>>, vector<32x2xf32>
    %53 = vector.broadcast %51 : vector<1x2xf32> to vector<32x2xf32>
    %54 = arith.mulf %52, %53 : vector<32x2xf32>
    %cst_31 = arith.constant dense<0.000000e+00> : vector<32xf32>
    %55 = vector.multi_reduction <add>, %54, %cst_31 [1] : vector<32x2xf32> to vector<32xf32>
    %56 = vector.shape_cast %55 : vector<32xf32> to vector<32x1xf32>
    %c0_32 = arith.constant 0 : index
    %c0_33 = arith.constant 0 : index
    %57 = vector.load %arg5[%c0_32, %c0_33] : memref<32x1xf32, #tpu.memory_space<vmem>>, vector<32x1xf32>
    %58 = arith.addf %56, %57 : vector<32x1xf32>
    %cst_34 = arith.constant 0.000000e+00 : f32
    %59 = vector.broadcast %cst_34 : f32 to vector<32x1xf32>
    %60 = arith.subf %59, %58 : vector<32x1xf32>
    %61 = math.exp %60 : vector<32x1xf32>
    %cst_35 = arith.constant 1.000000e+00 : f32
    %62 = vector.broadcast %cst_35 : f32 to vector<32x1xf32>
    %63 = arith.addf %62, %61 : vector<32x1xf32>
    %64 = tpu.reciprocal %63 {approx = true} : vector<32x1xf32> -> vector<32x1xf32>
    %65 = vector.broadcast %64 : vector<32x1xf32> to vector<32x256xf32>
    %66 = arith.mulf %38, %65 : vector<32x256xf32>
    %cst_36 = arith.constant dense<0.000000e+00> : vector<256xf32>
    %67 = vector.multi_reduction <add>, %66, %cst_36 [0] : vector<32x256xf32> to vector<256xf32>
    %68 = vector.shape_cast %67 : vector<256xf32> to vector<1x256xf32>
    %cst_37 = arith.constant 3.200000e+01 : f32
    %69 = vector.broadcast %cst_37 : f32 to vector<1x256xf32>
    %70 = arith.divf %68, %69 : vector<1x256xf32>
    %cst_38 = arith.constant dense<0xFF800000> : vector<256xf32>
    %71 = vector.multi_reduction <maximumf>, %66, %cst_38 [0] : vector<32x256xf32> to vector<256xf32>
    %72 = vector.shape_cast %71 : vector<256xf32> to vector<1x256xf32>
    %73 = tpu.concatenate %70, %72 in 1 : vector<1x256xf32>, vector<1x256xf32> -> vector<1x512xf32>
    %74 = tpu.concatenate %36, %73 in 0 : vector<1x512xf32>, vector<1x512xf32> -> vector<2x512xf32>
    %c0_39 = arith.constant 0 : index
    %c0_40 = arith.constant 0 : index
    %75 = vector.load %arg6[%c0_39, %c0_40] : memref<512x256xf32, #tpu.memory_space<vmem>>, vector<512x256xf32>
    %cst_41 = arith.constant dense<0.000000e+00> : vector<2x256xf32>
    %76 = tpu.matmul %74, %75, %cst_41 {dimension_numbers = #tpu.dot_dimension_numbers<[1], [0], [0], [1], [0, 0, 1, 1], [], []>} : vector<2x512xf32>, vector<512x256xf32>, vector<2x256xf32> -> vector<2x256xf32>
    %cst_42 = arith.constant 0.000000e+00 : f32
    %77 = vector.broadcast %cst_42 : f32 to vector<2x256xf32>
    %78 = arith.subf %77, %76 : vector<2x256xf32>
    %79 = math.exp %78 : vector<2x256xf32>
    %cst_43 = arith.constant 1.000000e+00 : f32
    %80 = vector.broadcast %cst_43 : f32 to vector<2x256xf32>
    %81 = arith.addf %80, %79 : vector<2x256xf32>
    %82 = tpu.reciprocal %81 {approx = true} : vector<2x256xf32> -> vector<2x256xf32>
    %c0_44 = arith.constant 0 : index
    %c0_45 = arith.constant 0 : index
    %83 = vector.load %arg14[%c0_44, %c0_45] : memref<2x256xf32, #tpu.memory_space<vmem>>, vector<2x256xf32>
    tpu.vector_store %arg14[%c0_44, %c0_45], %82 {strides = array<i32>} : memref<2x256xf32, #tpu.memory_space<vmem>>, vector<2x256xf32>,
    %84 = vector.extract_strided_slice %82 {offsets = [0, 0], sizes = [1, 256], strides = [1, 1]} : vector<2x256xf32> to vector<1x256xf32>
    %85 = vector.broadcast %84 : vector<1x256xf32> to vector<32x256xf32>
    %86 = arith.mulf %29, %85 : vector<32x256xf32>
    %87 = vector.extract_strided_slice %82 {offsets = [1, 0], sizes = [1, 256], strides = [1, 1]} : vector<2x256xf32> to vector<1x256xf32>
    %88 = vector.broadcast %87 : vector<1x256xf32> to vector<32x256xf32>
    %89 = arith.mulf %66, %88 : vector<32x256xf32>
    %90 = tpu.concatenate %86, %89 in 1 : vector<32x256xf32>, vector<32x256xf32> -> vector<32x512xf32>
    %91 = vector.extract_strided_slice %90 {offsets = [0, 495], sizes = [32, 17], strides = [1, 1]} : vector<32x512xf32> to vector<32x17xf32>
    %92 = vector.extract_strided_slice %90 {offsets = [0, 0], sizes = [32, 495], strides = [1, 1]} : vector<32x512xf32> to vector<32x495xf32>
    %93 = tpu.concatenate %91, %92 in 1 : vector<32x17xf32>, vector<32x495xf32> -> vector<32x512xf32>
    %c0_46 = arith.constant 0 : index
    %c0_47 = arith.constant 0 : index
    %94 = vector.load %arg11[%c0_46, %c0_47] : memref<9x512xf32, #tpu.memory_space<vmem>>, vector<1x512xf32>
    %95 = vector.broadcast %94 : vector<1x512xf32> to vector<32x512xf32>
    %96 = arith.mulf %93, %95 : vector<32x512xf32>
    %c0_48 = arith.constant 0 : index
    %c0_49 = arith.constant 0 : index
    %97 = vector.load %arg15[%c0_48, %c0_49] : memref<288x512xf32, #tpu.memory_space<vmem>>, vector<32x512xf32>
    tpu.vector_store %arg15[%c0_48, %c0_49], %96 {strides = array<i32>} : memref<288x512xf32, #tpu.memory_space<vmem>>, vector<32x512xf32>,
    %98 = vector.extract_strided_slice %90 {offsets = [0, 496], sizes = [32, 16], strides = [1, 1]} : vector<32x512xf32> to vector<32x16xf32>
    %99 = vector.extract_strided_slice %90 {offsets = [0, 0], sizes = [32, 496], strides = [1, 1]} : vector<32x512xf32> to vector<32x496xf32>
    %100 = tpu.concatenate %98, %99 in 1 : vector<32x16xf32>, vector<32x496xf32> -> vector<32x512xf32>
    %c1_50 = arith.constant 1 : index
    %c0_51 = arith.constant 0 : index
    %101 = vector.load %arg11[%c1_50, %c0_51] : memref<9x512xf32, #tpu.memory_space<vmem>>, vector<1x512xf32>
    %102 = vector.broadcast %101 : vector<1x512xf32> to vector<32x512xf32>
    %103 = arith.mulf %100, %102 : vector<32x512xf32>
    %c32 = arith.constant 32 : index
    %c0_52 = arith.constant 0 : index
    %104 = vector.load %arg15[%c32, %c0_52] : memref<288x512xf32, #tpu.memory_space<vmem>>, vector<32x512xf32>
    tpu.vector_store %arg15[%c32, %c0_52], %103 {strides = array<i32>} : memref<288x512xf32, #tpu.memory_space<vmem>>, vector<32x512xf32>,
    %105 = vector.extract_strided_slice %90 {offsets = [0, 497], sizes = [32, 15], strides = [1, 1]} : vector<32x512xf32> to vector<32x15xf32>
    %106 = vector.extract_strided_slice %90 {offsets = [0, 0], sizes = [32, 497], strides = [1, 1]} : vector<32x512xf32> to vector<32x497xf32>
    %107 = tpu.concatenate %105, %106 in 1 : vector<32x15xf32>, vector<32x497xf32> -> vector<32x512xf32>
    %c2 = arith.constant 2 : index
    %c0_53 = arith.constant 0 : index
    %108 = vector.load %arg11[%c2, %c0_53] : memref<9x512xf32, #tpu.memory_space<vmem>>, vector<1x512xf32>
    %109 = vector.broadcast %108 : vector<1x512xf32> to vector<32x512xf32>
    %110 = arith.mulf %107, %109 : vector<32x512xf32>
    %c64 = arith.constant 64 : index
    %c0_54 = arith.constant 0 : index
    %111 = vector.load %arg15[%c64, %c0_54] : memref<288x512xf32, #tpu.memory_space<vmem>>, vector<32x512xf32>
    tpu.vector_store %arg15[%c64, %c0_54], %110 {strides = array<i32>} : memref<288x512xf32, #tpu.memory_space<vmem>>, vector<32x512xf32>,
    %112 = vector.extract_strided_slice %90 {offsets = [0, 511], sizes = [32, 1], strides = [1, 1]} : vector<32x512xf32> to vector<32x1xf32>
    %113 = vector.extract_strided_slice %90 {offsets = [0, 0], sizes = [32, 511], strides = [1, 1]} : vector<32x512xf32> to vector<32x511xf32>
    %114 = tpu.concatenate %112, %113 in 1 : vector<32x1xf32>, vector<32x511xf32> -> vector<32x512xf32>
    %c3 = arith.constant 3 : index
    %c0_55 = arith.constant 0 : index
    %115 = vector.load %arg11[%c3, %c0_55] : memref<9x512xf32, #tpu.memory_space<vmem>>, vector<1x512xf32>
    %116 = vector.broadcast %115 : vector<1x512xf32> to vector<32x512xf32>
    %117 = arith.mulf %114, %116 : vector<32x512xf32>
    %c96 = arith.constant 96 : index
    %c0_56 = arith.constant 0 : index
    %118 = vector.load %arg15[%c96, %c0_56] : memref<288x512xf32, #tpu.memory_space<vmem>>, vector<32x512xf32>
    tpu.vector_store %arg15[%c96, %c0_56], %117 {strides = array<i32>} : memref<288x512xf32, #tpu.memory_space<vmem>>, vector<32x512xf32>,
    %c128 = arith.constant 128 : index
    %c0_57 = arith.constant 0 : index
    %119 = vector.load %arg15[%c128, %c0_57] : memref<288x512xf32, #tpu.memory_space<vmem>>, vector<32x512xf32>
    tpu.vector_store %arg15[%c128, %c0_57], %90 {strides = array<i32>} : memref<288x512xf32, #tpu.memory_space<vmem>>, vector<32x512xf32>,
    %120 = vector.extract_strided_slice %90 {offsets = [0, 1], sizes = [32, 511], strides = [1, 1]} : vector<32x512xf32> to vector<32x511xf32>
    %121 = vector.extract_strided_slice %90 {offsets = [0, 0], sizes = [32, 1], strides = [1, 1]} : vector<32x512xf32> to vector<32x1xf32>
    %122 = tpu.concatenate %120, %121 in 1 : vector<32x511xf32>, vector<32x1xf32> -> vector<32x512xf32>
    %c5 = arith.constant 5 : index
    %c0_58 = arith.constant 0 : index
    %123 = vector.load %arg11[%c5, %c0_58] : memref<9x512xf32, #tpu.memory_space<vmem>>, vector<1x512xf32>
    %124 = vector.broadcast %123 : vector<1x512xf32> to vector<32x512xf32>
    %125 = arith.mulf %122, %124 : vector<32x512xf32>
    %c160 = arith.constant 160 : index
    %c0_59 = arith.constant 0 : index
    %126 = vector.load %arg15[%c160, %c0_59] : memref<288x512xf32, #tpu.memory_space<vmem>>, vector<32x512xf32>
    tpu.vector_store %arg15[%c160, %c0_59], %125 {strides = array<i32>} : memref<288x512xf32, #tpu.memory_space<vmem>>, vector<32x512xf32>,
    %127 = vector.extract_strided_slice %90 {offsets = [0, 15], sizes = [32, 497], strides = [1, 1]} : vector<32x512xf32> to vector<32x497xf32>
    %128 = vector.extract_strided_slice %90 {offsets = [0, 0], sizes = [32, 15], strides = [1, 1]} : vector<32x512xf32> to vector<32x15xf32>
    %129 = tpu.concatenate %127, %128 in 1 : vector<32x497xf32>, vector<32x15xf32> -> vector<32x512xf32>
    %c6 = arith.constant 6 : index
    %c0_60 = arith.constant 0 : index
    %130 = vector.load %arg11[%c6, %c0_60] : memref<9x512xf32, #tpu.memory_space<vmem>>, vector<1x512xf32>
    %131 = vector.broadcast %130 : vector<1x512xf32> to vector<32x512xf32>
    %132 = arith.mulf %129, %131 : vector<32x512xf32>
    %c192 = arith.constant 192 : index
    %c0_61 = arith.constant 0 : index
    %133 = vector.load %arg15[%c192, %c0_61] : memref<288x512xf32, #tpu.memory_space<vmem>>, vector<32x512xf32>
    tpu.vector_store %arg15[%c192, %c0_61], %132 {strides = array<i32>} : memref<288x512xf32, #tpu.memory_space<vmem>>, vector<32x512xf32>,
    %134 = vector.extract_strided_slice %90 {offsets = [0, 16], sizes = [32, 496], strides = [1, 1]} : vector<32x512xf32> to vector<32x496xf32>
    %135 = vector.extract_strided_slice %90 {offsets = [0, 0], sizes = [32, 16], strides = [1, 1]} : vector<32x512xf32> to vector<32x16xf32>
    %136 = tpu.concatenate %134, %135 in 1 : vector<32x496xf32>, vector<32x16xf32> -> vector<32x512xf32>
    %c7 = arith.constant 7 : index
    %c0_62 = arith.constant 0 : index
    %137 = vector.load %arg11[%c7, %c0_62] : memref<9x512xf32, #tpu.memory_space<vmem>>, vector<1x512xf32>
    %138 = vector.broadcast %137 : vector<1x512xf32> to vector<32x512xf32>
    %139 = arith.mulf %136, %138 : vector<32x512xf32>
    %c224 = arith.constant 224 : index
    %c0_63 = arith.constant 0 : index
    %140 = vector.load %arg15[%c224, %c0_63] : memref<288x512xf32, #tpu.memory_space<vmem>>, vector<32x512xf32>
    tpu.vector_store %arg15[%c224, %c0_63], %139 {strides = array<i32>} : memref<288x512xf32, #tpu.memory_space<vmem>>, vector<32x512xf32>,
    %141 = vector.extract_strided_slice %90 {offsets = [0, 17], sizes = [32, 495], strides = [1, 1]} : vector<32x512xf32> to vector<32x495xf32>
    %142 = vector.extract_strided_slice %90 {offsets = [0, 0], sizes = [32, 17], strides = [1, 1]} : vector<32x512xf32> to vector<32x17xf32>
    %143 = tpu.concatenate %141, %142 in 1 : vector<32x495xf32>, vector<32x17xf32> -> vector<32x512xf32>
    %c8 = arith.constant 8 : index
    %c0_64 = arith.constant 0 : index
    %144 = vector.load %arg11[%c8, %c0_64] : memref<9x512xf32, #tpu.memory_space<vmem>>, vector<1x512xf32>
    %145 = vector.broadcast %144 : vector<1x512xf32> to vector<32x512xf32>
    %146 = arith.mulf %143, %145 : vector<32x512xf32>
    %c256 = arith.constant 256 : index
    %c0_65 = arith.constant 0 : index
    %147 = vector.load %arg15[%c256, %c0_65] : memref<288x512xf32, #tpu.memory_space<vmem>>, vector<32x512xf32>
    tpu.vector_store %arg15[%c256, %c0_65], %146 {strides = array<i32>} : memref<288x512xf32, #tpu.memory_space<vmem>>, vector<32x512xf32>,
    %c0_66 = arith.constant 0 : index
    %c0_67 = arith.constant 0 : index
    %148 = vector.load %arg7[%c0_66, %c0_67] : memref<32x288xf32, #tpu.memory_space<vmem>>, vector<32x288xf32>
    %c0_68 = arith.constant 0 : index
    %c0_69 = arith.constant 0 : index
    %149 = vector.load %arg15[%c0_68, %c0_69] : memref<288x512xf32, #tpu.memory_space<vmem>>, vector<288x512xf32>
    %cst_70 = arith.constant dense<0.000000e+00> : vector<32x512xf32>
    %150 = tpu.matmul %148, %149, %cst_70 {dimension_numbers = #tpu.dot_dimension_numbers<[1], [0], [0], [1], [0, 0, 1, 1], [], []>} : vector<32x288xf32>, vector<288x512xf32>, vector<32x512xf32> -> vector<32x512xf32>
    %c0_71 = arith.constant 0 : index
    %c0_72 = arith.constant 0 : index
    %151 = vector.load %arg8[%c0_71, %c0_72] : memref<32x1xf32, #tpu.memory_space<vmem>>, vector<32x1xf32>
    %152 = vector.broadcast %151 : vector<32x1xf32> to vector<32x512xf32>
    %153 = arith.addf %150, %152 : vector<32x512xf32>
    %cst_73 = arith.constant dense<0.000000e+00> : vector<32xf32>
    %154 = vector.multi_reduction <add>, %153, %cst_73 [1] : vector<32x512xf32> to vector<32xf32>
    %155 = vector.shape_cast %154 : vector<32xf32> to vector<32x1xf32>
    %cst_74 = arith.constant 0.001953125 : f32
    %156 = vector.broadcast %cst_74 : f32 to vector<32x1xf32>
    %157 = arith.mulf %155, %156 : vector<32x1xf32>
    %158 = vector.broadcast %157 : vector<32x1xf32> to vector<32x512xf32>
    %159 = arith.subf %153, %158 : vector<32x512xf32>
    %160 = arith.mulf %159, %159 : vector<32x512xf32>
    %cst_75 = arith.constant dense<0.000000e+00> : vector<32xf32>
    %161 = vector.multi_reduction <add>, %160, %cst_75 [1] : vector<32x512xf32> to vector<32xf32>
    %162 = vector.shape_cast %161 : vector<32xf32> to vector<32x1xf32>
    %cst_76 = arith.constant 0.001953125 : f32
    %163 = vector.broadcast %cst_76 : f32 to vector<32x1xf32>
    %164 = arith.mulf %162, %163 : vector<32x1xf32>
    %c0_77 = arith.constant 0 : index
    %c0_78 = arith.constant 0 : index
    %165 = vector.load %arg9[%c0_77, %c0_78] : memref<32x1xf32, #tpu.memory_space<vmem>>, vector<32x1xf32>
    %cst_79 = arith.constant 9.99999974E-6 : f32
    %166 = vector.broadcast %cst_79 : f32 to vector<32x1xf32>
    %167 = arith.addf %164, %166 : vector<32x1xf32>
    %168 = math.rsqrt %167 : vector<32x1xf32>
    %169 = arith.mulf %165, %168 : vector<32x1xf32>
    %170 = vector.broadcast %169 : vector<32x1xf32> to vector<32x512xf32>
    %171 = arith.mulf %159, %170 : vector<32x512xf32>
    %c0_80 = arith.constant 0 : index
    %c0_81 = arith.constant 0 : index
    %172 = vector.load %arg10[%c0_80, %c0_81] : memref<32x1xf32, #tpu.memory_space<vmem>>, vector<32x1xf32>
    %173 = vector.broadcast %172 : vector<32x1xf32> to vector<32x512xf32>
    %174 = arith.addf %171, %173 : vector<32x512xf32>
    %cst_82 = arith.constant 0.000000e+00 : f32
    %175 = vector.broadcast %cst_82 : f32 to vector<32x512xf32>
    %176 = arith.cmpf oge, %174, %175 : vector<32x512xf32>
    %cst_83 = arith.constant 2.000000e-01 : f32
    %177 = vector.broadcast %cst_83 : f32 to vector<32x512xf32>
    %178 = arith.mulf %177, %174 : vector<32x512xf32>
    %179 = arith.select %176, %174, %178 : vector<32x512xi1>, vector<32x512xf32>
    %180 = vector.extract_strided_slice %179 {offsets = [0, 0], sizes = [32, 256], strides = [1, 1]} : vector<32x512xf32> to vector<32x256xf32>
    %181 = vector.extract_strided_slice %179 {offsets = [0, 256], sizes = [32, 256], strides = [1, 1]} : vector<32x512xf32> to vector<32x256xf32>
    %182 = tpu.concatenate %180, %181 in 0 : vector<32x256xf32>, vector<32x256xf32> -> vector<64x256xf32>
    %c0_84 = arith.constant 0 : index
    %c0_85 = arith.constant 0 : index
    %183 = vector.load %arg12[%c0_84, %c0_85] : memref<256x384xf32, #tpu.memory_space<vmem>>, vector<256x384xf32>
    %cst_86 = arith.constant dense<0.000000e+00> : vector<64x384xf32>
    %184 = tpu.matmul %182, %183, %cst_86 {dimension_numbers = #tpu.dot_dimension_numbers<[1], [0], [0], [1], [0, 0, 1, 1], [], []>} : vector<64x256xf32>, vector<256x384xf32>, vector<64x384xf32> -> vector<64x384xf32>
    %185 = vector.extract_strided_slice %184 {offsets = [0, 256], sizes = [64, 16], strides = [1, 1]} : vector<64x384xf32> to vector<64x16xf32>
    %186 = vector.extract_strided_slice %184 {offsets = [0, 0], sizes = [64, 16], strides = [1, 1]} : vector<64x384xf32> to vector<64x16xf32>
    %187 = vector.extract_strided_slice %184 {offsets = [0, 16], sizes = [64, 16], strides = [1, 1]} : vector<64x384xf32> to vector<64x16xf32>
    %188 = vector.extract_strided_slice %184 {offsets = [0, 32], sizes = [64, 16], strides = [1, 1]} : vector<64x384xf32> to vector<64x16xf32>
    %189 = vector.extract_strided_slice %184 {offsets = [0, 48], sizes = [64, 16], strides = [1, 1]} : vector<64x384xf32> to vector<64x16xf32>
    %190 = vector.extract_strided_slice %184 {offsets = [0, 64], sizes = [64, 16], strides = [1, 1]} : vector<64x384xf32> to vector<64x16xf32>
    %191 = vector.extract_strided_slice %184 {offsets = [0, 80], sizes = [64, 16], strides = [1, 1]} : vector<64x384xf32> to vector<64x16xf32>
    %192 = vector.extract_strided_slice %184 {offsets = [0, 96], sizes = [64, 16], strides = [1, 1]} : vector<64x384xf32> to vector<64x16xf32>
    %193 = vector.extract_strided_slice %184 {offsets = [0, 112], sizes = [64, 16], strides = [1, 1]} : vector<64x384xf32> to vector<64x16xf32>
    %194 = vector.extract_strided_slice %184 {offsets = [0, 128], sizes = [64, 16], strides = [1, 1]} : vector<64x384xf32> to vector<64x16xf32>
    %195 = vector.extract_strided_slice %184 {offsets = [0, 144], sizes = [64, 16], strides = [1, 1]} : vector<64x384xf32> to vector<64x16xf32>
    %196 = vector.extract_strided_slice %184 {offsets = [0, 160], sizes = [64, 16], strides = [1, 1]} : vector<64x384xf32> to vector<64x16xf32>
    %197 = vector.extract_strided_slice %184 {offsets = [0, 176], sizes = [64, 16], strides = [1, 1]} : vector<64x384xf32> to vector<64x16xf32>
    %198 = vector.extract_strided_slice %184 {offsets = [0, 192], sizes = [64, 16], strides = [1, 1]} : vector<64x384xf32> to vector<64x16xf32>
    %199 = vector.extract_strided_slice %184 {offsets = [0, 208], sizes = [64, 16], strides = [1, 1]} : vector<64x384xf32> to vector<64x16xf32>
    %200 = vector.extract_strided_slice %184 {offsets = [0, 224], sizes = [64, 16], strides = [1, 1]} : vector<64x384xf32> to vector<64x16xf32>
    %201 = vector.extract_strided_slice %184 {offsets = [0, 240], sizes = [64, 16], strides = [1, 1]} : vector<64x384xf32> to vector<64x16xf32>
    %202 = arith.maximumf %186, %187 : vector<64x16xf32>
    %203 = arith.maximumf %188, %189 : vector<64x16xf32>
    %204 = arith.maximumf %190, %191 : vector<64x16xf32>
    %205 = arith.maximumf %192, %193 : vector<64x16xf32>
    %206 = arith.maximumf %194, %195 : vector<64x16xf32>
    %207 = arith.maximumf %196, %197 : vector<64x16xf32>
    %208 = arith.maximumf %198, %199 : vector<64x16xf32>
    %209 = arith.maximumf %200, %201 : vector<64x16xf32>
    %210 = arith.maximumf %202, %203 : vector<64x16xf32>
    %211 = arith.maximumf %204, %205 : vector<64x16xf32>
    %212 = arith.maximumf %206, %207 : vector<64x16xf32>
    %213 = arith.maximumf %208, %209 : vector<64x16xf32>
    %214 = arith.maximumf %210, %211 : vector<64x16xf32>
    %215 = arith.maximumf %212, %213 : vector<64x16xf32>
    %216 = arith.maximumf %214, %215 : vector<64x16xf32>
    %217 = tpu.concatenate %185, %216 in 1 : vector<64x16xf32>, vector<64x16xf32> -> vector<64x32xf32>
    %c0_87 = arith.constant 0 : index
    %c0_88 = arith.constant 0 : index
    %218 = vector.load %arg13[%c0_87, %c0_88] : memref<64x32xf32, #tpu.memory_space<vmem>>, vector<64x32xf32>
    tpu.vector_store %arg13[%c0_87, %c0_88], %217 {strides = array<i32>} : memref<64x32xf32, #tpu.memory_space<vmem>>, vector<64x32xf32>,
    return
  }
  func.func @transform_0(%arg0: i32) -> (i32, i32, i32) {
    %c0_i32 = arith.constant 0 : i32
    %c0_i32_0 = arith.constant 0 : i32
    %c0_i32_1 = arith.constant 0 : i32
    %c0_i32_2 = arith.constant 0 : i32
    return %c0_i32, %c0_i32_0, %c0_i32_1 : i32, i32, i32
  }
  func.func @transform_1(%arg0: i32) -> (i32, i32) {
    %c0_i32 = arith.constant 0 : i32
    %c0_i32_0 = arith.constant 0 : i32
    %c0_i32_1 = arith.constant 0 : i32
    return %c0_i32, %c0_i32_0 : i32, i32
  }
  func.func @transform_2(%arg0: i32) -> (i32, i32) {
    %c0_i32 = arith.constant 0 : i32
    %c0_i32_0 = arith.constant 0 : i32
    %c0_i32_1 = arith.constant 0 : i32
    return %c0_i32, %c0_i32_0 : i32, i32
  }
  func.func @transform_3(%arg0: i32) -> (i32, i32) {
    %c0_i32 = arith.constant 0 : i32
    %c0_i32_0 = arith.constant 0 : i32
    %c0_i32_1 = arith.constant 0 : i32
    return %c0_i32, %c0_i32_0 : i32, i32
  }
  func.func @transform_4(%arg0: i32) -> (i32, i32) {
    %c0_i32 = arith.constant 0 : i32
    %c0_i32_0 = arith.constant 0 : i32
    %c0_i32_1 = arith.constant 0 : i32
    return %c0_i32, %c0_i32_0 : i32, i32
  }
  func.func @transform_5(%arg0: i32) -> (i32, i32) {
    %c0_i32 = arith.constant 0 : i32
    %c0_i32_0 = arith.constant 0 : i32
    %c0_i32_1 = arith.constant 0 : i32
    return %c0_i32, %c0_i32_0 : i32, i32
  }
  func.func @transform_6(%arg0: i32) -> (i32, i32) {
    %c0_i32 = arith.constant 0 : i32
    %c0_i32_0 = arith.constant 0 : i32
    %c0_i32_1 = arith.constant 0 : i32
    return %c0_i32, %c0_i32_0 : i32, i32
  }
  func.func @transform_7(%arg0: i32) -> (i32, i32) {
    %c0_i32 = arith.constant 0 : i32
    %c0_i32_0 = arith.constant 0 : i32
    %c0_i32_1 = arith.constant 0 : i32
    return %c0_i32, %c0_i32_0 : i32, i32
  }
  func.func @transform_8(%arg0: i32) -> (i32, i32) {
    %c0_i32 = arith.constant 0 : i32
    %c0_i32_0 = arith.constant 0 : i32
    %c0_i32_1 = arith.constant 0 : i32
    return %c0_i32, %c0_i32_0 : i32, i32
  }
  func.func @transform_9(%arg0: i32) -> (i32, i32) {
    %c0_i32 = arith.constant 0 : i32
    %c0_i32_0 = arith.constant 0 : i32
    %c0_i32_1 = arith.constant 0 : i32
    return %c0_i32, %c0_i32_0 : i32, i32
  }
  func.func @transform_10(%arg0: i32) -> (i32, i32) {
    %c0_i32 = arith.constant 0 : i32
    %c0_i32_0 = arith.constant 0 : i32
    %c0_i32_1 = arith.constant 0 : i32
    return %c0_i32, %c0_i32_0 : i32, i32
  }
  func.func @transform_11(%arg0: i32) -> (i32, i32) {
    %c0_i32 = arith.constant 0 : i32
    %c0_i32_0 = arith.constant 0 : i32
    %c0_i32_1 = arith.constant 0 : i32
    return %c0_i32, %c0_i32_0 : i32, i32
  }
  func.func @transform_12(%arg0: i32) -> (i32, i32) {
    %c0_i32 = arith.constant 0 : i32
    %c0_i32_0 = arith.constant 0 : i32
    %c0_i32_1 = arith.constant 0 : i32
    return %c0_i32, %c0_i32_0 : i32, i32
  }
  func.func @transform_13(%arg0: i32) -> (i32, i32) {
    %c0_i32 = arith.constant 0 : i32
    %c0_i32_0 = arith.constant 0 : i32
    %c0_i32_1 = arith.constant 0 : i32
    return %c0_i32, %c0_i32_0 : i32, i32
  }
}

</mosaic_0001>

<llo_original>
// kernel: scale_specific_processor.1
$region0: #{scale_specific_processor.1}
  #allocation0 [shape = 'u32[]', space=smem, size = 0x4, offset = 0x4, fixed_abs, tag = 'smem constant byte address 0x4 - core index']
  #allocation1 [shape = 'u32[144,128]{1,0:T(1,128)}', space=vmem, size = 0x12000, scoped, tag = 'internal scratch']
  #allocation2 [shape = 'f32[288,512]{1,0:T(8,128)}', space=vmem, size = 0x90000, scoped, tag = 'scratch operand']
  %s0 = inlined_call_operand.vmem [shape: f32[2,32,256], index: 0, kind: input, shape index: {}]
  %s1 = inlined_call_operand.vmem [shape: f32[32,2], index: 1, kind: input, shape index: {}]
  %s2 = inlined_call_operand.vmem [shape: f32[1,2], index: 2, kind: input, shape index: {}]
  %s3 = inlined_call_operand.vmem [shape: f32[32,2], index: 3, kind: input, shape index: {}]
  %s4 = inlined_call_operand.vmem [shape: f32[32,1], index: 4, kind: input, shape index: {}]
  %s5 = inlined_call_operand.vmem [shape: f32[512,256], index: 5, kind: input, shape index: {}]
  %s6 = inlined_call_operand.vmem [shape: f32[32,288], index: 6, kind: input, shape index: {}]
  %s7 = inlined_call_operand.vmem [shape: f32[32,1], index: 7, kind: input, shape index: {}]
  %s8 = inlined_call_operand.vmem [shape: f32[32,1], index: 8, kind: input, shape index: {}]
  %s9 = inlined_call_operand.vmem [shape: f32[32,1], index: 9, kind: input, shape index: {}]
  %s10 = inlined_call_operand.vmem [shape: f32[9,512], index: 10, kind: input, shape index: {}]
  %s11 = inlined_call_operand.vmem [shape: f32[256,384], index: 11, kind: input, shape index: {}]
  %s12 = inlined_call_operand.vmem [shape: f32[64,32], index: 12, kind: output, shape index: {0}]
  %s13 = inlined_call_operand.vmem [shape: f32[2,256], index: 13, kind: output, shape index: {1}]
  %14 = xla_tuple %s12, %s13
  %s15 = sld [smem:[#allocation0]]
  $region66: #{scale_specific_processor.1} parent=0
    _
  %s17 = ssub.s32 1, %s15
  %s18 = scalar_select 0, %s17, %s15
  // Predicated region
  $region2: #{scale_specific_processor.1} parent=0 // pred_check
    _
  $region3: #{scale_specific_processor.1} parent=0 // pred_check_branch
    %20 = sbr.rel (0) target = $region5
  $region4: #{scale_specific_processor.1} parent=0 // pred_region
    _
  $region5: #{scale_specific_processor.1} parent=0 // pred_fallthru
    _
  // Predicated region
  $region6: #{scale_specific_processor.1} parent=0 // pred_check
    _
  $region7: #{scale_specific_processor.1} parent=0 // pred_check_branch
    %22 = sbr.rel (0) target = $region9
  $region8: #{scale_specific_processor.1} parent=0 // pred_region
    _
  $region9: #{scale_specific_processor.1} parent=0 // pred_fallthru
    _
  // Predicated region
  $region10: #{scale_specific_processor.1} parent=0 // pred_check
    _
  $region11: #{scale_specific_processor.1} parent=0 // pred_check_branch
    %24 = sbr.rel (0) target = $region13
  $region12: #{scale_specific_processor.1} parent=0 // pred_region
    _
  $region13: #{scale_specific_processor.1} parent=0 // pred_fallthru
    _
  // Predicated region
  $region14: #{scale_specific_processor.1} parent=0 // pred_check
    _
  $region15: #{scale_specific_processor.1} parent=0 // pred_check_branch
    %26 = sbr.rel (0) target = $region17
  $region16: #{scale_specific_processor.1} parent=0 // pred_region
    _
  $region17: #{scale_specific_processor.1} parent=0 // pred_fallthru
    _
  // Predicated region
  $region18: #{scale_specific_processor.1} parent=0 // pred_check
    _
  $region19: #{scale_specific_processor.1} parent=0 // pred_check_branch
    %28 = sbr.rel (0) target = $region21
  $region20: #{scale_specific_processor.1} parent=0 // pred_region
    _
  $region21: #{scale_specific_processor.1} parent=0 // pred_fallthru
    _
  // Predicated region
  $region22: #{scale_specific_processor.1} parent=0 // pred_check
    _
  $region23: #{scale_specific_processor.1} parent=0 // pred_check_branch
    %30 = sbr.rel (0) target = $region25
  $region24: #{scale_specific_processor.1} parent=0 // pred_region
    _
  $region25: #{scale_specific_processor.1} parent=0 // pred_fallthru
    _
  // Predicated region
  $region26: #{scale_specific_processor.1} parent=0 // pred_check
    _
  $region27: #{scale_specific_processor.1} parent=0 // pred_check_branch
    %32 = sbr.rel (0) target = $region29
  $region28: #{scale_specific_processor.1} parent=0 // pred_region
    _
  $region29: #{scale_specific_processor.1} parent=0 // pred_fallthru
    _
  // Predicated region
  $region30: #{scale_specific_processor.1} parent=0 // pred_check
    _
  $region31: #{scale_specific_processor.1} parent=0 // pred_check_branch
    %34 = sbr.rel (0) target = $region33
  $region32: #{scale_specific_processor.1} parent=0 // pred_region
    _
  $region33: #{scale_specific_processor.1} parent=0 // pred_fallthru
    _
  // Predicated region
  $region34: #{scale_specific_processor.1} parent=0 // pred_check
    _
  $region35: #{scale_specific_processor.1} parent=0 // pred_check_branch
    %36 = sbr.rel (0) target = $region37
  $region36: #{scale_specific_processor.1} parent=0 // pred_region
    _
  $region37: #{scale_specific_processor.1} parent=0 // pred_fallthru
    _
  // Predicated region
  $region38: #{scale_specific_processor.1} parent=0 // pred_check
    _
  $region39: #{scale_specific_processor.1} parent=0 // pred_check_branch
    %38 = sbr.rel (0) target = $region41
  $region40: #{scale_specific_processor.1} parent=0 // pred_region
    _
  $region41: #{scale_specific_processor.1} parent=0 // pred_fallthru
    _
  // Predicated region
  $region42: #{scale_specific_processor.1} parent=0 // pred_check
    _
  $region43: #{scale_specific_processor.1} parent=0 // pred_check_branch
    %40 = sbr.rel (0) target = $region45
  $region44: #{scale_specific_processor.1} parent=0 // pred_region
    _
  $region45: #{scale_specific_processor.1} parent=0 // pred_fallthru
    _
  // Predicated region
  $region46: #{scale_specific_processor.1} parent=0 // pred_check
    _
  $region47: #{scale_specific_processor.1} parent=0 // pred_check_branch
    %42 = sbr.rel (0) target = $region49
  $region48: #{scale_specific_processor.1} parent=0 // pred_region
    _
  $region49: #{scale_specific_processor.1} parent=0 // pred_fallthru
    _
  %v43 = vld [vmem:[%s0] sm:$0xff]
  %v44 = vld [vmem:[%s0 + $0x8] sm:$0xff]
  %v45 = vld [vmem:[%s0 + $0x10] sm:$0xff]
  %v46 = vld [vmem:[%s0 + $0x18] sm:$0xff]
  %v47 = vld [vmem:[%s0 + $0x20] sm:$0xff]
  %v48 = vld [vmem:[%s0 + $0x28] sm:$0xff]
  %v49 = vld [vmem:[%s0 + $0x30] sm:$0xff]
  %v50 = vld [vmem:[%s0 + $0x38] sm:$0xff]
  %v51 = vadd.f32 %v43, %v44
  %52 = vadd.xlane.f32.xlu0 %v51
  %v53 = vpop.xlane.xlu0 %52
  %v54 = vadd.f32 %v45, %v46
  %55 = vadd.xlane.f32.xlu0 %v54
  %v56 = vpop.xlane.xlu0 %55
  %v57 = vadd.f32 %v47, %v48
  %58 = vadd.xlane.f32.xlu0 %v57
  %v59 = vpop.xlane.xlu0 %58
  %v60 = vadd.f32 %v49, %v50
  %61 = vadd.xlane.f32.xlu0 %v60
  %v62 = vpop.xlane.xlu0 %61
  %v63 = vrcp.pop 256.0
  %v64 = vmul.f32 %v53, %v63
  %v65 = vmul.f32 %v56, %v63
  %v66 = vmul.f32 %v59, %v63
  %v67 = vmul.f32 %v62, %v63
  %v68 = vld [vmem:[%s1] sm:$0xff]
  %v69 = vld [vmem:[%s1 + $0x8] sm:$0xff]
  %v70 = vld [vmem:[%s1 + $0x10] sm:$0xff]
  %v71 = vld [vmem:[%s1 + $0x18] sm:$0xff]
  %v72 = vmul.f32 %v68, %v64
  %v73 = vmul.f32 %v69, %v65
  %v74 = vmul.f32 %v70, %v66
  %v75 = vmul.f32 %v71, %v67
  %vm76 = vcmask 15360
  %v77 = vsel %vm76, %v72, 0.0
  %v78 = vsel %vm76, %v73, 0.0
  %v79 = vadd.f32 %v77, %v78
  %v80 = vsel %vm76, %v74, 0.0
  %v81 = vadd.f32 %v79, %v80
  %v82 = vsel %vm76, %v75, 0.0
  %v83 = vadd.f32 %v81, %v82
  %v84 = vrot.slane %v83, 4
  %v85 = vadd.f32 %v83, %v84
  %v86 = vrot.slane %v85, 2
  %v87 = vadd.f32 %v85, %v86
  %v88 = vrot.slane %v87, 1
  %v89 = vadd.f32 %v87, %v88
  %v90 = vld [vmem:[%s2] sm:$0x1]
  %v91 = vadd.f32 %v89, %v90
  %v92 = vmax.f32 %v91, 0.0
  %v93 = vld [vmem:[%s3] sm:$0xff]
  %v94 = vld [vmem:[%s3 + $0x8] sm:$0xff]
  %v95 = vld [vmem:[%s3 + $0x10] sm:$0xff]
  %v96 = vld [vmem:[%s3 + $0x18] sm:$0xff]
  %v97 = vlaneseq
  %v98 = vshrl.u32 %v97, 7
  %v99 = vsub.s32 0, %v98
  %v100 = vrot.slane %v92, %v99
  %v101 = vmul.f32 %v93, %v100
  %v102 = vmul.f32 %v94, %v100
  %v103 = vmul.f32 %v95, %v100
  %v104 = vmul.f32 %v96, %v100
  %v105 = vsel %vm76, %v101, 0.0
  %106 = vadd.xlane.f32.xlu0 %v105
  %v107 = vpop.xlane.xlu0 %106
  %v108 = vsel %vm76, %v102, 0.0
  %109 = vadd.xlane.f32.xlu0 %v108
  %v110 = vpop.xlane.xlu0 %109
  %v111 = vsel %vm76, %v103, 0.0
  %112 = vadd.xlane.f32.xlu0 %v111
  %v113 = vpop.xlane.xlu0 %112
  %v114 = vsel %vm76, %v104, 0.0
  %115 = vadd.xlane.f32.xlu0 %v114
  %v116 = vpop.xlane.xlu0 %115
  %v117 = vld [vmem:[%s4] sm:$0xff]
  %v118 = vld [vmem:[%s4 + $0x8] sm:$0xff]
  %v119 = vld [vmem:[%s4 + $0x10] sm:$0xff]
  %v120 = vld [vmem:[%s4 + $0x18] sm:$0xff]
  %v121 = vadd.f32 %v107, %v117
  %v122 = vadd.f32 %v110, %v118
  %v123 = vadd.f32 %v113, %v119
  %v124 = vadd.f32 %v116, %v120
  %v125 = vsub.f32 0.0, %v121
  %v126 = vsub.f32 0.0, %v122
  %v127 = vsub.f32 0.0, %v123
  %v128 = vsub.f32 0.0, %v124
  %v129 = vmul.f32 %v125, 1.442695
  %v130 = vpow.pop %v129
  %v131 = vmul.f32 %v126, 1.442695
  %v132 = vpow.pop %v131
  %v133 = vmul.f32 %v127, 1.442695
  %v134 = vpow.pop %v133
  %v135 = vmul.f32 %v128, 1.442695
  %v136 = vpow.pop %v135
  %v137 = vadd.f32 %v130, 1.0
  %v138 = vadd.f32 %v132, 1.0
  %v139 = vadd.f32 %v134, 1.0
  %v140 = vadd.f32 %v136, 1.0
  %v141 = vrcp.pop %v137
  %v142 = vrcp.pop %v138
  %v143 = vrcp.pop %v139
  %v144 = vrcp.pop %v140
  %146 = vset.pattern.permute.xlu0 0
  %147 = vperm.xlu0 %146, %v141
  %v148 = vpop.permute.xlu0 %147
  %151 = vset.pattern.permute.xlu0 0
  %152 = vperm.xlu0 %151, %v142
  %v153 = vpop.permute.xlu0 %152
  %156 = vset.pattern.permute.xlu0 0
  %157 = vperm.xlu0 %156, %v143
  %v158 = vpop.permute.xlu0 %157
  %161 = vset.pattern.permute.xlu0 0
  %162 = vperm.xlu0 %161, %v144
  %v163 = vpop.permute.xlu0 %162
  %v165 = vmul.f32 %v43, %v148
  %v166 = vmul.f32 %v44, %v148
  %v167 = vmul.f32 %v45, %v153
  %v168 = vmul.f32 %v46, %v153
  %v169 = vmul.f32 %v47, %v158
  %v170 = vmul.f32 %v48, %v158
  %v171 = vmul.f32 %v49, %v163
  %v172 = vmul.f32 %v50, %v163
  %v173 = vadd.f32 %v165, %v167
  %v174 = vadd.f32 %v173, %v169
  %v175 = vadd.f32 %v174, %v171
  %v176 = vrot.slane %v175, 4
  %v177 = vadd.f32 %v175, %v176
  %v178 = vrot.slane %v177, 2
  %v179 = vadd.f32 %v177, %v178
  %v180 = vrot.slane %v179, 1
  %v181 = vadd.f32 %v179, %v180
  %v182 = vadd.f32 %v166, %v168
  %v183 = vadd.f32 %v182, %v170
  %v184 = vadd.f32 %v183, %v172
  %v185 = vrot.slane %v184, 4
  %v186 = vadd.f32 %v184, %v185
  %v187 = vrot.slane %v186, 2
  %v188 = vadd.f32 %v186, %v187
  %v189 = vrot.slane %v188, 1
  %v190 = vadd.f32 %v188, %v189
  %v191 = vrcp.pop 32.0
  %v192 = vmul.f32 %v181, %v191
  %v193 = vmul.f32 %v190, %v191
  %v194 = vmax.f32 %v165, %v169
  %v195 = vmax.f32 %v167, %v171
  %v196 = vmax.f32 %v194, %v195
  %v197 = vrot.slane %v196, 4
  %v198 = vmax.f32 %v196, %v197
  %v199 = vrot.slane %v198, 2
  %v200 = vmax.f32 %v198, %v199
  %v201 = vrot.slane %v200, 1
  %v202 = vmax.f32 %v200, %v201
  %v203 = vmax.f32 %v166, %v170
  %v204 = vmax.f32 %v168, %v172
  %v205 = vmax.f32 %v203, %v204
  %v206 = vrot.slane %v205, 4
  %v207 = vmax.f32 %v205, %v206
  %v208 = vrot.slane %v207, 2
  %v209 = vmax.f32 %v207, %v208
  %v210 = vrot.slane %v209, 1
  %v211 = vmax.f32 %v209, %v210
  %s212 = scalar_lea.vmem %s0, 64
  %v213 = vld [vmem:[%s212] sm:$0xff]
  %v214 = vld [vmem:[%s212 + $0x8] sm:$0xff]
  %v215 = vld [vmem:[%s212 + $0x10] sm:$0xff]
  %v216 = vld [vmem:[%s212 + $0x18] sm:$0xff]
  %v217 = vld [vmem:[%s212 + $0x20] sm:$0xff]
  %v218 = vld [vmem:[%s212 + $0x28] sm:$0xff]
  %v219 = vld [vmem:[%s212 + $0x30] sm:$0xff]
  %v220 = vld [vmem:[%s212 + $0x38] sm:$0xff]
  %v221 = vadd.f32 %v213, %v214
  %222 = vadd.xlane.f32.xlu0 %v221
  %v223 = vpop.xlane.xlu0 %222
  %v224 = vadd.f32 %v215, %v216
  %225 = vadd.xlane.f32.xlu0 %v224
  %v226 = vpop.xlane.xlu0 %225
  %v227 = vadd.f32 %v217, %v218
  %228 = vadd.xlane.f32.xlu0 %v227
  %v229 = vpop.xlane.xlu0 %228
  %v230 = vadd.f32 %v219, %v220
  %231 = vadd.xlane.f32.xlu0 %v230
  %v232 = vpop.xlane.xlu0 %231
  %v233 = vmul.f32 %v223, %v63
  %v234 = vmul.f32 %v226, %v63
  %v235 = vmul.f32 %v229, %v63
  %v236 = vmul.f32 %v232, %v63
  %v237 = vmul.f32 %v68, %v233
  %v238 = vmul.f32 %v69, %v234
  %v239 = vmul.f32 %v70, %v235
  %v240 = vmul.f32 %v71, %v236
  %v241 = vsel %vm76, %v237, 0.0
  %v242 = vsel %vm76, %v238, 0.0
  %v243 = vadd.f32 %v241, %v242
  %v244 = vsel %vm76, %v239, 0.0
  %v245 = vadd.f32 %v243, %v244
  %v246 = vsel %vm76, %v240, 0.0
  %v247 = vadd.f32 %v245, %v246
  %v248 = vrot.slane %v247, 4
  %v249 = vadd.f32 %v247, %v248
  %v250 = vrot.slane %v249, 2
  %v251 = vadd.f32 %v249, %v250
  %v252 = vrot.slane %v251, 1
  %v253 = vadd.f32 %v251, %v252
  %v254 = vadd.f32 %v253, %v90
  %v255 = vmax.f32 %v254, 0.0
  %v256 = vlaneseq
  %v257 = vshrl.u32 %v256, 7
  %v258 = vsub.s32 0, %v257
  %v259 = vrot.slane %v255, %v258
  %v260 = vmul.f32 %v93, %v259
  %v261 = vmul.f32 %v94, %v259
  %v262 = vmul.f32 %v95, %v259
  %v263 = vmul.f32 %v96, %v259
  %v264 = vsel %vm76, %v260, 0.0
  %265 = vadd.xlane.f32.xlu0 %v264
  %v266 = vpop.xlane.xlu0 %265
  %v267 = vsel %vm76, %v261, 0.0
  %268 = vadd.xlane.f32.xlu0 %v267
  %v269 = vpop.xlane.xlu0 %268
  %v270 = vsel %vm76, %v262, 0.0
  %271 = vadd.xlane.f32.xlu0 %v270
  %v272 = vpop.xlane.xlu0 %271
  %v273 = vsel %vm76, %v263, 0.0
  %274 = vadd.xlane.f32.xlu0 %v273
  %v275 = vpop.xlane.xlu0 %274
  %v276 = vadd.f32 %v266, %v117
  %v277 = vadd.f32 %v269, %v118
  %v278 = vadd.f32 %v272, %v119
  %v279 = vadd.f32 %v275, %v120
  %v280 = vsub.f32 0.0, %v276
  %v281 = vsub.f32 0.0, %v277
  %v282 = vsub.f32 0.0, %v278
  %v283 = vsub.f32 0.0, %v279
  %v284 = vmul.f32 %v280, 1.442695
  %v285 = vpow.pop %v284
  %v286 = vmul.f32 %v281, 1.442695
  %v287 = vpow.pop %v286
  %v288 = vmul.f32 %v282, 1.442695
  %v289 = vpow.pop %v288
  %v290 = vmul.f32 %v283, 1.442695
  %v291 = vpow.pop %v290
  %v292 = vadd.f32 %v285, 1.0
  %v293 = vadd.f32 %v287, 1.0
  %v294 = vadd.f32 %v289, 1.0
  %v295 = vadd.f32 %v291, 1.0
  %v296 = vrcp.pop %v292
  %v297 = vrcp.pop %v293
  %v298 = vrcp.pop %v294
  %v299 = vrcp.pop %v295
  %301 = vset.pattern.permute.xlu0 0
  %302 = vperm.xlu0 %301, %v296
  %v303 = vpop.permute.xlu0 %302
  %306 = vset.pattern.permute.xlu0 0
  %307 = vperm.xlu0 %306, %v297
  %v308 = vpop.permute.xlu0 %307
  %311 = vset.pattern.permute.xlu0 0
  %312 = vperm.xlu0 %311, %v298
  %v313 = vpop.permute.xlu0 %312
  %316 = vset.pattern.permute.xlu0 0
  %317 = vperm.xlu0 %316, %v299
  %v318 = vpop.permute.xlu0 %317
  %v320 = vmul.f32 %v213, %v303
  %v321 = vmul.f32 %v214, %v303
  %v322 = vmul.f32 %v215, %v308
  %v323 = vmul.f32 %v216, %v308
  %v324 = vmul.f32 %v217, %v313
  %v325 = vmul.f32 %v218, %v313
  %v326 = vmul.f32 %v219, %v318
  %v327 = vmul.f32 %v220, %v318
  %v328 = vadd.f32 %v320, %v322
  %v329 = vadd.f32 %v328, %v324
  %v330 = vadd.f32 %v329, %v326
  %v331 = vrot.slane %v330, 4
  %v332 = vadd.f32 %v330, %v331
  %v333 = vrot.slane %v332, 2
  %v334 = vadd.f32 %v332, %v333
  %v335 = vrot.slane %v334, 1
  %v336 = vadd.f32 %v334, %v335
  %v337 = vadd.f32 %v321, %v323
  %v338 = vadd.f32 %v337, %v325
  %v339 = vadd.f32 %v338, %v327
  %v340 = vrot.slane %v339, 4
  %v341 = vadd.f32 %v339, %v340
  %v342 = vrot.slane %v341, 2
  %v343 = vadd.f32 %v341, %v342
  %v344 = vrot.slane %v343, 1
  %v345 = vadd.f32 %v343, %v344
  %v346 = vmul.f32 %v336, %v191
  %v347 = vmul.f32 %v345, %v191
  %v348 = vmax.f32 %v320, %v324
  %v349 = vmax.f32 %v322, %v326
  %v350 = vmax.f32 %v348, %v349
  %v351 = vrot.slane %v350, 4
  %v352 = vmax.f32 %v350, %v351
  %v353 = vrot.slane %v352, 2
  %v354 = vmax.f32 %v352, %v353
  %v355 = vrot.slane %v354, 1
  %v356 = vmax.f32 %v354, %v355
  %v357 = vmax.f32 %v321, %v325
  %v358 = vmax.f32 %v323, %v327
  %v359 = vmax.f32 %v357, %v358
  %v360 = vrot.slane %v359, 4
  %v361 = vmax.f32 %v359, %v360
  %v362 = vrot.slane %v361, 2
  %v363 = vmax.f32 %v361, %v362
  %v364 = vrot.slane %v363, 1
  %v365 = vmax.f32 %v363, %v364
  %v370 = vrot.slane %v346, 7
  %v371 = vrot.slane %v347, 7
  %v372 = vrot.slane %v356, 7
  %v373 = vrot.slane %v365, 7
  %vm378 = vcmask 1040384
  %v379 = vsel %vm378, %v192, %v370
  %v380 = vsel %vm378, %v193, %v371
  %v381 = vsel %vm378, %v202, %v372
  %v382 = vsel %vm378, %v211, %v373
  %v383 = vld [vmem:[%s5] sm:$0xff]
  %v384 = vld [vmem:[%s5 + $0x8] sm:$0xff]
  %v385 = vld [vmem:[%s5 + $0x10] sm:$0xff]
  %v386 = vld [vmem:[%s5 + $0x18] sm:$0xff]
  %v387 = vld [vmem:[%s5 + $0x20] sm:$0xff]
  %v388 = vld [vmem:[%s5 + $0x28] sm:$0xff]
  %v389 = vld [vmem:[%s5 + $0x30] sm:$0xff]
  %v390 = vld [vmem:[%s5 + $0x38] sm:$0xff]
  %v391 = vld [vmem:[%s5 + $0x40] sm:$0xff]
  %v392 = vld [vmem:[%s5 + $0x48] sm:$0xff]
  %v393 = vld [vmem:[%s5 + $0x50] sm:$0xff]
  %v394 = vld [vmem:[%s5 + $0x58] sm:$0xff]
  %v395 = vld [vmem:[%s5 + $0x60] sm:$0xff]
  %v396 = vld [vmem:[%s5 + $0x68] sm:$0xff]
  %v397 = vld [vmem:[%s5 + $0x70] sm:$0xff]
  %v398 = vld [vmem:[%s5 + $0x78] sm:$0xff]
  %v399 = vld [vmem:[%s5 + $0x80] sm:$0xff]
  %v400 = vld [vmem:[%s5 + $0x88] sm:$0xff]
  %v401 = vld [vmem:[%s5 + $0x90] sm:$0xff]
  %v402 = vld [vmem:[%s5 + $0x98] sm:$0xff]
  %v403 = vld [vmem:[%s5 + $0xa0] sm:$0xff]
  %v404 = vld [vmem:[%s5 + $0xa8] sm:$0xff]
  %v405 = vld [vmem:[%s5 + $0xb0] sm:$0xff]
  %v406 = vld [vmem:[%s5 + $0xb8] sm:$0xff]
  %v407 = vld [vmem:[%s5 + $0xc0] sm:$0xff]
  %v408 = vld [vmem:[%s5 + $0xc8] sm:$0xff]
  %v409 = vld [vmem:[%s5 + $0xd0] sm:$0xff]
  %v410 = vld [vmem:[%s5 + $0xd8] sm:$0xff]
  %v411 = vld [vmem:[%s5 + $0xe0] sm:$0xff]
  %v412 = vld [vmem:[%s5 + $0xe8] sm:$0xff]
  %v413 = vld [vmem:[%s5 + $0xf0] sm:$0xff]
  %v414 = vld [vmem:[%s5 + $0xf8] sm:$0xff]
  %v415 = vld [vmem:[%s5 + $0x100] sm:$0xff]
  %v416 = vld [vmem:[%s5 + $0x108] sm:$0xff]
  %v417 = vld [vmem:[%s5 + $0x110] sm:$0xff]
  %v418 = vld [vmem:[%s5 + $0x118] sm:$0xff]
  %v419 = vld [vmem:[%s5 + $0x120] sm:$0xff]
  %v420 = vld [vmem:[%s5 + $0x128] sm:$0xff]
  %v421 = vld [vmem:[%s5 + $0x130] sm:$0xff]
  %v422 = vld [vmem:[%s5 + $0x138] sm:$0xff]
  %v423 = vld [vmem:[%s5 + $0x140] sm:$0xff]
  %v424 = vld [vmem:[%s5 + $0x148] sm:$0xff]
  %v425 = vld [vmem:[%s5 + $0x150] sm:$0xff]
  %v426 = vld [vmem:[%s5 + $0x158] sm:$0xff]
  %v427 = vld [vmem:[%s5 + $0x160] sm:$0xff]
  %v428 = vld [vmem:[%s5 + $0x168] sm:$0xff]
  %v429 = vld [vmem:[%s5 + $0x170] sm:$0xff]
  %v430 = vld [vmem:[%s5 + $0x178] sm:$0xff]
  %v431 = vld [vmem:[%s5 + $0x180] sm:$0xff]
  %v432 = vld [vmem:[%s5 + $0x188] sm:$0xff]
  %v433 = vld [vmem:[%s5 + $0x190] sm:$0xff]
  %v434 = vld [vmem:[%s5 + $0x198] sm:$0xff]
  %v435 = vld [vmem:[%s5 + $0x1a0] sm:$0xff]
  %v436 = vld [vmem:[%s5 + $0x1a8] sm:$0xff]
  %v437 = vld [vmem:[%s5 + $0x1b0] sm:$0xff]
  %v438 = vld [vmem:[%s5 + $0x1b8] sm:$0xff]
  %v439 = vld [vmem:[%s5 + $0x1c0] sm:$0xff]
  %v440 = vld [vmem:[%s5 + $0x1c8] sm:$0xff]
  %v441 = vld [vmem:[%s5 + $0x1d0] sm:$0xff]
  %v442 = vld [vmem:[%s5 + $0x1d8] sm:$0xff]
  %v443 = vld [vmem:[%s5 + $0x1e0] sm:$0xff]
  %v444 = vld [vmem:[%s5 + $0x1e8] sm:$0xff]
  %v445 = vld [vmem:[%s5 + $0x1f0] sm:$0xff]
  %v446 = vld [vmem:[%s5 + $0x1f8] sm:$0xff]
  %v447 = vld [vmem:[%s5 + $0x200] sm:$0xff]
  %v448 = vld [vmem:[%s5 + $0x208] sm:$0xff]
  %v449 = vld [vmem:[%s5 + $0x210] sm:$0xff]
  %v450 = vld [vmem:[%s5 + $0x218] sm:$0xff]
  %v451 = vld [vmem:[%s5 + $0x220] sm:$0xff]
  %v452 = vld [vmem:[%s5 + $0x228] sm:$0xff]
  %v453 = vld [vmem:[%s5 + $0x230] sm:$0xff]
  %v454 = vld [vmem:[%s5 + $0x238] sm:$0xff]
  %v455 = vld [vmem:[%s5 + $0x240] sm:$0xff]
  %v456 = vld [vmem:[%s5 + $0x248] sm:$0xff]
  %v457 = vld [vmem:[%s5 + $0x250] sm:$0xff]
  %v458 = vld [vmem:[%s5 + $0x258] sm:$0xff]
  %v459 = vld [vmem:[%s5 + $0x260] sm:$0xff]
  %v460 = vld [vmem:[%s5 + $0x268] sm:$0xff]
  %v461 = vld [vmem:[%s5 + $0x270] sm:$0xff]
  %v462 = vld [vmem:[%s5 + $0x278] sm:$0xff]
  %v463 = vld [vmem:[%s5 + $0x280] sm:$0xff]
  %v464 = vld [vmem:[%s5 + $0x288] sm:$0xff]
  %v465 = vld [vmem:[%s5 + $0x290] sm:$0xff]
  %v466 = vld [vmem:[%s5 + $0x298] sm:$0xff]
  %v467 = vld [vmem:[%s5 + $0x2a0] sm:$0xff]
  %v468 = vld [vmem:[%s5 + $0x2a8] sm:$0xff]
  %v469 = vld [vmem:[%s5 + $0x2b0] sm:$0xff]
  %v470 = vld [vmem:[%s5 + $0x2b8] sm:$0xff]
  %v471 = vld [vmem:[%s5 + $0x2c0] sm:$0xff]
  %v472 = vld [vmem:[%s5 + $0x2c8] sm:$0xff]
  %v473 = vld [vmem:[%s5 + $0x2d0] sm:$0xff]
  %v474 = vld [vmem:[%s5 + $0x2d8] sm:$0xff]
  %v475 = vld [vmem:[%s5 + $0x2e0] sm:$0xff]
  %v476 = vld [vmem:[%s5 + $0x2e8] sm:$0xff]
  %v477 = vld [vmem:[%s5 + $0x2f0] sm:$0xff]
  %v478 = vld [vmem:[%s5 + $0x2f8] sm:$0xff]
  %v479 = vld [vmem:[%s5 + $0x300] sm:$0xff]
  %v480 = vld [vmem:[%s5 + $0x308] sm:$0xff]
  %v481 = vld [vmem:[%s5 + $0x310] sm:$0xff]
  %v482 = vld [vmem:[%s5 + $0x318] sm:$0xff]
  %v483 = vld [vmem:[%s5 + $0x320] sm:$0xff]
  %v484 = vld [vmem:[%s5 + $0x328] sm:$0xff]
  %v485 = vld [vmem:[%s5 + $0x330] sm:$0xff]
  %v486 = vld [vmem:[%s5 + $0x338] sm:$0xff]
  %v487 = vld [vmem:[%s5 + $0x340] sm:$0xff]
  %v488 = vld [vmem:[%s5 + $0x348] sm:$0xff]
  %v489 = vld [vmem:[%s5 + $0x350] sm:$0xff]
  %v490 = vld [vmem:[%s5 + $0x358] sm:$0xff]
  %v491 = vld [vmem:[%s5 + $0x360] sm:$0xff]
  %v492 = vld [vmem:[%s5 + $0x368] sm:$0xff]
  %v493 = vld [vmem:[%s5 + $0x370] sm:$0xff]
  %v494 = vld [vmem:[%s5 + $0x378] sm:$0xff]
  %v495 = vld [vmem:[%s5 + $0x380] sm:$0xff]
  %v496 = vld [vmem:[%s5 + $0x388] sm:$0xff]
  %v497 = vld [vmem:[%s5 + $0x390] sm:$0xff]
  %v498 = vld [vmem:[%s5 + $0x398] sm:$0xff]
  %v499 = vld [vmem:[%s5 + $0x3a0] sm:$0xff]
  %v500 = vld [vmem:[%s5 + $0x3a8] sm:$0xff]
  %v501 = vld [vmem:[%s5 + $0x3b0] sm:$0xff]
  %v502 = vld [vmem:[%s5 + $0x3b8] sm:$0xff]
  %v503 = vld [vmem:[%s5 + $0x3c0] sm:$0xff]
  %v504 = vld [vmem:[%s5 + $0x3c8] sm:$0xff]
  %v505 = vld [vmem:[%s5 + $0x3d0] sm:$0xff]
  %v506 = vld [vmem:[%s5 + $0x3d8] sm:$0xff]
  %v507 = vld [vmem:[%s5 + $0x3e0] sm:$0xff]
  %v508 = vld [vmem:[%s5 + $0x3e8] sm:$0xff]
  %v509 = vld [vmem:[%s5 + $0x3f0] sm:$0xff]
  %v510 = vld [vmem:[%s5 + $0x3f8] sm:$0xff]
  %511 = vmatprep.subr.mxu0 %v384
  %512 = vmatpush1.msra.mxu0 %v383
  %513 = vmatprep.subr.mxu0 %v386
  %514 = vmatpush1.msra.mxu0 %v385
  %515 = vmatprep.subr.mxu0 %v388
  %516 = vmatpush1.msra.mxu0 %v387
  %517 = vmatprep.subr.mxu0 %v390
  %518 = vmatpush1.msra.mxu0 %v389
  %519 = vmatprep.subr.mxu0 %v392
  %520 = vmatpush1.msra.mxu0 %v391
  %521 = vmatprep.subr.mxu0 %v394
  %522 = vmatpush1.msra.mxu0 %v393
  %523 = vmatprep.subr.mxu0 %v396
  %524 = vmatpush1.msra.mxu0 %v395
  %525 = vmatprep.subr.mxu0 %v398
  %526 = vmatpush1.msra.mxu0 %v397
  %527 = vmatprep.subr.mxu0 %v400
  %528 = vmatpush1.msra.mxu0 %v399
  %529 = vmatprep.subr.mxu0 %v402
  %530 = vmatpush1.msra.mxu0 %v401
  %531 = vmatprep.subr.mxu0 %v404
  %532 = vmatpush1.msra.mxu0 %v403
  %533 = vmatprep.subr.mxu0 %v406
  %534 = vmatpush1.msra.mxu0 %v405
  %535 = vmatprep.subr.mxu0 %v408
  %536 = vmatpush1.msra.mxu0 %v407
  %537 = vmatprep.subr.mxu0 %v410
  %538 = vmatpush1.msra.mxu0 %v409
  %539 = vmatprep.subr.mxu0 %v412
  %540 = vmatpush1.msra.mxu0 %v411
  %541 = vmatprep.subr.mxu0 %v414
  %542 = vmatpush1.msra.mxu0 %v413
  %543 = vmatprep.subr.mxu0 %v416
  %544 = vmatpush1.msra.mxu0 %v415
  %545 = vmatprep.subr.mxu0 %v418
  %546 = vmatpush1.msra.mxu0 %v417
  %547 = vmatprep.subr.mxu0 %v420
  %548 = vmatpush1.msra.mxu0 %v419
  %549 = vmatprep.subr.mxu0 %v422
  %550 = vmatpush1.msra.mxu0 %v421
  %551 = vmatprep.subr.mxu0 %v424
  %552 = vmatpush1.msra.mxu0 %v423
  %553 = vmatprep.subr.mxu0 %v426
  %554 = vmatpush1.msra.mxu0 %v425
  %555 = vmatprep.subr.mxu0 %v428
  %556 = vmatpush1.msra.mxu0 %v427
  %557 = vmatprep.subr.mxu0 %v430
  %558 = vmatpush1.msra.mxu0 %v429
  %559 = vmatprep.subr.mxu0 %v432
  %560 = vmatpush1.msra.mxu0 %v431
  %561 = vmatprep.subr.mxu0 %v434
  %562 = vmatpush1.msra.mxu0 %v433
  %563 = vmatprep.subr.mxu0 %v436
  %564 = vmatpush1.msra.mxu0 %v435
  %565 = vmatprep.subr.mxu0 %v438
  %566 = vmatpush1.msra.mxu0 %v437
  %567 = vmatprep.subr.mxu0 %v440
  %568 = vmatpush1.msra.mxu0 %v439
  %569 = vmatprep.subr.mxu0 %v442
  %570 = vmatpush1.msra.mxu0 %v441
  %571 = vmatprep.subr.mxu0 %v444
  %572 = vmatpush1.msra.mxu0 %v443
  %573 = vmatprep.subr.mxu0 %v446
  %574 = vmatpush1.msra.mxu0 %v445
  %575 = vmatprep.mubr.f32.mxu0 %v380
  %576 = vmatmul.mubr.f32.gmra.mrb[0].mxu0 %v379
  %v577 = vpop.f32.mrb[0].mxu0
  %v578 = vadd.f32 0.0, %v577
  %v579 = vpop.f32.mrb[0].mxu0
  %v580 = vadd.f32 0.0, %v579
  %581 = vdwg.mxu0
  %582 = vmatprep.subr.mxu0 %v448
  %583 = vmatpush1.msra.mxu0 %v447
  %584 = vmatprep.subr.mxu0 %v450
  %585 = vmatpush1.msra.mxu0 %v449
  %586 = vmatprep.subr.mxu0 %v452
  %587 = vmatpush1.msra.mxu0 %v451
  %588 = vmatprep.subr.mxu0 %v454
  %589 = vmatpush1.msra.mxu0 %v453
  %590 = vmatprep.subr.mxu0 %v456
  %591 = vmatpush1.msra.mxu0 %v455
  %592 = vmatprep.subr.mxu0 %v458
  %593 = vmatpush1.msra.mxu0 %v457
  %594 = vmatprep.subr.mxu0 %v460
  %595 = vmatpush1.msra.mxu0 %v459
  %596 = vmatprep.subr.mxu0 %v462
  %597 = vmatpush1.msra.mxu0 %v461
  %598 = vmatprep.subr.mxu0 %v464
  %599 = vmatpush1.msra.mxu0 %v463
  %600 = vmatprep.subr.mxu0 %v466
  %601 = vmatpush1.msra.mxu0 %v465
  %602 = vmatprep.subr.mxu0 %v468
  %603 = vmatpush1.msra.mxu0 %v467
  %604 = vmatprep.subr.mxu0 %v470
  %605 = vmatpush1.msra.mxu0 %v469
  %606 = vmatprep.subr.mxu0 %v472
  %607 = vmatpush1.msra.mxu0 %v471
  %608 = vmatprep.subr.mxu0 %v474
  %609 = vmatpush1.msra.mxu0 %v473
  %610 = vmatprep.subr.mxu0 %v476
  %611 = vmatpush1.msra.mxu0 %v475
  %612 = vmatprep.subr.mxu0 %v478
  %613 = vmatpush1.msra.mxu0 %v477
  %614 = vmatprep.subr.mxu0 %v480
  %615 = vmatpush1.msra.mxu0 %v479
  %616 = vmatprep.subr.mxu0 %v482
  %617 = vmatpush1.msra.mxu0 %v481
  %618 = vmatprep.subr.mxu0 %v484
  %619 = vmatpush1.msra.mxu0 %v483
  %620 = vmatprep.subr.mxu0 %v486
  %621 = vmatpush1.msra.mxu0 %v485
  %622 = vmatprep.subr.mxu0 %v488
  %623 = vmatpush1.msra.mxu0 %v487
  %624 = vmatprep.subr.mxu0 %v490
  %625 = vmatpush1.msra.mxu0 %v489
  %626 = vmatprep.subr.mxu0 %v492
  %627 = vmatpush1.msra.mxu0 %v491
  %628 = vmatprep.subr.mxu0 %v494
  %629 = vmatpush1.msra.mxu0 %v493
  %630 = vmatprep.subr.mxu0 %v496
  %631 = vmatpush1.msra.mxu0 %v495
  %632 = vmatprep.subr.mxu0 %v498
  %633 = vmatpush1.msra.mxu0 %v497
  %634 = vmatprep.subr.mxu0 %v500
  %635 = vmatpush1.msra.mxu0 %v499
  %636 = vmatprep.subr.mxu0 %v502
  %637 = vmatpush1.msra.mxu0 %v501
  %638 = vmatprep.subr.mxu0 %v504
  %639 = vmatpush1.msra.mxu0 %v503
  %640 = vmatprep.subr.mxu0 %v506
  %641 = vmatpush1.msra.mxu0 %v505
  %642 = vmatprep.subr.mxu0 %v508
  %643 = vmatpush1.msra.mxu0 %v507
  %644 = vmatprep.subr.mxu0 %v510
  %645 = vmatpush1.msra.mxu0 %v509
  %646 = vmatprep.mubr.f32.mxu0 %v382
  %647 = vmatmul.mubr.f32.gmra.mrb[0].mxu0 %v381
  %v648 = vpop.f32.mrb[0].mxu0
  %v649 = vadd.f32 %v578, %v648
  %v650 = vpop.f32.mrb[0].mxu0
  %v651 = vadd.f32 %v580, %v650
  %652 = vdwg.mxu0
  %v653 = vsub.f32 0.0, %v649
  %v654 = vsub.f32 0.0, %v651
  %v655 = vmul.f32 %v653, 1.442695
  %v656 = vpow.pop %v655
  %v657 = vmul.f32 %v654, 1.442695
  %v658 = vpow.pop %v657
  %v659 = vadd.f32 %v656, 1.0
  %v660 = vadd.f32 %v658, 1.0
  %v661 = vrcp.pop %v659
  %v662 = vrcp.pop %v660
  %v665 = vcombine.low %v661, %v662
  %v667 = vunpack.c.l.s4 1983009808
  %v668 = vunpack.c.0.s8 %v667
  %v669 = vlaneseq
  %v670 = vshrl.u32 %v669, 7
  %v671 = vsub.s32 %v668, %v670
  %v672 = vrot.slane %v665, %v671
  %674 = vst [vmem:[%s13] sm:$0xf] %v672
  %v675 = vlaneseq
  %v676 = vshrl.u32 %v675, 7
  %v677 = vsub.s32 0, %v676
  %v678 = vrot.slane %v661, %v677
  %v679 = vlaneseq
  %v680 = vshrl.u32 %v679, 7
  %v681 = vsub.s32 0, %v680
  %v682 = vrot.slane %v662, %v681
  %v683 = vmul.f32 %v165, %v678
  %v684 = vmul.f32 %v166, %v682
  %v685 = vmul.f32 %v167, %v678
  %v686 = vmul.f32 %v168, %v682
  %v687 = vmul.f32 %v169, %v678
  %v688 = vmul.f32 %v170, %v682
  %v689 = vmul.f32 %v171, %v678
  %v690 = vmul.f32 %v172, %v682
  %v691 = vlaneseq
  %v692 = vshrl.u32 %v691, 7
  %v693 = vsub.s32 1, %v692
  %v694 = vrot.slane %v661, %v693
  %v695 = vlaneseq
  %v696 = vshrl.u32 %v695, 7
  %v697 = vsub.s32 1, %v696
  %v698 = vrot.slane %v662, %v697
  %v699 = vmul.f32 %v320, %v694
  %v700 = vmul.f32 %v321, %v698
  %v701 = vmul.f32 %v322, %v694
  %v702 = vmul.f32 %v323, %v698
  %v703 = vmul.f32 %v324, %v694
  %v704 = vmul.f32 %v325, %v698
  %v705 = vmul.f32 %v326, %v694
  %v706 = vmul.f32 %v327, %v698
  %711 = vrot.lane.b32.xlu0 %v700, 17
  %v712 = vpop.permute.xlu0 %711
  %713 = vrot.lane.b32.xlu0 %v702, 17
  %v714 = vpop.permute.xlu0 %713
  %715 = vrot.lane.b32.xlu0 %v704, 17
  %v716 = vpop.permute.xlu0 %715
  %717 = vrot.lane.b32.xlu0 %v706, 17
  %v718 = vpop.permute.xlu0 %717
  %735 = vrot.lane.b32.xlu0 %v683, 17
  %v736 = vpop.permute.xlu0 %735
  %737 = vrot.lane.b32.xlu0 %v684, 17
  %v738 = vpop.permute.xlu0 %737
  %739 = vrot.lane.b32.xlu0 %v699, 17
  %v740 = vpop.permute.xlu0 %739
  %741 = vrot.lane.b32.xlu0 %v685, 17
  %v742 = vpop.permute.xlu0 %741
  %743 = vrot.lane.b32.xlu0 %v686, 17
  %v744 = vpop.permute.xlu0 %743
  %745 = vrot.lane.b32.xlu0 %v701, 17
  %v746 = vpop.permute.xlu0 %745
  %747 = vrot.lane.b32.xlu0 %v687, 17
  %v748 = vpop.permute.xlu0 %747
  %749 = vrot.lane.b32.xlu0 %v688, 17
  %v750 = vpop.permute.xlu0 %749
  %751 = vrot.lane.b32.xlu0 %v703, 17
  %v752 = vpop.permute.xlu0 %751
  %753 = vrot.lane.b32.xlu0 %v689, 17
  %v754 = vpop.permute.xlu0 %753
  %755 = vrot.lane.b32.xlu0 %v690, 17
  %v756 = vpop.permute.xlu0 %755
  %757 = vrot.lane.b32.xlu0 %v705, 17
  %v758 = vpop.permute.xlu0 %757
  %vm759 = vcmask 138240
  %v760 = vsel %vm759, %v736, %v738
  %v761 = vsel %vm759, %v738, %v740
  %v762 = vsel %vm759, %v740, %v712
  %v763 = vsel %vm759, %v742, %v744
  %v764 = vsel %vm759, %v744, %v746
  %v765 = vsel %vm759, %v746, %v714
  %v766 = vsel %vm759, %v748, %v750
  %v767 = vsel %vm759, %v750, %v752
  %v768 = vsel %vm759, %v752, %v716
  %v769 = vsel %vm759, %v754, %v756
  %v770 = vsel %vm759, %v756, %v758
  %v771 = vsel %vm759, %v758, %v718
  %v788 = vsel %vm759, %v712, %v736
  %v789 = vsel %vm759, %v714, %v742
  %v790 = vsel %vm759, %v716, %v748
  %v791 = vsel %vm759, %v718, %v754
  %v792 = vld [vmem:[%s10] ss:$8 sm:$0xf]
  %v794 = vlaneseq
  %v795 = vshrl.u32 %v794, 7
  %v796 = vsub.s32 0, %v795
  %v797 = vrot.slane %v792, %v796
  %v798 = vlaneseq
  %v799 = vshrl.u32 %v798, 7
  %v800 = vsub.s32 1, %v799
  %v801 = vrot.slane %v792, %v800
  %v802 = vlaneseq
  %v803 = vshrl.u32 %v802, 7
  %v804 = vsub.s32 2, %v803
  %v805 = vrot.slane %v792, %v804
  %v806 = vlaneseq
  %v807 = vshrl.u32 %v806, 7
  %v808 = vsub.s32 3, %v807
  %v809 = vrot.slane %v792, %v808
  %v814 = vmul.f32 %v788, %v797
  %v815 = vmul.f32 %v760, %v801
  %v816 = vmul.f32 %v761, %v805
  %v817 = vmul.f32 %v762, %v809
  %v818 = vmul.f32 %v789, %v797
  %v819 = vmul.f32 %v763, %v801
  %v820 = vmul.f32 %v764, %v805
  %v821 = vmul.f32 %v765, %v809
  %v822 = vmul.f32 %v790, %v797
  %v823 = vmul.f32 %v766, %v801
  %v824 = vmul.f32 %v767, %v805
  %v825 = vmul.f32 %v768, %v809
  %v826 = vmul.f32 %v791, %v797
  %v827 = vmul.f32 %v769, %v801
  %v828 = vmul.f32 %v770, %v805
  %v829 = vmul.f32 %v771, %v809
  %830 = vst [vmem:[#allocation2] sm:$0xff] %v814
  %831 = vst [vmem:[#allocation2 + $0x8] sm:$0xff] %v815
  %832 = vst [vmem:[#allocation2 + $0x10] sm:$0xff] %v816
  %833 = vst [vmem:[#allocation2 + $0x18] sm:$0xff] %v817
  %834 = vst [vmem:[#allocation2 + $0x20] sm:$0xff] %v818
  %835 = vst [vmem:[#allocation2 + $0x28] sm:$0xff] %v819
  %836 = vst [vmem:[#allocation2 + $0x30] sm:$0xff] %v820
  %837 = vst [vmem:[#allocation2 + $0x38] sm:$0xff] %v821
  %838 = vst [vmem:[#allocation2 + $0x40] sm:$0xff] %v822
  %839 = vst [vmem:[#allocation2 + $0x48] sm:$0xff] %v823
  %840 = vst [vmem:[#allocation2 + $0x50] sm:$0xff] %v824
  %841 = vst [vmem:[#allocation2 + $0x58] sm:$0xff] %v825
  %842 = vst [vmem:[#allocation2 + $0x60] sm:$0xff] %v826
  %843 = vst [vmem:[#allocation2 + $0x68] sm:$0xff] %v827
  %844 = vst [vmem:[#allocation2 + $0x70] sm:$0xff] %v828
  %845 = vst [vmem:[#allocation2 + $0x78] sm:$0xff] %v829
  %846 = vrot.lane.b32.xlu0 %v700, 16
  %v847 = vpop.permute.xlu0 %846
  %848 = vrot.lane.b32.xlu0 %v702, 16
  %v849 = vpop.permute.xlu0 %848
  %850 = vrot.lane.b32.xlu0 %v704, 16
  %v851 = vpop.permute.xlu0 %850
  %852 = vrot.lane.b32.xlu0 %v706, 16
  %v853 = vpop.permute.xlu0 %852
  %858 = vrot.lane.b32.xlu0 %v683, 16
  %v859 = vpop.permute.xlu0 %858
  %860 = vrot.lane.b32.xlu0 %v684, 16
  %v861 = vpop.permute.xlu0 %860
  %862 = vrot.lane.b32.xlu0 %v699, 16
  %v863 = vpop.permute.xlu0 %862
  %864 = vrot.lane.b32.xlu0 %v685, 16
  %v865 = vpop.permute.xlu0 %864
  %866 = vrot.lane.b32.xlu0 %v686, 16
  %v867 = vpop.permute.xlu0 %866
  %868 = vrot.lane.b32.xlu0 %v701, 16
  %v869 = vpop.permute.xlu0 %868
  %870 = vrot.lane.b32.xlu0 %v687, 16
  %v871 = vpop.permute.xlu0 %870
  %872 = vrot.lane.b32.xlu0 %v688, 16
  %v873 = vpop.permute.xlu0 %872
  %874 = vrot.lane.b32.xlu0 %v703, 16
  %v875 = vpop.permute.xlu0 %874
  %876 = vrot.lane.b32.xlu0 %v689, 16
  %v877 = vpop.permute.xlu0 %876
  %878 = vrot.lane.b32.xlu0 %v690, 16
  %v879 = vpop.permute.xlu0 %878
  %880 = vrot.lane.b32.xlu0 %v705, 16
  %v881 = vpop.permute.xlu0 %880
  %vm882 = vcmask 130048
  %v883 = vsel %vm882, %v859, %v861
  %v884 = vsel %vm882, %v861, %v863
  %v885 = vsel %vm882, %v863, %v847
  %v886 = vsel %vm882, %v865, %v867
  %v887 = vsel %vm882, %v867, %v869
  %v888 = vsel %vm882, %v869, %v849
  %v889 = vsel %vm882, %v871, %v873
  %v890 = vsel %vm882, %v873, %v875
  %v891 = vsel %vm882, %v875, %v851
  %v892 = vsel %vm882, %v877, %v879
  %v893 = vsel %vm882, %v879, %v881
  %v894 = vsel %vm882, %v881, %v853
  %v911 = vsel %vm882, %v847, %v859
  %v912 = vsel %vm882, %v849, %v865
  %v913 = vsel %vm882, %v851, %v871
  %v914 = vsel %vm882, %v853, %v877
  %s915 = scalar_lea.vmem %s10, 1
  %v916 = vld [vmem:[%s915] ss:$8 sm:$0xf]
  %v918 = vlaneseq
  %v919 = vshrl.u32 %v918, 7
  %v920 = vsub.s32 0, %v919
  %v921 = vrot.slane %v916, %v920
  %v922 = vlaneseq
  %v923 = vshrl.u32 %v922, 7
  %v924 = vsub.s32 1, %v923
  %v925 = vrot.slane %v916, %v924
  %v926 = vlaneseq
  %v927 = vshrl.u32 %v926, 7
  %v928 = vsub.s32 2, %v927
  %v929 = vrot.slane %v916, %v928
  %v930 = vlaneseq
  %v931 = vshrl.u32 %v930, 7
  %v932 = vsub.s32 3, %v931
  %v933 = vrot.slane %v916, %v932
  %v938 = vmul.f32 %v911, %v921
  %v939 = vmul.f32 %v883, %v925
  %v940 = vmul.f32 %v884, %v929
  %v941 = vmul.f32 %v885, %v933
  %v942 = vmul.f32 %v912, %v921
  %v943 = vmul.f32 %v886, %v925
  %v944 = vmul.f32 %v887, %v929
  %v945 = vmul.f32 %v888, %v933
  %v946 = vmul.f32 %v913, %v921
  %v947 = vmul.f32 %v889, %v925
  %v948 = vmul.f32 %v890, %v929
  %v949 = vmul.f32 %v891, %v933
  %v950 = vmul.f32 %v914, %v921
  %v951 = vmul.f32 %v892, %v925
  %v952 = vmul.f32 %v893, %v929
  %v953 = vmul.f32 %v894, %v933
  %954 = vst [vmem:[#allocation2 + $0x80] sm:$0xff] %v938
  %955 = vst [vmem:[#allocation2 + $0x88] sm:$0xff] %v939
  %956 = vst [vmem:[#allocation2 + $0x90] sm:$0xff] %v940
  %957 = vst [vmem:[#allocation2 + $0x98] sm:$0xff] %v941
  %958 = vst [vmem:[#allocation2 + $0xa0] sm:$0xff] %v942
  %959 = vst [vmem:[#allocation2 + $0xa8] sm:$0xff] %v943
  %960 = vst [vmem:[#allocation2 + $0xb0] sm:$0xff] %v944
  %961 = vst [vmem:[#allocation2 + $0xb8] sm:$0xff] %v945
  %962 = vst [vmem:[#allocation2 + $0xc0] sm:$0xff] %v946
  %963 = vst [vmem:[#allocation2 + $0xc8] sm:$0xff] %v947
  %964 = vst [vmem:[#allocation2 + $0xd0] sm:$0xff] %v948
  %965 = vst [vmem:[#allocation2 + $0xd8] sm:$0xff] %v949
  %966 = vst [vmem:[#allocation2 + $0xe0] sm:$0xff] %v950
  %967 = vst [vmem:[#allocation2 + $0xe8] sm:$0xff] %v951
  %968 = vst [vmem:[#allocation2 + $0xf0] sm:$0xff] %v952
  %969 = vst [vmem:[#allocation2 + $0xf8] sm:$0xff] %v953
  %970 = vrot.lane.b32.xlu0 %v700, 15
  %v971 = vpop.permute.xlu0 %970
  %972 = vrot.lane.b32.xlu0 %v702, 15
  %v973 = vpop.permute.xlu0 %972
  %974 = vrot.lane.b32.xlu0 %v704, 15
  %v975 = vpop.permute.xlu0 %974
  %976 = vrot.lane.b32.xlu0 %v706, 15
  %v977 = vpop.permute.xlu0 %976
  %982 = vrot.lane.b32.xlu0 %v683, 15
  %v983 = vpop.permute.xlu0 %982
  %984 = vrot.lane.b32.xlu0 %v684, 15
  %v985 = vpop.permute.xlu0 %984
  %986 = vrot.lane.b32.xlu0 %v699, 15
  %v987 = vpop.permute.xlu0 %986
  %988 = vrot.lane.b32.xlu0 %v685, 15
  %v989 = vpop.permute.xlu0 %988
  %990 = vrot.lane.b32.xlu0 %v686, 15
  %v991 = vpop.permute.xlu0 %990
  %992 = vrot.lane.b32.xlu0 %v701, 15
  %v993 = vpop.permute.xlu0 %992
  %994 = vrot.lane.b32.xlu0 %v687, 15
  %v995 = vpop.permute.xlu0 %994
  %996 = vrot.lane.b32.xlu0 %v688, 15
  %v997 = vpop.permute.xlu0 %996
  %998 = vrot.lane.b32.xlu0 %v703, 15
  %v999 = vpop.permute.xlu0 %998
  %1000 = vrot.lane.b32.xlu0 %v689, 15
  %v1001 = vpop.permute.xlu0 %1000
  %1002 = vrot.lane.b32.xlu0 %v690, 15
  %v1003 = vpop.permute.xlu0 %1002
  %1004 = vrot.lane.b32.xlu0 %v705, 15
  %v1005 = vpop.permute.xlu0 %1004
  %vm1006 = vcmask 121856
  %v1007 = vsel %vm1006, %v983, %v985
  %v1008 = vsel %vm1006, %v985, %v987
  %v1009 = vsel %vm1006, %v987, %v971
  %v1010 = vsel %vm1006, %v989, %v991
  %v1011 = vsel %vm1006, %v991, %v993
  %v1012 = vsel %vm1006, %v993, %v973
  %v1013 = vsel %vm1006, %v995, %v997
  %v1014 = vsel %vm1006, %v997, %v999
  %v1015 = vsel %vm1006, %v999, %v975
  %v1016 = vsel %vm1006, %v1001, %v1003
  %v1017 = vsel %vm1006, %v1003, %v1005
  %v1018 = vsel %vm1006, %v1005, %v977
  %v1035 = vsel %vm1006, %v971, %v983
  %v1036 = vsel %vm1006, %v973, %v989
  %v1037 = vsel %vm1006, %v975, %v995
  %v1038 = vsel %vm1006, %v977, %v1001
  %s1039 = scalar_lea.vmem %s10, 2
  %v1040 = vld [vmem:[%s1039] ss:$8 sm:$0xf]
  %v1042 = vlaneseq
  %v1043 = vshrl.u32 %v1042, 7
  %v1044 = vsub.s32 0, %v1043
  %v1045 = vrot.slane %v1040, %v1044
  %v1046 = vlaneseq
  %v1047 = vshrl.u32 %v1046, 7
  %v1048 = vsub.s32 1, %v1047
  %v1049 = vrot.slane %v1040, %v1048
  %v1050 = vlaneseq
  %v1051 = vshrl.u32 %v1050, 7
  %v1052 = vsub.s32 2, %v1051
  %v1053 = vrot.slane %v1040, %v1052
  %v1054 = vlaneseq
  %v1055 = vshrl.u32 %v1054, 7
  %v1056 = vsub.s32 3, %v1055
  %v1057 = vrot.slane %v1040, %v1056
  %v1062 = vmul.f32 %v1035, %v1045
  %v1063 = vmul.f32 %v1007, %v1049
  %v1064 = vmul.f32 %v1008, %v1053
  %v1065 = vmul.f32 %v1009, %v1057
  %v1066 = vmul.f32 %v1036, %v1045
  %v1067 = vmul.f32 %v1010, %v1049
  %v1068 = vmul.f32 %v1011, %v1053
  %v1069 = vmul.f32 %v1012, %v1057
  %v1070 = vmul.f32 %v1037, %v1045
  %v1071 = vmul.f32 %v1013, %v1049
  %v1072 = vmul.f32 %v1014, %v1053
  %v1073 = vmul.f32 %v1015, %v1057
  %v1074 = vmul.f32 %v1038, %v1045
  %v1075 = vmul.f32 %v1016, %v1049
  %v1076 = vmul.f32 %v1017, %v1053
  %v1077 = vmul.f32 %v1018, %v1057
  %1078 = vst [vmem:[#allocation2 + $0x100] sm:$0xff] %v1062
  %1079 = vst [vmem:[#allocation2 + $0x108] sm:$0xff] %v1063
  %1080 = vst [vmem:[#allocation2 + $0x110] sm:$0xff] %v1064
  %1081 = vst [vmem:[#allocation2 + $0x118] sm:$0xff] %v1065
  %1082 = vst [vmem:[#allocation2 + $0x120] sm:$0xff] %v1066
  %1083 = vst [vmem:[#allocation2 + $0x128] sm:$0xff] %v1067
  %1084 = vst [vmem:[#allocation2 + $0x130] sm:$0xff] %v1068
  %1085 = vst [vmem:[#allocation2 + $0x138] sm:$0xff] %v1069
  %1086 = vst [vmem:[#allocation2 + $0x140] sm:$0xff] %v1070
  %1087 = vst [vmem:[#allocation2 + $0x148] sm:$0xff] %v1071
  %1088 = vst [vmem:[#allocation2 + $0x150] sm:$0xff] %v1072
  %1089 = vst [vmem:[#allocation2 + $0x158] sm:$0xff] %v1073
  %1090 = vst [vmem:[#allocation2 + $0x160] sm:$0xff] %v1074
  %1091 = vst [vmem:[#allocation2 + $0x168] sm:$0xff] %v1075
  %1092 = vst [vmem:[#allocation2 + $0x170] sm:$0xff] %v1076
  %1093 = vst [vmem:[#allocation2 + $0x178] sm:$0xff] %v1077
  %1094 = vrot.lane.b32.xlu0 %v700, 1
  %v1095 = vpop.permute.xlu0 %1094
  %1096 = vrot.lane.b32.xlu0 %v702, 1
  %v1097 = vpop.permute.xlu0 %1096
  %1098 = vrot.lane.b32.xlu0 %v704, 1
  %v1099 = vpop.permute.xlu0 %1098
  %1100 = vrot.lane.b32.xlu0 %v706, 1
  %v1101 = vpop.permute.xlu0 %1100
  %1106 = vrot.lane.b32.xlu0 %v683, 1
  %v1107 = vpop.permute.xlu0 %1106
  %1108 = vrot.lane.b32.xlu0 %v684, 1
  %v1109 = vpop.permute.xlu0 %1108
  %1110 = vrot.lane.b32.xlu0 %v699, 1
  %v1111 = vpop.permute.xlu0 %1110
  %1112 = vrot.lane.b32.xlu0 %v685, 1
  %v1113 = vpop.permute.xlu0 %1112
  %1114 = vrot.lane.b32.xlu0 %v686, 1
  %v1115 = vpop.permute.xlu0 %1114
  %1116 = vrot.lane.b32.xlu0 %v701, 1
  %v1117 = vpop.permute.xlu0 %1116
  %1118 = vrot.lane.b32.xlu0 %v687, 1
  %v1119 = vpop.permute.xlu0 %1118
  %1120 = vrot.lane.b32.xlu0 %v688, 1
  %v1121 = vpop.permute.xlu0 %1120
  %1122 = vrot.lane.b32.xlu0 %v703, 1
  %v1123 = vpop.permute.xlu0 %1122
  %1124 = vrot.lane.b32.xlu0 %v689, 1
  %v1125 = vpop.permute.xlu0 %1124
  %1126 = vrot.lane.b32.xlu0 %v690, 1
  %v1127 = vpop.permute.xlu0 %1126
  %1128 = vrot.lane.b32.xlu0 %v705, 1
  %v1129 = vpop.permute.xlu0 %1128
  %vm1130 = vcmask 7168
  %v1131 = vsel %vm1130, %v1107, %v1109
  %v1132 = vsel %vm1130, %v1109, %v1111
  %v1133 = vsel %vm1130, %v1111, %v1095
  %v1134 = vsel %vm1130, %v1113, %v1115
  %v1135 = vsel %vm1130, %v1115, %v1117
  %v1136 = vsel %vm1130, %v1117, %v1097
  %v1137 = vsel %vm1130, %v1119, %v1121
  %v1138 = vsel %vm1130, %v1121, %v1123
  %v1139 = vsel %vm1130, %v1123, %v1099
  %v1140 = vsel %vm1130, %v1125, %v1127
  %v1141 = vsel %vm1130, %v1127, %v1129
  %v1142 = vsel %vm1130, %v1129, %v1101
  %v1159 = vsel %vm1130, %v1095, %v1107
  %v1160 = vsel %vm1130, %v1097, %v1113
  %v1161 = vsel %vm1130, %v1099, %v1119
  %v1162 = vsel %vm1130, %v1101, %v1125
  %s1163 = scalar_lea.vmem %s10, 3
  %v1164 = vld [vmem:[%s1163] ss:$8 sm:$0xf]
  %v1166 = vlaneseq
  %v1167 = vshrl.u32 %v1166, 7
  %v1168 = vsub.s32 0, %v1167
  %v1169 = vrot.slane %v1164, %v1168
  %v1170 = vlaneseq
  %v1171 = vshrl.u32 %v1170, 7
  %v1172 = vsub.s32 1, %v1171
  %v1173 = vrot.slane %v1164, %v1172
  %v1174 = vlaneseq
  %v1175 = vshrl.u32 %v1174, 7
  %v1176 = vsub.s32 2, %v1175
  %v1177 = vrot.slane %v1164, %v1176
  %v1178 = vlaneseq
  %v1179 = vshrl.u32 %v1178, 7
  %v1180 = vsub.s32 3, %v1179
  %v1181 = vrot.slane %v1164, %v1180
  %v1186 = vmul.f32 %v1159, %v1169
  %v1187 = vmul.f32 %v1131, %v1173
  %v1188 = vmul.f32 %v1132, %v1177
  %v1189 = vmul.f32 %v1133, %v1181
  %v1190 = vmul.f32 %v1160, %v1169
  %v1191 = vmul.f32 %v1134, %v1173
  %v1192 = vmul.f32 %v1135, %v1177
  %v1193 = vmul.f32 %v1136, %v1181
  %v1194 = vmul.f32 %v1161, %v1169
  %v1195 = vmul.f32 %v1137, %v1173
  %v1196 = vmul.f32 %v1138, %v1177
  %v1197 = vmul.f32 %v1139, %v1181
  %v1198 = vmul.f32 %v1162, %v1169
  %v1199 = vmul.f32 %v1140, %v1173
  %v1200 = vmul.f32 %v1141, %v1177
  %v1201 = vmul.f32 %v1142, %v1181
  %1202 = vst [vmem:[#allocation2 + $0x180] sm:$0xff] %v1186
  %1203 = vst [vmem:[#allocation2 + $0x188] sm:$0xff] %v1187
  %1204 = vst [vmem:[#allocation2 + $0x190] sm:$0xff] %v1188
  %1205 = vst [vmem:[#allocation2 + $0x198] sm:$0xff] %v1189
  %1206 = vst [vmem:[#allocation2 + $0x1a0] sm:$0xff] %v1190
  %1207 = vst [vmem:[#allocation2 + $0x1a8] sm:$0xff] %v1191
  %1208 = vst [vmem:[#allocation2 + $0x1b0] sm:$0xff] %v1192
  %1209 = vst [vmem:[#allocation2 + $0x1b8] sm:$0xff] %v1193
  %1210 = vst [vmem:[#allocation2 + $0x1c0] sm:$0xff] %v1194
  %1211 = vst [vmem:[#allocation2 + $0x1c8] sm:$0xff] %v1195
  %1212 = vst [vmem:[#allocation2 + $0x1d0] sm:$0xff] %v1196
  %1213 = vst [vmem:[#allocation2 + $0x1d8] sm:$0xff] %v1197
  %1214 = vst [vmem:[#allocation2 + $0x1e0] sm:$0xff] %v1198
  %1215 = vst [vmem:[#allocation2 + $0x1e8] sm:$0xff] %v1199
  %1216 = vst [vmem:[#allocation2 + $0x1f0] sm:$0xff] %v1200
  %1217 = vst [vmem:[#allocation2 + $0x1f8] sm:$0xff] %v1201
  %1218 = vst [vmem:[#allocation2 + $0x200] sm:$0xff] %v683
  %1219 = vst [vmem:[#allocation2 + $0x208] sm:$0xff] %v684
  %1220 = vst [vmem:[#allocation2 + $0x210] sm:$0xff] %v699
  %1221 = vst [vmem:[#allocation2 + $0x218] sm:$0xff] %v700
  %1222 = vst [vmem:[#allocation2 + $0x220] sm:$0xff] %v685
  %1223 = vst [vmem:[#allocation2 + $0x228] sm:$0xff] %v686
  %1224 = vst [vmem:[#allocation2 + $0x230] sm:$0xff] %v701
  %1225 = vst [vmem:[#allocation2 + $0x238] sm:$0xff] %v702
  %1226 = vst [vmem:[#allocation2 + $0x240] sm:$0xff] %v687
  %1227 = vst [vmem:[#allocation2 + $0x248] sm:$0xff] %v688
  %1228 = vst [vmem:[#allocation2 + $0x250] sm:$0xff] %v703
  %1229 = vst [vmem:[#allocation2 + $0x258] sm:$0xff] %v704
  %1230 = vst [vmem:[#allocation2 + $0x260] sm:$0xff] %v689
  %1231 = vst [vmem:[#allocation2 + $0x268] sm:$0xff] %v690
  %1232 = vst [vmem:[#allocation2 + $0x270] sm:$0xff] %v705
  %1233 = vst [vmem:[#allocation2 + $0x278] sm:$0xff] %v706
  %1234 = vrot.lane.b32.xlu0 %v683, 127
  %v1235 = vpop.permute.xlu0 %1234
  %1236 = vrot.lane.b32.xlu0 %v684, 127
  %v1237 = vpop.permute.xlu0 %1236
  %1238 = vrot.lane.b32.xlu0 %v699, 127
  %v1239 = vpop.permute.xlu0 %1238
  %1240 = vrot.lane.b32.xlu0 %v700, 127
  %v1241 = vpop.permute.xlu0 %1240
  %1242 = vrot.lane.b32.xlu0 %v685, 127
  %v1243 = vpop.permute.xlu0 %1242
  %1244 = vrot.lane.b32.xlu0 %v686, 127
  %v1245 = vpop.permute.xlu0 %1244
  %1246 = vrot.lane.b32.xlu0 %v701, 127
  %v1247 = vpop.permute.xlu0 %1246
  %1248 = vrot.lane.b32.xlu0 %v702, 127
  %v1249 = vpop.permute.xlu0 %1248
  %1250 = vrot.lane.b32.xlu0 %v687, 127
  %v1251 = vpop.permute.xlu0 %1250
  %1252 = vrot.lane.b32.xlu0 %v688, 127
  %v1253 = vpop.permute.xlu0 %1252
  %1254 = vrot.lane.b32.xlu0 %v703, 127
  %v1255 = vpop.permute.xlu0 %1254
  %1256 = vrot.lane.b32.xlu0 %v704, 127
  %v1257 = vpop.permute.xlu0 %1256
  %1258 = vrot.lane.b32.xlu0 %v689, 127
  %v1259 = vpop.permute.xlu0 %1258
  %1260 = vrot.lane.b32.xlu0 %v690, 127
  %v1261 = vpop.permute.xlu0 %1260
  %1262 = vrot.lane.b32.xlu0 %v705, 127
  %v1263 = vpop.permute.xlu0 %1262
  %1264 = vrot.lane.b32.xlu0 %v706, 127
  %v1265 = vpop.permute.xlu0 %1264
  %vm1266 = vcmask 1039360
  %v1267 = vsel %vm1266, %v1235, %v1237
  %v1268 = vsel %vm1266, %v1237, %v1239
  %v1269 = vsel %vm1266, %v1239, %v1241
  %v1270 = vsel %vm1266, %v1243, %v1245
  %v1271 = vsel %vm1266, %v1245, %v1247
  %v1272 = vsel %vm1266, %v1247, %v1249
  %v1273 = vsel %vm1266, %v1251, %v1253
  %v1274 = vsel %vm1266, %v1253, %v1255
  %v1275 = vsel %vm1266, %v1255, %v1257
  %v1276 = vsel %vm1266, %v1259, %v1261
  %v1277 = vsel %vm1266, %v1261, %v1263
  %v1278 = vsel %vm1266, %v1263, %v1265
  %v1299 = vsel %vm1266, %v1241, %v1235
  %v1300 = vsel %vm1266, %v1249, %v1243
  %v1301 = vsel %vm1266, %v1257, %v1251
  %v1302 = vsel %vm1266, %v1265, %v1259
  %s1303 = scalar_lea.vmem %s10, 5
  %v1304 = vld [vmem:[%s1303] ss:$8 sm:$0xf]
  %v1306 = vlaneseq
  %v1307 = vshrl.u32 %v1306, 7
  %v1308 = vsub.s32 0, %v1307
  %v1309 = vrot.slane %v1304, %v1308
  %v1310 = vlaneseq
  %v1311 = vshrl.u32 %v1310, 7
  %v1312 = vsub.s32 1, %v1311
  %v1313 = vrot.slane %v1304, %v1312
  %v1314 = vlaneseq
  %v1315 = vshrl.u32 %v1314, 7
  %v1316 = vsub.s32 2, %v1315
  %v1317 = vrot.slane %v1304, %v1316
  %v1318 = vlaneseq
  %v1319 = vshrl.u32 %v1318, 7
  %v1320 = vsub.s32 3, %v1319
  %v1321 = vrot.slane %v1304, %v1320
  %v1326 = vmul.f32 %v1267, %v1309
  %v1327 = vmul.f32 %v1268, %v1313
  %v1328 = vmul.f32 %v1269, %v1317
  %v1329 = vmul.f32 %v1299, %v1321
  %v1330 = vmul.f32 %v1270, %v1309
  %v1331 = vmul.f32 %v1271, %v1313
  %v1332 = vmul.f32 %v1272, %v1317
  %v1333 = vmul.f32 %v1300, %v1321
  %v1334 = vmul.f32 %v1273, %v1309
  %v1335 = vmul.f32 %v1274, %v1313
  %v1336 = vmul.f32 %v1275, %v1317
  %v1337 = vmul.f32 %v1301, %v1321
  %v1338 = vmul.f32 %v1276, %v1309
  %v1339 = vmul.f32 %v1277, %v1313
  %v1340 = vmul.f32 %v1278, %v1317
  %v1341 = vmul.f32 %v1302, %v1321
  %1342 = vst [vmem:[#allocation2 + $0x280] sm:$0xff] %v1326
  %1343 = vst [vmem:[#allocation2 + $0x288] sm:$0xff] %v1327
  %1344 = vst [vmem:[#allocation2 + $0x290] sm:$0xff] %v1328
  %1345 = vst [vmem:[#allocation2 + $0x298] sm:$0xff] %v1329
  %1346 = vst [vmem:[#allocation2 + $0x2a0] sm:$0xff] %v1330
  %1347 = vst [vmem:[#allocation2 + $0x2a8] sm:$0xff] %v1331
  %1348 = vst [vmem:[#allocation2 + $0x2b0] sm:$0xff] %v1332
  %1349 = vst [vmem:[#allocation2 + $0x2b8] sm:$0xff] %v1333
  %1350 = vst [vmem:[#allocation2 + $0x2c0] sm:$0xff] %v1334
  %1351 = vst [vmem:[#allocation2 + $0x2c8] sm:$0xff] %v1335
  %1352 = vst [vmem:[#allocation2 + $0x2d0] sm:$0xff] %v1336
  %1353 = vst [vmem:[#allocation2 + $0x2d8] sm:$0xff] %v1337
  %1354 = vst [vmem:[#allocation2 + $0x2e0] sm:$0xff] %v1338
  %1355 = vst [vmem:[#allocation2 + $0x2e8] sm:$0xff] %v1339
  %1356 = vst [vmem:[#allocation2 + $0x2f0] sm:$0xff] %v1340
  %1357 = vst [vmem:[#allocation2 + $0x2f8] sm:$0xff] %v1341
  %1358 = vrot.lane.b32.xlu0 %v683, 113
  %v1359 = vpop.permute.xlu0 %1358
  %1360 = vrot.lane.b32.xlu0 %v684, 113
  %v1361 = vpop.permute.xlu0 %1360
  %1362 = vrot.lane.b32.xlu0 %v699, 113
  %v1363 = vpop.permute.xlu0 %1362
  %1364 = vrot.lane.b32.xlu0 %v700, 113
  %v1365 = vpop.permute.xlu0 %1364
  %1366 = vrot.lane.b32.xlu0 %v685, 113
  %v1367 = vpop.permute.xlu0 %1366
  %1368 = vrot.lane.b32.xlu0 %v686, 113
  %v1369 = vpop.permute.xlu0 %1368
  %1370 = vrot.lane.b32.xlu0 %v701, 113
  %v1371 = vpop.permute.xlu0 %1370
  %1372 = vrot.lane.b32.xlu0 %v702, 113
  %v1373 = vpop.permute.xlu0 %1372
  %1374 = vrot.lane.b32.xlu0 %v687, 113
  %v1375 = vpop.permute.xlu0 %1374
  %1376 = vrot.lane.b32.xlu0 %v688, 113
  %v1377 = vpop.permute.xlu0 %1376
  %1378 = vrot.lane.b32.xlu0 %v703, 113
  %v1379 = vpop.permute.xlu0 %1378
  %1380 = vrot.lane.b32.xlu0 %v704, 113
  %v1381 = vpop.permute.xlu0 %1380
  %1382 = vrot.lane.b32.xlu0 %v689, 113
  %v1383 = vpop.permute.xlu0 %1382
  %1384 = vrot.lane.b32.xlu0 %v690, 113
  %v1385 = vpop.permute.xlu0 %1384
  %1386 = vrot.lane.b32.xlu0 %v705, 113
  %v1387 = vpop.permute.xlu0 %1386
  %1388 = vrot.lane.b32.xlu0 %v706, 113
  %v1389 = vpop.permute.xlu0 %1388
  %vm1390 = vcmask 924672
  %v1391 = vsel %vm1390, %v1359, %v1361
  %v1392 = vsel %vm1390, %v1361, %v1363
  %v1393 = vsel %vm1390, %v1363, %v1365
  %v1394 = vsel %vm1390, %v1367, %v1369
  %v1395 = vsel %vm1390, %v1369, %v1371
  %v1396 = vsel %vm1390, %v1371, %v1373
  %v1397 = vsel %vm1390, %v1375, %v1377
  %v1398 = vsel %vm1390, %v1377, %v1379
  %v1399 = vsel %vm1390, %v1379, %v1381
  %v1400 = vsel %vm1390, %v1383, %v1385
  %v1401 = vsel %vm1390, %v1385, %v1387
  %v1402 = vsel %vm1390, %v1387, %v1389
  %v1423 = vsel %vm1390, %v1365, %v1359
  %v1424 = vsel %vm1390, %v1373, %v1367
  %v1425 = vsel %vm1390, %v1381, %v1375
  %v1426 = vsel %vm1390, %v1389, %v1383
  %s1427 = scalar_lea.vmem %s10, 6
  %v1428 = vld [vmem:[%s1427] ss:$8 sm:$0xf]
  %v1430 = vlaneseq
  %v1431 = vshrl.u32 %v1430, 7
  %v1432 = vsub.s32 0, %v1431
  %v1433 = vrot.slane %v1428, %v1432
  %v1434 = vlaneseq
  %v1435 = vshrl.u32 %v1434, 7
  %v1436 = vsub.s32 1, %v1435
  %v1437 = vrot.slane %v1428, %v1436
  %v1438 = vlaneseq
  %v1439 = vshrl.u32 %v1438, 7
  %v1440 = vsub.s32 2, %v1439
  %v1441 = vrot.slane %v1428, %v1440
  %v1442 = vlaneseq
  %v1443 = vshrl.u32 %v1442, 7
  %v1444 = vsub.s32 3, %v1443
  %v1445 = vrot.slane %v1428, %v1444
  %v1450 = vmul.f32 %v1391, %v1433
  %v1451 = vmul.f32 %v1392, %v1437
  %v1452 = vmul.f32 %v1393, %v1441
  %v1453 = vmul.f32 %v1423, %v1445
  %v1454 = vmul.f32 %v1394, %v1433
  %v1455 = vmul.f32 %v1395, %v1437
  %v1456 = vmul.f32 %v1396, %v1441
  %v1457 = vmul.f32 %v1424, %v1445
  %v1458 = vmul.f32 %v1397, %v1433
  %v1459 = vmul.f32 %v1398, %v1437
  %v1460 = vmul.f32 %v1399, %v1441
  %v1461 = vmul.f32 %v1425, %v1445
  %v1462 = vmul.f32 %v1400, %v1433
  %v1463 = vmul.f32 %v1401, %v1437
  %v1464 = vmul.f32 %v1402, %v1441
  %v1465 = vmul.f32 %v1426, %v1445
  %1466 = vst [vmem:[#allocation2 + $0x300] sm:$0xff] %v1450
  %1467 = vst [vmem:[#allocation2 + $0x308] sm:$0xff] %v1451
  %1468 = vst [vmem:[#allocation2 + $0x310] sm:$0xff] %v1452
  %1469 = vst [vmem:[#allocation2 + $0x318] sm:$0xff] %v1453
  %1470 = vst [vmem:[#allocation2 + $0x320] sm:$0xff] %v1454
  %1471 = vst [vmem:[#allocation2 + $0x328] sm:$0xff] %v1455
  %1472 = vst [vmem:[#allocation2 + $0x330] sm:$0xff] %v1456
  %1473 = vst [vmem:[#allocation2 + $0x338] sm:$0xff] %v1457
  %1474 = vst [vmem:[#allocation2 + $0x340] sm:$0xff] %v1458
  %1475 = vst [vmem:[#allocation2 + $0x348] sm:$0xff] %v1459
  %1476 = vst [vmem:[#allocation2 + $0x350] sm:$0xff] %v1460
  %1477 = vst [vmem:[#allocation2 + $0x358] sm:$0xff] %v1461
  %1478 = vst [vmem:[#allocation2 + $0x360] sm:$0xff] %v1462
  %1479 = vst [vmem:[#allocation2 + $0x368] sm:$0xff] %v1463
  %1480 = vst [vmem:[#allocation2 + $0x370] sm:$0xff] %v1464
  %1481 = vst [vmem:[#allocation2 + $0x378] sm:$0xff] %v1465
  %1482 = vrot.lane.b32.xlu0 %v683, 112
  %v1483 = vpop.permute.xlu0 %1482
  %1484 = vrot.lane.b32.xlu0 %v684, 112
  %v1485 = vpop.permute.xlu0 %1484
  %1486 = vrot.lane.b32.xlu0 %v699, 112
  %v1487 = vpop.permute.xlu0 %1486
  %1488 = vrot.lane.b32.xlu0 %v700, 112
  %v1489 = vpop.permute.xlu0 %1488
  %1490 = vrot.lane.b32.xlu0 %v685, 112
  %v1491 = vpop.permute.xlu0 %1490
  %1492 = vrot.lane.b32.xlu0 %v686, 112
  %v1493 = vpop.permute.xlu0 %1492
  %1494 = vrot.lane.b32.xlu0 %v701, 112
  %v1495 = vpop.permute.xlu0 %1494
  %1496 = vrot.lane.b32.xlu0 %v702, 112
  %v1497 = vpop.permute.xlu0 %1496
  %1498 = vrot.lane.b32.xlu0 %v687, 112
  %v1499 = vpop.permute.xlu0 %1498
  %1500 = vrot.lane.b32.xlu0 %v688, 112
  %v1501 = vpop.permute.xlu0 %1500
  %1502 = vrot.lane.b32.xlu0 %v703, 112
  %v1503 = vpop.permute.xlu0 %1502
  %1504 = vrot.lane.b32.xlu0 %v704, 112
  %v1505 = vpop.permute.xlu0 %1504
  %1506 = vrot.lane.b32.xlu0 %v689, 112
  %v1507 = vpop.permute.xlu0 %1506
  %1508 = vrot.lane.b32.xlu0 %v690, 112
  %v1509 = vpop.permute.xlu0 %1508
  %1510 = vrot.lane.b32.xlu0 %v705, 112
  %v1511 = vpop.permute.xlu0 %1510
  %1512 = vrot.lane.b32.xlu0 %v706, 112
  %v1513 = vpop.permute.xlu0 %1512
  %vm1514 = vcmask 916480
  %v1515 = vsel %vm1514, %v1483, %v1485
  %v1516 = vsel %vm1514, %v1485, %v1487
  %v1517 = vsel %vm1514, %v1487, %v1489
  %v1518 = vsel %vm1514, %v1491, %v1493
  %v1519 = vsel %vm1514, %v1493, %v1495
  %v1520 = vsel %vm1514, %v1495, %v1497
  %v1521 = vsel %vm1514, %v1499, %v1501
  %v1522 = vsel %vm1514, %v1501, %v1503
  %v1523 = vsel %vm1514, %v1503, %v1505
  %v1524 = vsel %vm1514, %v1507, %v1509
  %v1525 = vsel %vm1514, %v1509, %v1511
  %v1526 = vsel %vm1514, %v1511, %v1513
  %v1547 = vsel %vm1514, %v1489, %v1483
  %v1548 = vsel %vm1514, %v1497, %v1491
  %v1549 = vsel %vm1514, %v1505, %v1499
  %v1550 = vsel %vm1514, %v1513, %v1507
  %s1551 = scalar_lea.vmem %s10, 7
  %v1552 = vld [vmem:[%s1551] ss:$8 sm:$0xf]
  %v1554 = vlaneseq
  %v1555 = vshrl.u32 %v1554, 7
  %v1556 = vsub.s32 0, %v1555
  %v1557 = vrot.slane %v1552, %v1556
  %v1558 = vlaneseq
  %v1559 = vshrl.u32 %v1558, 7
  %v1560 = vsub.s32 1, %v1559
  %v1561 = vrot.slane %v1552, %v1560
  %v1562 = vlaneseq
  %v1563 = vshrl.u32 %v1562, 7
  %v1564 = vsub.s32 2, %v1563
  %v1565 = vrot.slane %v1552, %v1564
  %v1566 = vlaneseq
  %v1567 = vshrl.u32 %v1566, 7
  %v1568 = vsub.s32 3, %v1567
  %v1569 = vrot.slane %v1552, %v1568
  %v1574 = vmul.f32 %v1515, %v1557
  %v1575 = vmul.f32 %v1516, %v1561
  %v1576 = vmul.f32 %v1517, %v1565
  %v1577 = vmul.f32 %v1547, %v1569
  %v1578 = vmul.f32 %v1518, %v1557
  %v1579 = vmul.f32 %v1519, %v1561
  %v1580 = vmul.f32 %v1520, %v1565
  %v1581 = vmul.f32 %v1548, %v1569
  %v1582 = vmul.f32 %v1521, %v1557
  %v1583 = vmul.f32 %v1522, %v1561
  %v1584 = vmul.f32 %v1523, %v1565
  %v1585 = vmul.f32 %v1549, %v1569
  %v1586 = vmul.f32 %v1524, %v1557
  %v1587 = vmul.f32 %v1525, %v1561
  %v1588 = vmul.f32 %v1526, %v1565
  %v1589 = vmul.f32 %v1550, %v1569
  %1590 = vst [vmem:[#allocation2 + $0x380] sm:$0xff] %v1574
  %1591 = vst [vmem:[#allocation2 + $0x388] sm:$0xff] %v1575
  %1592 = vst [vmem:[#allocation2 + $0x390] sm:$0xff] %v1576
  %1593 = vst [vmem:[#allocation2 + $0x398] sm:$0xff] %v1577
  %1594 = vst [vmem:[#allocation2 + $0x3a0] sm:$0xff] %v1578
  %1595 = vst [vmem:[#allocation2 + $0x3a8] sm:$0xff] %v1579
  %1596 = vst [vmem:[#allocation2 + $0x3b0] sm:$0xff] %v1580
  %1597 = vst [vmem:[#allocation2 + $0x3b8] sm:$0xff] %v1581
  %1598 = vst [vmem:[#allocation2 + $0x3c0] sm:$0xff] %v1582
  %1599 = vst [vmem:[#allocation2 + $0x3c8] sm:$0xff] %v1583
  %1600 = vst [vmem:[#allocation2 + $0x3d0] sm:$0xff] %v1584
  %1601 = vst [vmem:[#allocation2 + $0x3d8] sm:$0xff] %v1585
  %1602 = vst [vmem:[#allocation2 + $0x3e0] sm:$0xff] %v1586
  %1603 = vst [vmem:[#allocation2 + $0x3e8] sm:$0xff] %v1587
  %1604 = vst [vmem:[#allocation2 + $0x3f0] sm:$0xff] %v1588
  %1605 = vst [vmem:[#allocation2 + $0x3f8] sm:$0xff] %v1589
  %1606 = vrot.lane.b32.xlu0 %v683, 111
  %v1607 = vpop.permute.xlu0 %1606
  %1608 = vrot.lane.b32.xlu0 %v684, 111
  %v1609 = vpop.permute.xlu0 %1608
  %1610 = vrot.lane.b32.xlu0 %v699, 111
  %v1611 = vpop.permute.xlu0 %1610
  %1612 = vrot.lane.b32.xlu0 %v700, 111
  %v1613 = vpop.permute.xlu0 %1612
  %1614 = vrot.lane.b32.xlu0 %v685, 111
  %v1615 = vpop.permute.xlu0 %1614
  %1616 = vrot.lane.b32.xlu0 %v686, 111
  %v1617 = vpop.permute.xlu0 %1616
  %1618 = vrot.lane.b32.xlu0 %v701, 111
  %v1619 = vpop.permute.xlu0 %1618
  %1620 = vrot.lane.b32.xlu0 %v702, 111
  %v1621 = vpop.permute.xlu0 %1620
  %1622 = vrot.lane.b32.xlu0 %v687, 111
  %v1623 = vpop.permute.xlu0 %1622
  %1624 = vrot.lane.b32.xlu0 %v688, 111
  %v1625 = vpop.permute.xlu0 %1624
  %1626 = vrot.lane.b32.xlu0 %v703, 111
  %v1627 = vpop.permute.xlu0 %1626
  %1628 = vrot.lane.b32.xlu0 %v704, 111
  %v1629 = vpop.permute.xlu0 %1628
  %1630 = vrot.lane.b32.xlu0 %v689, 111
  %v1631 = vpop.permute.xlu0 %1630
  %1632 = vrot.lane.b32.xlu0 %v690, 111
  %v1633 = vpop.permute.xlu0 %1632
  %1634 = vrot.lane.b32.xlu0 %v705, 111
  %v1635 = vpop.permute.xlu0 %1634
  %1636 = vrot.lane.b32.xlu0 %v706, 111
  %v1637 = vpop.permute.xlu0 %1636
  %vm1638 = vcmask 908288
  %v1639 = vsel %vm1638, %v1607, %v1609
  %v1640 = vsel %vm1638, %v1609, %v1611
  %v1641 = vsel %vm1638, %v1611, %v1613
  %v1642 = vsel %vm1638, %v1615, %v1617
  %v1643 = vsel %vm1638, %v1617, %v1619
  %v1644 = vsel %vm1638, %v1619, %v1621
  %v1645 = vsel %vm1638, %v1623, %v1625
  %v1646 = vsel %vm1638, %v1625, %v1627
  %v1647 = vsel %vm1638, %v1627, %v1629
  %v1648 = vsel %vm1638, %v1631, %v1633
  %v1649 = vsel %vm1638, %v1633, %v1635
  %v1650 = vsel %vm1638, %v1635, %v1637
  %v1671 = vsel %vm1638, %v1613, %v1607
  %v1672 = vsel %vm1638, %v1621, %v1615
  %v1673 = vsel %vm1638, %v1629, %v1623
  %v1674 = vsel %vm1638, %v1637, %v1631
  %s1675 = scalar_lea.vmem %s10, 32
  %v1676 = vld [vmem:[%s1675] ss:$8 sm:$0xf]
  %v1678 = vlaneseq
  %v1679 = vshrl.u32 %v1678, 7
  %v1680 = vsub.s32 0, %v1679
  %v1681 = vrot.slane %v1676, %v1680
  %v1682 = vlaneseq
  %v1683 = vshrl.u32 %v1682, 7
  %v1684 = vsub.s32 1, %v1683
  %v1685 = vrot.slane %v1676, %v1684
  %v1686 = vlaneseq
  %v1687 = vshrl.u32 %v1686, 7
  %v1688 = vsub.s32 2, %v1687
  %v1689 = vrot.slane %v1676, %v1688
  %v1690 = vlaneseq
  %v1691 = vshrl.u32 %v1690, 7
  %v1692 = vsub.s32 3, %v1691
  %v1693 = vrot.slane %v1676, %v1692
  %v1698 = vmul.f32 %v1639, %v1681
  %v1699 = vmul.f32 %v1640, %v1685
  %v1700 = vmul.f32 %v1641, %v1689
  %v1701 = vmul.f32 %v1671, %v1693
  %v1702 = vmul.f32 %v1642, %v1681
  %v1703 = vmul.f32 %v1643, %v1685
  %v1704 = vmul.f32 %v1644, %v1689
  %v1705 = vmul.f32 %v1672, %v1693
  %v1706 = vmul.f32 %v1645, %v1681
  %v1707 = vmul.f32 %v1646, %v1685
  %v1708 = vmul.f32 %v1647, %v1689
  %v1709 = vmul.f32 %v1673, %v1693
  %v1710 = vmul.f32 %v1648, %v1681
  %v1711 = vmul.f32 %v1649, %v1685
  %v1712 = vmul.f32 %v1650, %v1689
  %v1713 = vmul.f32 %v1674, %v1693
  %1714 = vst [vmem:[#allocation2 + $0x400] sm:$0xff] %v1698
  %1715 = vst [vmem:[#allocation2 + $0x408] sm:$0xff] %v1699
  %1716 = vst [vmem:[#allocation2 + $0x410] sm:$0xff] %v1700
  %1717 = vst [vmem:[#allocation2 + $0x418] sm:$0xff] %v1701
  %1718 = vst [vmem:[#allocation2 + $0x420] sm:$0xff] %v1702
  %1719 = vst [vmem:[#allocation2 + $0x428] sm:$0xff] %v1703
  %1720 = vst [vmem:[#allocation2 + $0x430] sm:$0xff] %v1704
  %1721 = vst [vmem:[#allocation2 + $0x438] sm:$0xff] %v1705
  %1722 = vst [vmem:[#allocation2 + $0x440] sm:$0xff] %v1706
  %1723 = vst [vmem:[#allocation2 + $0x448] sm:$0xff] %v1707
  %1724 = vst [vmem:[#allocation2 + $0x450] sm:$0xff] %v1708
  %1725 = vst [vmem:[#allocation2 + $0x458] sm:$0xff] %v1709
  %1726 = vst [vmem:[#allocation2 + $0x460] sm:$0xff] %v1710
  %1727 = vst [vmem:[#allocation2 + $0x468] sm:$0xff] %v1711
  %1728 = vst [vmem:[#allocation2 + $0x470] sm:$0xff] %v1712
  %1729 = vst [vmem:[#allocation2 + $0x478] sm:$0xff] %v1713
  %v1730 = vld [vmem:[%s6] sm:$0xff]
  %v1731 = vld [vmem:[%s6 + $0x8] sm:$0xff]
  %v1732 = vld [vmem:[%s6 + $0x10] sm:$0xff]
  %v1733 = vld [vmem:[%s6 + $0x18] sm:$0xff]
  %v1734 = vld [vmem:[%s6 + $0x20] sm:$0xff]
  %v1735 = vld [vmem:[%s6 + $0x28] sm:$0xff]
  %v1736 = vld [vmem:[%s6 + $0x30] sm:$0xff]
  %v1737 = vld [vmem:[%s6 + $0x38] sm:$0xff]
  %v1738 = vld [vmem:[%s6 + $0x40] sm:$0xff]
  %v1739 = vld [vmem:[%s6 + $0x48] sm:$0xff]
  %v1740 = vld [vmem:[%s6 + $0x50] sm:$0xff]
  %v1741 = vld [vmem:[%s6 + $0x58] sm:$0xff]
  %v1742 = vld [vmem:[#allocation2] sm:$0xff]
  %v1743 = vld [vmem:[#allocation2 + $0x8] sm:$0xff]
  %v1744 = vld [vmem:[#allocation2 + $0x10] sm:$0xff]
  %v1745 = vld [vmem:[#allocation2 + $0x18] sm:$0xff]
  %v1746 = vld [vmem:[#allocation2 + $0x20] sm:$0xff]
  %v1747 = vld [vmem:[#allocation2 + $0x28] sm:$0xff]
  %v1748 = vld [vmem:[#allocation2 + $0x30] sm:$0xff]
  %v1749 = vld [vmem:[#allocation2 + $0x38] sm:$0xff]
  %v1750 = vld [vmem:[#allocation2 + $0x40] sm:$0xff]
  %v1751 = vld [vmem:[#allocation2 + $0x48] sm:$0xff]
  %v1752 = vld [vmem:[#allocation2 + $0x50] sm:$0xff]
  %v1753 = vld [vmem:[#allocation2 + $0x58] sm:$0xff]
  %v1754 = vld [vmem:[#allocation2 + $0x60] sm:$0xff]
  %v1755 = vld [vmem:[#allocation2 + $0x68] sm:$0xff]
  %v1756 = vld [vmem:[#allocation2 + $0x70] sm:$0xff]
  %v1757 = vld [vmem:[#allocation2 + $0x78] sm:$0xff]
  %v1758 = vld [vmem:[#allocation2 + $0x80] sm:$0xff]
  %v1759 = vld [vmem:[#allocation2 + $0x88] sm:$0xff]
  %v1760 = vld [vmem:[#allocation2 + $0x90] sm:$0xff]
  %v1761 = vld [vmem:[#allocation2 + $0x98] sm:$0xff]
  %v1762 = vld [vmem:[#allocation2 + $0xa0] sm:$0xff]
  %v1763 = vld [vmem:[#allocation2 + $0xa8] sm:$0xff]
  %v1764 = vld [vmem:[#allocation2 + $0xb0] sm:$0xff]
  %v1765 = vld [vmem:[#allocation2 + $0xb8] sm:$0xff]
  %v1766 = vld [vmem:[#allocation2 + $0xc0] sm:$0xff]
  %v1767 = vld [vmem:[#allocation2 + $0xc8] sm:$0xff]
  %v1768 = vld [vmem:[#allocation2 + $0xd0] sm:$0xff]
  %v1769 = vld [vmem:[#allocation2 + $0xd8] sm:$0xff]
  %v1770 = vld [vmem:[#allocation2 + $0xe0] sm:$0xff]
  %v1771 = vld [vmem:[#allocation2 + $0xe8] sm:$0xff]
  %v1772 = vld [vmem:[#allocation2 + $0xf0] sm:$0xff]
  %v1773 = vld [vmem:[#allocation2 + $0xf8] sm:$0xff]
  %v1774 = vld [vmem:[#allocation2 + $0x100] sm:$0xff]
  %v1775 = vld [vmem:[#allocation2 + $0x108] sm:$0xff]
  %v1776 = vld [vmem:[#allocation2 + $0x110] sm:$0xff]
  %v1777 = vld [vmem:[#allocation2 + $0x118] sm:$0xff]
  %v1778 = vld [vmem:[#allocation2 + $0x120] sm:$0xff]
  %v1779 = vld [vmem:[#allocation2 + $0x128] sm:$0xff]
  %v1780 = vld [vmem:[#allocation2 + $0x130] sm:$0xff]
  %v1781 = vld [vmem:[#allocation2 + $0x138] sm:$0xff]
  %v1782 = vld [vmem:[#allocation2 + $0x140] sm:$0xff]
  %v1783 = vld [vmem:[#allocation2 + $0x148] sm:$0xff]
  %v1784 = vld [vmem:[#allocation2 + $0x150] sm:$0xff]
  %v1785 = vld [vmem:[#allocation2 + $0x158] sm:$0xff]
  %v1786 = vld [vmem:[#allocation2 + $0x160] sm:$0xff]
  %v1787 = vld [vmem:[#allocation2 + $0x168] sm:$0xff]
  %v1788 = vld [vmem:[#allocation2 + $0x170] sm:$0xff]
  %v1789 = vld [vmem:[#allocation2 + $0x178] sm:$0xff]
  %v1790 = vld [vmem:[#allocation2 + $0x180] sm:$0xff]
  %v1791 = vld [vmem:[#allocation2 + $0x188] sm:$0xff]
  %v1792 = vld [vmem:[#allocation2 + $0x190] sm:$0xff]
  %v1793 = vld [vmem:[#allocation2 + $0x198] sm:$0xff]
  %v1794 = vld [vmem:[#allocation2 + $0x1a0] sm:$0xff]
  %v1795 = vld [vmem:[#allocation2 + $0x1a8] sm:$0xff]
  %v1796 = vld [vmem:[#allocation2 + $0x1b0] sm:$0xff]
  %v1797 = vld [vmem:[#allocation2 + $0x1b8] sm:$0xff]
  %v1798 = vld [vmem:[#allocation2 + $0x1c0] sm:$0xff]
  %v1799 = vld [vmem:[#allocation2 + $0x1c8] sm:$0xff]
  %v1800 = vld [vmem:[#allocation2 + $0x1d0] sm:$0xff]
  %v1801 = vld [vmem:[#allocation2 + $0x1d8] sm:$0xff]
  %v1802 = vld [vmem:[#allocation2 + $0x1e0] sm:$0xff]
  %v1803 = vld [vmem:[#allocation2 + $0x1e8] sm:$0xff]
  %v1804 = vld [vmem:[#allocation2 + $0x1f0] sm:$0xff]
  %v1805 = vld [vmem:[#allocation2 + $0x1f8] sm:$0xff]
  %v1806 = vld [vmem:[#allocation2 + $0x200] sm:$0xff]
  %v1807 = vld [vmem:[#allocation2 + $0x208] sm:$0xff]
  %v1808 = vld [vmem:[#allocation2 + $0x210] sm:$0xff]
  %v1809 = vld [vmem:[#allocation2 + $0x218] sm:$0xff]
  %v1810 = vld [vmem:[#allocation2 + $0x220] sm:$0xff]
  %v1811 = vld [vmem:[#allocation2 + $0x228] sm:$0xff]
  %v1812 = vld [vmem:[#allocation2 + $0x230] sm:$0xff]
  %v1813 = vld [vmem:[#allocation2 + $0x238] sm:$0xff]
  %v1814 = vld [vmem:[#allocation2 + $0x240] sm:$0xff]
  %v1815 = vld [vmem:[#allocation2 + $0x248] sm:$0xff]
  %v1816 = vld [vmem:[#allocation2 + $0x250] sm:$0xff]
  %v1817 = vld [vmem:[#allocation2 + $0x258] sm:$0xff]
  %v1818 = vld [vmem:[#allocation2 + $0x260] sm:$0xff]
  %v1819 = vld [vmem:[#allocation2 + $0x268] sm:$0xff]
  %v1820 = vld [vmem:[#allocation2 + $0x270] sm:$0xff]
  %v1821 = vld [vmem:[#allocation2 + $0x278] sm:$0xff]
  %v1822 = vld [vmem:[#allocation2 + $0x280] sm:$0xff]
  %v1823 = vld [vmem:[#allocation2 + $0x288] sm:$0xff]
  %v1824 = vld [vmem:[#allocation2 + $0x290] sm:$0xff]
  %v1825 = vld [vmem:[#allocation2 + $0x298] sm:$0xff]
  %v1826 = vld [vmem:[#allocation2 + $0x2a0] sm:$0xff]
  %v1827 = vld [vmem:[#allocation2 + $0x2a8] sm:$0xff]
  %v1828 = vld [vmem:[#allocation2 + $0x2b0] sm:$0xff]
  %v1829 = vld [vmem:[#allocation2 + $0x2b8] sm:$0xff]
  %v1830 = vld [vmem:[#allocation2 + $0x2c0] sm:$0xff]
  %v1831 = vld [vmem:[#allocation2 + $0x2c8] sm:$0xff]
  %v1832 = vld [vmem:[#allocation2 + $0x2d0] sm:$0xff]
  %v1833 = vld [vmem:[#allocation2 + $0x2d8] sm:$0xff]
  %v1834 = vld [vmem:[#allocation2 + $0x2e0] sm:$0xff]
  %v1835 = vld [vmem:[#allocation2 + $0x2e8] sm:$0xff]
  %v1836 = vld [vmem:[#allocation2 + $0x2f0] sm:$0xff]
  %v1837 = vld [vmem:[#allocation2 + $0x2f8] sm:$0xff]
  %v1838 = vld [vmem:[#allocation2 + $0x300] sm:$0xff]
  %v1839 = vld [vmem:[#allocation2 + $0x308] sm:$0xff]
  %v1840 = vld [vmem:[#allocation2 + $0x310] sm:$0xff]
  %v1841 = vld [vmem:[#allocation2 + $0x318] sm:$0xff]
  %v1842 = vld [vmem:[#allocation2 + $0x320] sm:$0xff]
  %v1843 = vld [vmem:[#allocation2 + $0x328] sm:$0xff]
  %v1844 = vld [vmem:[#allocation2 + $0x330] sm:$0xff]
  %v1845 = vld [vmem:[#allocation2 + $0x338] sm:$0xff]
  %v1846 = vld [vmem:[#allocation2 + $0x340] sm:$0xff]
  %v1847 = vld [vmem:[#allocation2 + $0x348] sm:$0xff]
  %v1848 = vld [vmem:[#allocation2 + $0x350] sm:$0xff]
  %v1849 = vld [vmem:[#allocation2 + $0x358] sm:$0xff]
  %v1850 = vld [vmem:[#allocation2 + $0x360] sm:$0xff]
  %v1851 = vld [vmem:[#allocation2 + $0x368] sm:$0xff]
  %v1852 = vld [vmem:[#allocation2 + $0x370] sm:$0xff]
  %v1853 = vld [vmem:[#allocation2 + $0x378] sm:$0xff]
  %v1854 = vld [vmem:[#allocation2 + $0x380] sm:$0xff]
  %v1855 = vld [vmem:[#allocation2 + $0x388] sm:$0xff]
  %v1856 = vld [vmem:[#allocation2 + $0x390] sm:$0xff]
  %v1857 = vld [vmem:[#allocation2 + $0x398] sm:$0xff]
  %v1858 = vld [vmem:[#allocation2 + $0x3a0] sm:$0xff]
  %v1859 = vld [vmem:[#allocation2 + $0x3a8] sm:$0xff]
  %v1860 = vld [vmem:[#allocation2 + $0x3b0] sm:$0xff]
  %v1861 = vld [vmem:[#allocation2 + $0x3b8] sm:$0xff]
  %v1862 = vld [vmem:[#allocation2 + $0x3c0] sm:$0xff]
  %v1863 = vld [vmem:[#allocation2 + $0x3c8] sm:$0xff]
  %v1864 = vld [vmem:[#allocation2 + $0x3d0] sm:$0xff]
  %v1865 = vld [vmem:[#allocation2 + $0x3d8] sm:$0xff]
  %v1866 = vld [vmem:[#allocation2 + $0x3e0] sm:$0xff]
  %v1867 = vld [vmem:[#allocation2 + $0x3e8] sm:$0xff]
  %v1868 = vld [vmem:[#allocation2 + $0x3f0] sm:$0xff]
  %v1869 = vld [vmem:[#allocation2 + $0x3f8] sm:$0xff]
  %v1870 = vld [vmem:[#allocation2 + $0x400] sm:$0xff]
  %v1871 = vld [vmem:[#allocation2 + $0x408] sm:$0xff]
  %v1872 = vld [vmem:[#allocation2 + $0x410] sm:$0xff]
  %v1873 = vld [vmem:[#allocation2 + $0x418] sm:$0xff]
  %v1874 = vld [vmem:[#allocation2 + $0x420] sm:$0xff]
  %v1875 = vld [vmem:[#allocation2 + $0x428] sm:$0xff]
  %v1876 = vld [vmem:[#allocation2 + $0x430] sm:$0xff]
  %v1877 = vld [vmem:[#allocation2 + $0x438] sm:$0xff]
  %v1878 = vld [vmem:[#allocation2 + $0x440] sm:$0xff]
  %v1879 = vld [vmem:[#allocation2 + $0x448] sm:$0xff]
  %v1880 = vld [vmem:[#allocation2 + $0x450] sm:$0xff]
  %v1881 = vld [vmem:[#allocation2 + $0x458] sm:$0xff]
  %v1882 = vld [vmem:[#allocation2 + $0x460] sm:$0xff]
  %v1883 = vld [vmem:[#allocation2 + $0x468] sm:$0xff]
  %v1884 = vld [vmem:[#allocation2 + $0x470] sm:$0xff]
  %v1885 = vld [vmem:[#allocation2 + $0x478] sm:$0xff]
  %v1886 = vld [vmem:[%s7] sm:$0xff]
  %v1887 = vld [vmem:[%s7 + $0x8] sm:$0xff]
  %v1888 = vld [vmem:[%s7 + $0x10] sm:$0xff]
  %v1889 = vld [vmem:[%s7 + $0x18] sm:$0xff]
  %1891 = vset.pattern.permute.xlu0 0
  %1892 = vperm.xlu0 %1891, %v1886
  %v1893 = vpop.permute.xlu0 %1892
  %1896 = vset.pattern.permute.xlu0 0
  %1897 = vperm.xlu0 %1896, %v1887
  %v1898 = vpop.permute.xlu0 %1897
  %1901 = vset.pattern.permute.xlu0 0
  %1902 = vperm.xlu0 %1901, %v1888
  %v1903 = vpop.permute.xlu0 %1902
  %1906 = vset.pattern.permute.xlu0 0
  %1907 = vperm.xlu0 %1906, %v1889
  %v1908 = vpop.permute.xlu0 %1907
  %vm1910 = vcmask 261120
  %v1912 = vsel %vm1910, %v1732, 0
  %v1915 = vsel %vm1910, %v1735, 0
  %v1918 = vsel %vm1910, %v1738, 0
  %v1921 = vsel %vm1910, %v1741, 0
  %1923 = vmatprep.subr.mxu0 %v1743
  %1924 = vmatpush1.msra.mxu0 %v1742
  %1925 = vmatprep.subr.mxu0 %v1747
  %1926 = vmatpush1.msra.mxu0 %v1746
  %1927 = vmatprep.subr.mxu0 %v1751
  %1928 = vmatpush1.msra.mxu0 %v1750
  %1929 = vmatprep.subr.mxu0 %v1755
  %1930 = vmatpush1.msra.mxu0 %v1754
  %1931 = vmatprep.subr.mxu0 %v1759
  %1932 = vmatpush1.msra.mxu0 %v1758
  %1933 = vmatprep.subr.mxu0 %v1763
  %1934 = vmatpush1.msra.mxu0 %v1762
  %1935 = vmatprep.subr.mxu0 %v1767
  %1936 = vmatpush1.msra.mxu0 %v1766
  %1937 = vmatprep.subr.mxu0 %v1771
  %1938 = vmatpush1.msra.mxu0 %v1770
  %1939 = vmatprep.subr.mxu0 %v1775
  %1940 = vmatpush1.msra.mxu0 %v1774
  %1941 = vmatprep.subr.mxu0 %v1779
  %1942 = vmatpush1.msra.mxu0 %v1778
  %1943 = vmatprep.subr.mxu0 %v1783
  %1944 = vmatpush1.msra.mxu0 %v1782
  %1945 = vmatprep.subr.mxu0 %v1787
  %1946 = vmatpush1.msra.mxu0 %v1786
  %1947 = vmatprep.subr.mxu0 %v1791
  %1948 = vmatpush1.msra.mxu0 %v1790
  %1949 = vmatprep.subr.mxu0 %v1795
  %1950 = vmatpush1.msra.mxu0 %v1794
  %1951 = vmatprep.subr.mxu0 %v1799
  %1952 = vmatpush1.msra.mxu0 %v1798
  %1953 = vmatprep.subr.mxu0 %v1803
  %1954 = vmatpush1.msra.mxu0 %v1802
  %1955 = vmatprep.subr.mxu0 %v1807
  %1956 = vmatpush1.msra.mxu0 %v1806
  %1957 = vmatprep.subr.mxu0 %v1811
  %1958 = vmatpush1.msra.mxu0 %v1810
  %1959 = vmatprep.subr.mxu0 %v1815
  %1960 = vmatpush1.msra.mxu0 %v1814
  %1961 = vmatprep.subr.mxu0 %v1819
  %1962 = vmatpush1.msra.mxu0 %v1818
  %1963 = vmatprep.subr.mxu0 %v1823
  %1964 = vmatpush1.msra.mxu0 %v1822
  %1965 = vmatprep.subr.mxu0 %v1827
  %1966 = vmatpush1.msra.mxu0 %v1826
  %1967 = vmatprep.subr.mxu0 %v1831
  %1968 = vmatpush1.msra.mxu0 %v1830
  %1969 = vmatprep.subr.mxu0 %v1835
  %1970 = vmatpush1.msra.mxu0 %v1834
  %1971 = vmatprep.subr.mxu0 %v1839
  %1972 = vmatpush1.msra.mxu0 %v1838
  %1973 = vmatprep.subr.mxu0 %v1843
  %1974 = vmatpush1.msra.mxu0 %v1842
  %1975 = vmatprep.subr.mxu0 %v1847
  %1976 = vmatpush1.msra.mxu0 %v1846
  %1977 = vmatprep.subr.mxu0 %v1851
  %1978 = vmatpush1.msra.mxu0 %v1850
  %1979 = vmatprep.subr.mxu0 %v1855
  %1980 = vmatpush1.msra.mxu0 %v1854
  %1981 = vmatprep.subr.mxu0 %v1859
  %1982 = vmatpush1.msra.mxu0 %v1858
  %1983 = vmatprep.subr.mxu0 %v1863
  %1984 = vmatpush1.msra.mxu0 %v1862
  %1985 = vmatprep.subr.mxu0 %v1867
  %1986 = vmatpush1.msra.mxu0 %v1866
  %1987 = vmatprep.mubr.f32.mxu0 %v1731
  %1988 = vmatmul.mubr.f32.gmra.mrb[0].mxu0 %v1730
  %v1989 = vpop.f32.mrb[0].mxu0
  %v1990 = vadd.f32 %v1893, %v1989
  %v1991 = vpop.f32.mrb[0].mxu0
  %v1992 = vadd.f32 %v1893, %v1991
  %1993 = vmatprep.mubr.f32.mxu0 %v1734
  %1994 = vmatmul.mubr.f32.gmra.mrb[0].mxu0 %v1733
  %v1995 = vpop.f32.mrb[0].mxu0
  %v1996 = vadd.f32 %v1898, %v1995
  %v1997 = vpop.f32.mrb[0].mxu0
  %v1998 = vadd.f32 %v1898, %v1997
  %1999 = vmatprep.mubr.f32.mxu0 %v1737
  %2000 = vmatmul.mubr.f32.gmra.mrb[0].mxu0 %v1736
  %v2001 = vpop.f32.mrb[0].mxu0
  %v2002 = vadd.f32 %v1903, %v2001
  %v2003 = vpop.f32.mrb[0].mxu0
  %v2004 = vadd.f32 %v1903, %v2003
  %2005 = vmatprep.mubr.f32.mxu0 %v1740
  %2006 = vmatmul.mubr.f32.gmra.mrb[0].mxu0 %v1739
  %v2007 = vpop.f32.mrb[0].mxu0
  %v2008 = vadd.f32 %v1908, %v2007
  %v2009 = vpop.f32.mrb[0].mxu0
  %v2010 = vadd.f32 %v1908, %v2009
  %2011 = vdwg.mxu0
  %2012 = vmatprep.subr.mxu0 %v1871
  %2013 = vmatpush1.msra.mxu0 %v1870
  %2014 = vmatprep.subr.mxu0 %v1875
  %2015 = vmatpush1.msra.mxu0 %v1874
  %2016 = vmatprep.subr.mxu0 %v1879
  %2017 = vmatpush1.msra.mxu0 %v1878
  %2018 = vmatprep.subr.mxu0 %v1883
  %2019 = vmatpush1.msra.mxu0 %v1882
  %2020 = vmatprep.subr.mxu0 0.0
  %2021 = vmatpush1.msra.mxu0 0.0
  %2022 = vmatprep.subr.mxu0 0.0
  %2023 = vmatpush1.msra.mxu0 0.0
  %2024 = vmatprep.subr.mxu0 0.0
  %2025 = vmatpush1.msra.mxu0 0.0
  %2026 = vmatprep.subr.mxu0 0.0
  %2027 = vmatpush1.msra.mxu0 0.0
  %2028 = vmatprep.subr.mxu0 0.0
  %2029 = vmatpush1.msra.mxu0 0.0
  %2030 = vmatprep.subr.mxu0 0.0
  %2031 = vmatpush1.msra.mxu0 0.0
  %2032 = vmatprep.subr.mxu0 0.0
  %2033 = vmatpush1.msra.mxu0 0.0
  %2034 = vmatprep.subr.mxu0 0.0
  %2035 = vmatpush1.msra.mxu0 0.0
  %2036 = vmatprep.subr.mxu0 0.0
  %2037 = vmatpush1.msra.mxu0 0.0
  %2038 = vmatprep.subr.mxu0 0.0
  %2039 = vmatpush1.msra.mxu0 0.0
  %2040 = vmatprep.subr.mxu0 0.0
  %2041 = vmatpush1.msra.mxu0 0.0
  %2042 = vmatprep.subr.mxu0 0.0
  %2043 = vmatpush1.msra.mxu0 0.0
  %2044 = vmatprep.subr.mxu0 0.0
  %2045 = vmatpush1.msra.mxu0 0.0
  %2046 = vmatprep.subr.mxu0 0.0
  %2047 = vmatpush1.msra.mxu0 0.0
  %2048 = vmatprep.subr.mxu0 0.0
  %2049 = vmatpush1.msra.mxu0 0.0
  %2050 = vmatprep.subr.mxu0 0.0
  %2051 = vmatpush1.msra.mxu0 0.0
  %2052 = vmatprep.subr.mxu0 0.0
  %2053 = vmatpush1.msra.mxu0 0.0
  %2054 = vmatprep.subr.mxu0 0.0
  %2055 = vmatpush1.msra.mxu0 0.0
  %2056 = vmatprep.subr.mxu0 0.0
  %2057 = vmatpush1.msra.mxu0 0.0
  %2058 = vmatprep.subr.mxu0 0.0
  %2059 = vmatpush1.msra.mxu0 0.0
  %2060 = vmatprep.subr.mxu0 0.0
  %2061 = vmatpush1.msra.mxu0 0.0
  %2062 = vmatprep.subr.mxu0 0.0
  %2063 = vmatpush1.msra.mxu0 0.0
  %2064 = vmatprep.subr.mxu0 0.0
  %2065 = vmatpush1.msra.mxu0 0.0
  %2066 = vmatprep.subr.mxu0 0.0
  %2067 = vmatpush1.msra.mxu0 0.0
  %2068 = vmatprep.subr.mxu0 0.0
  %2069 = vmatpush1.msra.mxu0 0.0
  %2070 = vmatprep.subr.mxu0 0.0
  %2071 = vmatpush1.msra.mxu0 0.0
  %2072 = vmatprep.subr.mxu0 0.0
  %2073 = vmatpush1.msra.mxu0 0.0
  %2074 = vmatprep.subr.mxu0 0.0
  %2075 = vmatpush1.msra.mxu0 0.0
  %2076 = vmatprep.mubr.f32.mxu0 0.0
  %2077 = vmatmul.mubr.f32.gmra.mrb[0].mxu0 %v1912
  %v2078 = vpop.f32.mrb[0].mxu0
  %v2079 = vadd.f32 %v1990, %v2078
  %v2080 = vpop.f32.mrb[0].mxu0
  %v2081 = vadd.f32 %v1992, %v2080
  %2082 = vmatprep.mubr.f32.mxu0 0.0
  %2083 = vmatmul.mubr.f32.gmra.mrb[0].mxu0 %v1915
  %v2084 = vpop.f32.mrb[0].mxu0
  %v2085 = vadd.f32 %v1996, %v2084
  %v2086 = vpop.f32.mrb[0].mxu0
  %v2087 = vadd.f32 %v1998, %v2086
  %2088 = vmatprep.mubr.f32.mxu0 0.0
  %2089 = vmatmul.mubr.f32.gmra.mrb[0].mxu0 %v1918
  %v2090 = vpop.f32.mrb[0].mxu0
  %v2091 = vadd.f32 %v2002, %v2090
  %v2092 = vpop.f32.mrb[0].mxu0
  %v2093 = vadd.f32 %v2004, %v2092
  %2094 = vmatprep.mubr.f32.mxu0 0.0
  %2095 = vmatmul.mubr.f32.gmra.mrb[0].mxu0 %v1921
  %v2096 = vpop.f32.mrb[0].mxu0
  %v2097 = vadd.f32 %v2008, %v2096
  %v2098 = vpop.f32.mrb[0].mxu0
  %v2099 = vadd.f32 %v2010, %v2098
  %2100 = vdwg.mxu0
  %2101 = vmatprep.subr.mxu0 %v1745
  %2102 = vmatpush1.msra.mxu0 %v1744
  %2103 = vmatprep.subr.mxu0 %v1749
  %2104 = vmatpush1.msra.mxu0 %v1748
  %2105 = vmatprep.subr.mxu0 %v1753
  %2106 = vmatpush1.msra.mxu0 %v1752
  %2107 = vmatprep.subr.mxu0 %v1757
  %2108 = vmatpush1.msra.mxu0 %v1756
  %2109 = vmatprep.subr.mxu0 %v1761
  %2110 = vmatpush1.msra.mxu0 %v1760
  %2111 = vmatprep.subr.mxu0 %v1765
  %2112 = vmatpush1.msra.mxu0 %v1764
  %2113 = vmatprep.subr.mxu0 %v1769
  %2114 = vmatpush1.msra.mxu0 %v1768
  %2115 = vmatprep.subr.mxu0 %v1773
  %2116 = vmatpush1.msra.mxu0 %v1772
  %2117 = vmatprep.subr.mxu0 %v1777
  %2118 = vmatpush1.msra.mxu0 %v1776
  %2119 = vmatprep.subr.mxu0 %v1781
  %2120 = vmatpush1.msra.mxu0 %v1780
  %2121 = vmatprep.subr.mxu0 %v1785
  %2122 = vmatpush1.msra.mxu0 %v1784
  %2123 = vmatprep.subr.mxu0 %v1789
  %2124 = vmatpush1.msra.mxu0 %v1788
  %2125 = vmatprep.subr.mxu0 %v1793
  %2126 = vmatpush1.msra.mxu0 %v1792
  %2127 = vmatprep.subr.mxu0 %v1797
  %2128 = vmatpush1.msra.mxu0 %v1796
  %2129 = vmatprep.subr.mxu0 %v1801
  %2130 = vmatpush1.msra.mxu0 %v1800
  %2131 = vmatprep.subr.mxu0 %v1805
  %2132 = vmatpush1.msra.mxu0 %v1804
  %2133 = vmatprep.subr.mxu0 %v1809
  %2134 = vmatpush1.msra.mxu0 %v1808
  %2135 = vmatprep.subr.mxu0 %v1813
  %2136 = vmatpush1.msra.mxu0 %v1812
  %2137 = vmatprep.subr.mxu0 %v1817
  %2138 = vmatpush1.msra.mxu0 %v1816
  %2139 = vmatprep.subr.mxu0 %v1821
  %2140 = vmatpush1.msra.mxu0 %v1820
  %2141 = vmatprep.subr.mxu0 %v1825
  %2142 = vmatpush1.msra.mxu0 %v1824
  %2143 = vmatprep.subr.mxu0 %v1829
  %2144 = vmatpush1.msra.mxu0 %v1828
  %2145 = vmatprep.subr.mxu0 %v1833
  %2146 = vmatpush1.msra.mxu0 %v1832
  %2147 = vmatprep.subr.mxu0 %v1837
  %2148 = vmatpush1.msra.mxu0 %v1836
  %2149 = vmatprep.subr.mxu0 %v1841
  %2150 = vmatpush1.msra.mxu0 %v1840
  %2151 = vmatprep.subr.mxu0 %v1845
  %2152 = vmatpush1.msra.mxu0 %v1844
  %2153 = vmatprep.subr.mxu0 %v1849
  %2154 = vmatpush1.msra.mxu0 %v1848
  %2155 = vmatprep.subr.mxu0 %v1853
  %2156 = vmatpush1.msra.mxu0 %v1852
  %2157 = vmatprep.subr.mxu0 %v1857
  %2158 = vmatpush1.msra.mxu0 %v1856
  %2159 = vmatprep.subr.mxu0 %v1861
  %2160 = vmatpush1.msra.mxu0 %v1860
  %2161 = vmatprep.subr.mxu0 %v1865
  %2162 = vmatpush1.msra.mxu0 %v1864
  %2163 = vmatprep.subr.mxu0 %v1869
  %2164 = vmatpush1.msra.mxu0 %v1868
  %2165 = vmatprep.mubr.f32.mxu0 %v1731
  %2166 = vmatmul.mubr.f32.gmra.mrb[0].mxu0 %v1730
  %v2167 = vpop.f32.mrb[0].mxu0
  %v2168 = vadd.f32 %v1893, %v2167
  %v2169 = vpop.f32.mrb[0].mxu0
  %v2170 = vadd.f32 %v1893, %v2169
  %2171 = vmatprep.mubr.f32.mxu0 %v1734
  %2172 = vmatmul.mubr.f32.gmra.mrb[0].mxu0 %v1733
  %v2173 = vpop.f32.mrb[0].mxu0
  %v2174 = vadd.f32 %v1898, %v2173
  %v2175 = vpop.f32.mrb[0].mxu0
  %v2176 = vadd.f32 %v1898, %v2175
  %2177 = vmatprep.mubr.f32.mxu0 %v1737
  %2178 = vmatmul.mubr.f32.gmra.mrb[0].mxu0 %v1736
  %v2179 = vpop.f32.mrb[0].mxu0
  %v2180 = vadd.f32 %v1903, %v2179
  %v2181 = vpop.f32.mrb[0].mxu0
  %v2182 = vadd.f32 %v1903, %v2181
  %2183 = vmatprep.mubr.f32.mxu0 %v1740
  %2184 = vmatmul.mubr.f32.gmra.mrb[0].mxu0 %v1739
  %v2185 = vpop.f32.mrb[0].mxu0
  %v2186 = vadd.f32 %v1908, %v2185
  %v2187 = vpop.f32.mrb[0].mxu0
  %v2188 = vadd.f32 %v1908, %v2187
  %2189 = vdwg.mxu0
  %2190 = vmatprep.subr.mxu0 %v1873
  %2191 = vmatpush1.msra.mxu0 %v1872
  %2192 = vmatprep.subr.mxu0 %v1877
  %2193 = vmatpush1.msra.mxu0 %v1876
  %2194 = vmatprep.subr.mxu0 %v1881
  %2195 = vmatpush1.msra.mxu0 %v1880
  %2196 = vmatprep.subr.mxu0 %v1885
  %2197 = vmatpush1.msra.mxu0 %v1884
  %2198 = vmatprep.subr.mxu0 0.0
  %2199 = vmatpush1.msra.mxu0 0.0
  %2200 = vmatprep.subr.mxu0 0.0
  %2201 = vmatpush1.msra.mxu0 0.0
  %2202 = vmatprep.subr.mxu0 0.0
  %2203 = vmatpush1.msra.mxu0 0.0
  %2204 = vmatprep.subr.mxu0 0.0
  %2205 = vmatpush1.msra.mxu0 0.0
  %2206 = vmatprep.subr.mxu0 0.0
  %2207 = vmatpush1.msra.mxu0 0.0
  %2208 = vmatprep.subr.mxu0 0.0
  %2209 = vmatpush1.msra.mxu0 0.0
  %2210 = vmatprep.subr.mxu0 0.0
  %2211 = vmatpush1.msra.mxu0 0.0
  %2212 = vmatprep.subr.mxu0 0.0
  %2213 = vmatpush1.msra.mxu0 0.0
  %2214 = vmatprep.subr.mxu0 0.0
  %2215 = vmatpush1.msra.mxu0 0.0
  %2216 = vmatprep.subr.mxu0 0.0
  %2217 = vmatpush1.msra.mxu0 0.0
  %2218 = vmatprep.subr.mxu0 0.0
  %2219 = vmatpush1.msra.mxu0 0.0
  %2220 = vmatprep.subr.mxu0 0.0
  %2221 = vmatpush1.msra.mxu0 0.0
  %2222 = vmatprep.subr.mxu0 0.0
  %2223 = vmatpush1.msra.mxu0 0.0
  %2224 = vmatprep.subr.mxu0 0.0
  %2225 = vmatpush1.msra.mxu0 0.0
  %2226 = vmatprep.subr.mxu0 0.0
  %2227 = vmatpush1.msra.mxu0 0.0
  %2228 = vmatprep.subr.mxu0 0.0
  %2229 = vmatpush1.msra.mxu0 0.0
  %2230 = vmatprep.subr.mxu0 0.0
  %2231 = vmatpush1.msra.mxu0 0.0
  %2232 = vmatprep.subr.mxu0 0.0
  %2233 = vmatpush1.msra.mxu0 0.0
  %2234 = vmatprep.subr.mxu0 0.0
  %2235 = vmatpush1.msra.mxu0 0.0
  %2236 = vmatprep.subr.mxu0 0.0
  %2237 = vmatpush1.msra.mxu0 0.0
  %2238 = vmatprep.subr.mxu0 0.0
  %2239 = vmatpush1.msra.mxu0 0.0
  %2240 = vmatprep.subr.mxu0 0.0
  %2241 = vmatpush1.msra.mxu0 0.0
  %2242 = vmatprep.subr.mxu0 0.0
  %2243 = vmatpush1.msra.mxu0 0.0
  %2244 = vmatprep.subr.mxu0 0.0
  %2245 = vmatpush1.msra.mxu0 0.0
  %2246 = vmatprep.subr.mxu0 0.0
  %2247 = vmatpush1.msra.mxu0 0.0
  %2248 = vmatprep.subr.mxu0 0.0
  %2249 = vmatpush1.msra.mxu0 0.0
  %2250 = vmatprep.subr.mxu0 0.0
  %2251 = vmatpush1.msra.mxu0 0.0
  %2252 = vmatprep.subr.mxu0 0.0
  %2253 = vmatpush1.msra.mxu0 0.0
  %2254 = vmatprep.mubr.f32.mxu0 0.0
  %2255 = vmatmul.mubr.f32.gmra.mrb[0].mxu0 %v1912
  %v2256 = vpop.f32.mrb[0].mxu0
  %v2257 = vadd.f32 %v2168, %v2256
  %v2258 = vpop.f32.mrb[0].mxu0
  %v2259 = vadd.f32 %v2170, %v2258
  %2260 = vmatprep.mubr.f32.mxu0 0.0
  %2261 = vmatmul.mubr.f32.gmra.mrb[0].mxu0 %v1915
  %v2262 = vpop.f32.mrb[0].mxu0
  %v2263 = vadd.f32 %v2174, %v2262
  %v2264 = vpop.f32.mrb[0].mxu0
  %v2265 = vadd.f32 %v2176, %v2264
  %2266 = vmatprep.mubr.f32.mxu0 0.0
  %2267 = vmatmul.mubr.f32.gmra.mrb[0].mxu0 %v1918
  %v2268 = vpop.f32.mrb[0].mxu0
  %v2269 = vadd.f32 %v2180, %v2268
  %v2270 = vpop.f32.mrb[0].mxu0
  %v2271 = vadd.f32 %v2182, %v2270
  %2272 = vmatprep.mubr.f32.mxu0 0.0
  %2273 = vmatmul.mubr.f32.gmra.mrb[0].mxu0 %v1921
  %v2274 = vpop.f32.mrb[0].mxu0
  %v2275 = vadd.f32 %v2186, %v2274
  %v2276 = vpop.f32.mrb[0].mxu0
  %v2277 = vadd.f32 %v2188, %v2276
  %2278 = vdwg.mxu0
  %v2279 = vadd.f32 %v2079, %v2081
  %v2280 = vadd.f32 %v2279, %v2257
  %v2281 = vadd.f32 %v2280, %v2259
  %2282 = vadd.xlane.f32.xlu0 %v2281
  %v2283 = vpop.xlane.xlu0 %2282
  %v2284 = vadd.f32 %v2085, %v2087
  %v2285 = vadd.f32 %v2284, %v2263
  %v2286 = vadd.f32 %v2285, %v2265
  %2287 = vadd.xlane.f32.xlu0 %v2286
  %v2288 = vpop.xlane.xlu0 %2287
  %v2289 = vadd.f32 %v2091, %v2093
  %v2290 = vadd.f32 %v2289, %v2269
  %v2291 = vadd.f32 %v2290, %v2271
  %2292 = vadd.xlane.f32.xlu0 %v2291
  %v2293 = vpop.xlane.xlu0 %2292
  %v2294 = vadd.f32 %v2097, %v2099
  %v2295 = vadd.f32 %v2294, %v2275
  %v2296 = vadd.f32 %v2295, %v2277
  %2297 = vadd.xlane.f32.xlu0 %v2296
  %v2298 = vpop.xlane.xlu0 %2297
  %v2299 = vmul.f32 %v2283, 0.001953125
  %v2300 = vmul.f32 %v2288, 0.001953125
  %v2301 = vmul.f32 %v2293, 0.001953125
  %v2302 = vmul.f32 %v2298, 0.001953125
  %v2303 = vsub.f32 %v2079, %v2299
  %v2304 = vsub.f32 %v2081, %v2299
  %v2305 = vsub.f32 %v2257, %v2299
  %v2306 = vsub.f32 %v2259, %v2299
  %v2307 = vsub.f32 %v2085, %v2300
  %v2308 = vsub.f32 %v2087, %v2300
  %v2309 = vsub.f32 %v2263, %v2300
  %v2310 = vsub.f32 %v2265, %v2300
  %v2311 = vsub.f32 %v2091, %v2301
  %v2312 = vsub.f32 %v2093, %v2301
  %v2313 = vsub.f32 %v2269, %v2301
  %v2314 = vsub.f32 %v2271, %v2301
  %v2315 = vsub.f32 %v2097, %v2302
  %v2316 = vsub.f32 %v2099, %v2302
  %v2317 = vsub.f32 %v2275, %v2302
  %v2318 = vsub.f32 %v2277, %v2302
  %v2319 = vmul.f32 %v2303, %v2303
  %v2320 = vmul.f32 %v2304, %v2304
  %v2321 = vmul.f32 %v2305, %v2305
  %v2322 = vmul.f32 %v2306, %v2306
  %v2323 = vmul.f32 %v2307, %v2307
  %v2324 = vmul.f32 %v2308, %v2308
  %v2325 = vmul.f32 %v2309, %v2309
  %v2326 = vmul.f32 %v2310, %v2310
  %v2327 = vmul.f32 %v2311, %v2311
  %v2328 = vmul.f32 %v2312, %v2312
  %v2329 = vmul.f32 %v2313, %v2313
  %v2330 = vmul.f32 %v2314, %v2314
  %v2331 = vmul.f32 %v2315, %v2315
  %v2332 = vmul.f32 %v2316, %v2316
  %v2333 = vmul.f32 %v2317, %v2317
  %v2334 = vmul.f32 %v2318, %v2318
  %v2335 = vadd.f32 %v2319, %v2320
  %v2336 = vadd.f32 %v2335, %v2321
  %v2337 = vadd.f32 %v2336, %v2322
  %2338 = vadd.xlane.f32.xlu0 %v2337
  %v2339 = vpop.xlane.xlu0 %2338
  %v2340 = vadd.f32 %v2323, %v2324
  %v2341 = vadd.f32 %v2340, %v2325
  %v2342 = vadd.f32 %v2341, %v2326
  %2343 = vadd.xlane.f32.xlu0 %v2342
  %v2344 = vpop.xlane.xlu0 %2343
  %v2345 = vadd.f32 %v2327, %v2328
  %v2346 = vadd.f32 %v2345, %v2329
  %v2347 = vadd.f32 %v2346, %v2330
  %2348 = vadd.xlane.f32.xlu0 %v2347
  %v2349 = vpop.xlane.xlu0 %2348
  %v2350 = vadd.f32 %v2331, %v2332
  %v2351 = vadd.f32 %v2350, %v2333
  %v2352 = vadd.f32 %v2351, %v2334
  %2353 = vadd.xlane.f32.xlu0 %v2352
  %v2354 = vpop.xlane.xlu0 %2353
  %v2355 = vmul.f32 %v2339, 0.001953125
  %v2356 = vmul.f32 %v2344, 0.001953125
  %v2357 = vmul.f32 %v2349, 0.001953125
  %v2358 = vmul.f32 %v2354, 0.001953125
  %v2359 = vld [vmem:[%s8] sm:$0xff]
  %v2360 = vld [vmem:[%s8 + $0x8] sm:$0xff]
  %v2361 = vld [vmem:[%s8 + $0x10] sm:$0xff]
  %v2362 = vld [vmem:[%s8 + $0x18] sm:$0xff]
  %v2363 = vadd.f32 %v2355, 1e-05
  %v2364 = vadd.f32 %v2356, 1e-05
  %v2365 = vadd.f32 %v2357, 1e-05
  %v2366 = vadd.f32 %v2358, 1e-05
  %v2367 = vrsqrt.pop %v2363
  %v2368 = vrsqrt.pop %v2364
  %v2369 = vrsqrt.pop %v2365
  %v2370 = vrsqrt.pop %v2366
  %v2371 = vmul.f32 %v2359, %v2367
  %v2372 = vmul.f32 %v2360, %v2368
  %v2373 = vmul.f32 %v2361, %v2369
  %v2374 = vmul.f32 %v2362, %v2370
  %2376 = vset.pattern.permute.xlu0 0
  %2377 = vperm.xlu0 %2376, %v2371
  %v2378 = vpop.permute.xlu0 %2377
  %2381 = vset.pattern.permute.xlu0 0
  %2382 = vperm.xlu0 %2381, %v2372
  %v2383 = vpop.permute.xlu0 %2382
  %2386 = vset.pattern.permute.xlu0 0
  %2387 = vperm.xlu0 %2386, %v2373
  %v2388 = vpop.permute.xlu0 %2387
  %2391 = vset.pattern.permute.xlu0 0
  %2392 = vperm.xlu0 %2391, %v2374
  %v2393 = vpop.permute.xlu0 %2392
  %v2395 = vmul.f32 %v2303, %v2378
  %v2396 = vmul.f32 %v2304, %v2378
  %v2397 = vmul.f32 %v2305, %v2378
  %v2398 = vmul.f32 %v2306, %v2378
  %v2399 = vmul.f32 %v2307, %v2383
  %v2400 = vmul.f32 %v2308, %v2383
  %v2401 = vmul.f32 %v2309, %v2383
  %v2402 = vmul.f32 %v2310, %v2383
  %v2403 = vmul.f32 %v2311, %v2388
  %v2404 = vmul.f32 %v2312, %v2388
  %v2405 = vmul.f32 %v2313, %v2388
  %v2406 = vmul.f32 %v2314, %v2388
  %v2407 = vmul.f32 %v2315, %v2393
  %v2408 = vmul.f32 %v2316, %v2393
  %v2409 = vmul.f32 %v2317, %v2393
  %v2410 = vmul.f32 %v2318, %v2393
  %v2411 = vld [vmem:[%s9] sm:$0xff]
  %v2412 = vld [vmem:[%s9 + $0x8] sm:$0xff]
  %v2413 = vld [vmem:[%s9 + $0x10] sm:$0xff]
  %v2414 = vld [vmem:[%s9 + $0x18] sm:$0xff]
  %2416 = vset.pattern.permute.xlu0 0
  %2417 = vperm.xlu0 %2416, %v2411
  %v2418 = vpop.permute.xlu0 %2417
  %2421 = vset.pattern.permute.xlu0 0
  %2422 = vperm.xlu0 %2421, %v2412
  %v2423 = vpop.permute.xlu0 %2422
  %2426 = vset.pattern.permute.xlu0 0
  %2427 = vperm.xlu0 %2426, %v2413
  %v2428 = vpop.permute.xlu0 %2427
  %2431 = vset.pattern.permute.xlu0 0
  %2432 = vperm.xlu0 %2431, %v2414
  %v2433 = vpop.permute.xlu0 %2432
  %v2435 = vadd.f32 %v2395, %v2418
  %v2436 = vadd.f32 %v2396, %v2418
  %v2437 = vadd.f32 %v2397, %v2418
  %v2438 = vadd.f32 %v2398, %v2418
  %v2439 = vadd.f32 %v2399, %v2423
  %v2440 = vadd.f32 %v2400, %v2423
  %v2441 = vadd.f32 %v2401, %v2423
  %v2442 = vadd.f32 %v2402, %v2423
  %v2443 = vadd.f32 %v2403, %v2428
  %v2444 = vadd.f32 %v2404, %v2428
  %v2445 = vadd.f32 %v2405, %v2428
  %v2446 = vadd.f32 %v2406, %v2428
  %v2447 = vadd.f32 %v2407, %v2433
  %v2448 = vadd.f32 %v2408, %v2433
  %v2449 = vadd.f32 %v2409, %v2433
  %v2450 = vadd.f32 %v2410, %v2433
  %vm2451 = vcmp.ge.f32.partialorder %v2435, 0.0
  %vm2452 = vcmp.ge.f32.partialorder %v2436, 0.0
  %vm2453 = vcmp.ge.f32.partialorder %v2437, 0.0
  %vm2454 = vcmp.ge.f32.partialorder %v2438, 0.0
  %vm2455 = vcmp.ge.f32.partialorder %v2439, 0.0
  %vm2456 = vcmp.ge.f32.partialorder %v2440, 0.0
  %vm2457 = vcmp.ge.f32.partialorder %v2441, 0.0
  %vm2458 = vcmp.ge.f32.partialorder %v2442, 0.0
  %vm2459 = vcmp.ge.f32.partialorder %v2443, 0.0
  %vm2460 = vcmp.ge.f32.partialorder %v2444, 0.0
  %vm2461 = vcmp.ge.f32.partialorder %v2445, 0.0
  %vm2462 = vcmp.ge.f32.partialorder %v2446, 0.0
  %vm2463 = vcmp.ge.f32.partialorder %v2447, 0.0
  %vm2464 = vcmp.ge.f32.partialorder %v2448, 0.0
  %vm2465 = vcmp.ge.f32.partialorder %v2449, 0.0
  %vm2466 = vcmp.ge.f32.partialorder %v2450, 0.0
  %v2467 = vmul.f32 %v2435, 0.2
  %v2468 = vmul.f32 %v2436, 0.2
  %v2469 = vmul.f32 %v2437, 0.2
  %v2470 = vmul.f32 %v2438, 0.2
  %v2471 = vmul.f32 %v2439, 0.2
  %v2472 = vmul.f32 %v2440, 0.2
  %v2473 = vmul.f32 %v2441, 0.2
  %v2474 = vmul.f32 %v2442, 0.2
  %v2475 = vmul.f32 %v2443, 0.2
  %v2476 = vmul.f32 %v2444, 0.2
  %v2477 = vmul.f32 %v2445, 0.2
  %v2478 = vmul.f32 %v2446, 0.2
  %v2479 = vmul.f32 %v2447, 0.2
  %v2480 = vmul.f32 %v2448, 0.2
  %v2481 = vmul.f32 %v2449, 0.2
  %v2482 = vmul.f32 %v2450, 0.2
  %v2483 = vsel %vm2451, %v2435, %v2467
  %v2484 = vsel %vm2452, %v2436, %v2468
  %v2485 = vsel %vm2453, %v2437, %v2469
  %v2486 = vsel %vm2454, %v2438, %v2470
  %v2487 = vsel %vm2455, %v2439, %v2471
  %v2488 = vsel %vm2456, %v2440, %v2472
  %v2489 = vsel %vm2457, %v2441, %v2473
  %v2490 = vsel %vm2458, %v2442, %v2474
  %v2491 = vsel %vm2459, %v2443, %v2475
  %v2492 = vsel %vm2460, %v2444, %v2476
  %v2493 = vsel %vm2461, %v2445, %v2477
  %v2494 = vsel %vm2462, %v2446, %v2478
  %v2495 = vsel %vm2463, %v2447, %v2479
  %v2496 = vsel %vm2464, %v2448, %v2480
  %v2497 = vsel %vm2465, %v2449, %v2481
  %v2498 = vsel %vm2466, %v2450, %v2482
  %v2499 = vld [vmem:[%s11] sm:$0xff]
  %v2500 = vld [vmem:[%s11 + $0x8] sm:$0xff]
  %v2501 = vld [vmem:[%s11 + $0x10] sm:$0xff]
  %v2502 = vld [vmem:[%s11 + $0x18] sm:$0xff]
  %v2503 = vld [vmem:[%s11 + $0x20] sm:$0xff]
  %v2504 = vld [vmem:[%s11 + $0x28] sm:$0xff]
  %v2505 = vld [vmem:[%s11 + $0x30] sm:$0xff]
  %v2506 = vld [vmem:[%s11 + $0x38] sm:$0xff]
  %v2507 = vld [vmem:[%s11 + $0x40] sm:$0xff]
  %v2508 = vld [vmem:[%s11 + $0x48] sm:$0xff]
  %v2509 = vld [vmem:[%s11 + $0x50] sm:$0xff]
  %v2510 = vld [vmem:[%s11 + $0x58] sm:$0xff]
  %v2511 = vld [vmem:[%s11 + $0x60] sm:$0xff]
  %v2512 = vld [vmem:[%s11 + $0x68] sm:$0xff]
  %v2513 = vld [vmem:[%s11 + $0x70] sm:$0xff]
  %v2514 = vld [vmem:[%s11 + $0x78] sm:$0xff]
  %v2515 = vld [vmem:[%s11 + $0x80] sm:$0xff]
  %v2516 = vld [vmem:[%s11 + $0x88] sm:$0xff]
  %v2517 = vld [vmem:[%s11 + $0x90] sm:$0xff]
  %v2518 = vld [vmem:[%s11 + $0x98] sm:$0xff]
  %v2519 = vld [vmem:[%s11 + $0xa0] sm:$0xff]
  %v2520 = vld [vmem:[%s11 + $0xa8] sm:$0xff]
  %v2521 = vld [vmem:[%s11 + $0xb0] sm:$0xff]
  %v2522 = vld [vmem:[%s11 + $0xb8] sm:$0xff]
  %v2523 = vld [vmem:[%s11 + $0xc0] sm:$0xff]
  %v2524 = vld [vmem:[%s11 + $0xc8] sm:$0xff]
  %v2525 = vld [vmem:[%s11 + $0xd0] sm:$0xff]
  %v2526 = vld [vmem:[%s11 + $0xd8] sm:$0xff]
  %v2527 = vld [vmem:[%s11 + $0xe0] sm:$0xff]
  %v2528 = vld [vmem:[%s11 + $0xe8] sm:$0xff]
  %v2529 = vld [vmem:[%s11 + $0xf0] sm:$0xff]
  %v2530 = vld [vmem:[%s11 + $0xf8] sm:$0xff]
  %v2531 = vld [vmem:[%s11 + $0x100] sm:$0xff]
  %v2532 = vld [vmem:[%s11 + $0x108] sm:$0xff]
  %v2533 = vld [vmem:[%s11 + $0x110] sm:$0xff]
  %v2534 = vld [vmem:[%s11 + $0x118] sm:$0xff]
  %v2535 = vld [vmem:[%s11 + $0x120] sm:$0xff]
  %v2536 = vld [vmem:[%s11 + $0x128] sm:$0xff]
  %v2537 = vld [vmem:[%s11 + $0x130] sm:$0xff]
  %v2538 = vld [vmem:[%s11 + $0x138] sm:$0xff]
  %v2539 = vld [vmem:[%s11 + $0x140] sm:$0xff]
  %v2540 = vld [vmem:[%s11 + $0x148] sm:$0xff]
  %v2541 = vld [vmem:[%s11 + $0x150] sm:$0xff]
  %v2542 = vld [vmem:[%s11 + $0x158] sm:$0xff]
  %v2543 = vld [vmem:[%s11 + $0x160] sm:$0xff]
  %v2544 = vld [vmem:[%s11 + $0x168] sm:$0xff]
  %v2545 = vld [vmem:[%s11 + $0x170] sm:$0xff]
  %v2546 = vld [vmem:[%s11 + $0x178] sm:$0xff]
  %v2547 = vld [vmem:[%s11 + $0x180] sm:$0xff]
  %v2548 = vld [vmem:[%s11 + $0x188] sm:$0xff]
  %v2549 = vld [vmem:[%s11 + $0x190] sm:$0xff]
  %v2550 = vld [vmem:[%s11 + $0x198] sm:$0xff]
  %v2551 = vld [vmem:[%s11 + $0x1a0] sm:$0xff]
  %v2552 = vld [vmem:[%s11 + $0x1a8] sm:$0xff]
  %v2553 = vld [vmem:[%s11 + $0x1b0] sm:$0xff]
  %v2554 = vld [vmem:[%s11 + $0x1b8] sm:$0xff]
  %v2555 = vld [vmem:[%s11 + $0x1c0] sm:$0xff]
  %v2556 = vld [vmem:[%s11 + $0x1c8] sm:$0xff]
  %v2557 = vld [vmem:[%s11 + $0x1d0] sm:$0xff]
  %v2558 = vld [vmem:[%s11 + $0x1d8] sm:$0xff]
  %v2559 = vld [vmem:[%s11 + $0x1e0] sm:$0xff]
  %v2560 = vld [vmem:[%s11 + $0x1e8] sm:$0xff]
  %v2561 = vld [vmem:[%s11 + $0x1f0] sm:$0xff]
  %v2562 = vld [vmem:[%s11 + $0x1f8] sm:$0xff]
  %v2563 = vld [vmem:[%s11 + $0x200] sm:$0xff]
  %v2564 = vld [vmem:[%s11 + $0x208] sm:$0xff]
  %v2565 = vld [vmem:[%s11 + $0x210] sm:$0xff]
  %v2566 = vld [vmem:[%s11 + $0x218] sm:$0xff]
  %v2567 = vld [vmem:[%s11 + $0x220] sm:$0xff]
  %v2568 = vld [vmem:[%s11 + $0x228] sm:$0xff]
  %v2569 = vld [vmem:[%s11 + $0x230] sm:$0xff]
  %v2570 = vld [vmem:[%s11 + $0x238] sm:$0xff]
  %v2571 = vld [vmem:[%s11 + $0x240] sm:$0xff]
  %v2572 = vld [vmem:[%s11 + $0x248] sm:$0xff]
  %v2573 = vld [vmem:[%s11 + $0x250] sm:$0xff]
  %v2574 = vld [vmem:[%s11 + $0x258] sm:$0xff]
  %v2575 = vld [vmem:[%s11 + $0x260] sm:$0xff]
  %v2576 = vld [vmem:[%s11 + $0x268] sm:$0xff]
  %v2577 = vld [vmem:[%s11 + $0x270] sm:$0xff]
  %v2578 = vld [vmem:[%s11 + $0x278] sm:$0xff]
  %v2579 = vld [vmem:[%s11 + $0x280] sm:$0xff]
  %v2580 = vld [vmem:[%s11 + $0x288] sm:$0xff]
  %v2581 = vld [vmem:[%s11 + $0x290] sm:$0xff]
  %v2582 = vld [vmem:[%s11 + $0x298] sm:$0xff]
  %v2583 = vld [vmem:[%s11 + $0x2a0] sm:$0xff]
  %v2584 = vld [vmem:[%s11 + $0x2a8] sm:$0xff]
  %v2585 = vld [vmem:[%s11 + $0x2b0] sm:$0xff]
  %v2586 = vld [vmem:[%s11 + $0x2b8] sm:$0xff]
  %v2587 = vld [vmem:[%s11 + $0x2c0] sm:$0xff]
  %v2588 = vld [vmem:[%s11 + $0x2c8] sm:$0xff]
  %v2589 = vld [vmem:[%s11 + $0x2d0] sm:$0xff]
  %v2590 = vld [vmem:[%s11 + $0x2d8] sm:$0xff]
  %v2591 = vld [vmem:[%s11 + $0x2e0] sm:$0xff]
  %v2592 = vld [vmem:[%s11 + $0x2e8] sm:$0xff]
  %v2593 = vld [vmem:[%s11 + $0x2f0] sm:$0xff]
  %v2594 = vld [vmem:[%s11 + $0x2f8] sm:$0xff]
  %2595 = vmatprep.subr.mxu0 %v2500
  %2596 = vmatpush1.msra.mxu0 %v2499
  %2597 = vmatprep.subr.mxu0 %v2503
  %2598 = vmatpush1.msra.mxu0 %v2502
  %2599 = vmatprep.subr.mxu0 %v2506
  %2600 = vmatpush1.msra.mxu0 %v2505
  %2601 = vmatprep.subr.mxu0 %v2509
  %2602 = vmatpush1.msra.mxu0 %v2508
  %2603 = vmatprep.subr.mxu0 %v2512
  %2604 = vmatpush1.msra.mxu0 %v2511
  %2605 = vmatprep.subr.mxu0 %v2515
  %2606 = vmatpush1.msra.mxu0 %v2514
  %2607 = vmatprep.subr.mxu0 %v2518
  %2608 = vmatpush1.msra.mxu0 %v2517
  %2609 = vmatprep.subr.mxu0 %v2521
  %2610 = vmatpush1.msra.mxu0 %v2520
  %2611 = vmatprep.subr.mxu0 %v2524
  %2612 = vmatpush1.msra.mxu0 %v2523
  %2613 = vmatprep.subr.mxu0 %v2527
  %2614 = vmatpush1.msra.mxu0 %v2526
  %2615 = vmatprep.subr.mxu0 %v2530
  %2616 = vmatpush1.msra.mxu0 %v2529
  %2617 = vmatprep.subr.mxu0 %v2533
  %2618 = vmatpush1.msra.mxu0 %v2532
  %2619 = vmatprep.subr.mxu0 %v2536
  %2620 = vmatpush1.msra.mxu0 %v2535
  %2621 = vmatprep.subr.mxu0 %v2539
  %2622 = vmatpush1.msra.mxu0 %v2538
  %2623 = vmatprep.subr.mxu0 %v2542
  %2624 = vmatpush1.msra.mxu0 %v2541
  %2625 = vmatprep.subr.mxu0 %v2545
  %2626 = vmatpush1.msra.mxu0 %v2544
  %2627 = vmatprep.subr.mxu0 %v2548
  %2628 = vmatpush1.msra.mxu0 %v2547
  %2629 = vmatprep.subr.mxu0 %v2551
  %2630 = vmatpush1.msra.mxu0 %v2550
  %2631 = vmatprep.subr.mxu0 %v2554
  %2632 = vmatpush1.msra.mxu0 %v2553
  %2633 = vmatprep.subr.mxu0 %v2557
  %2634 = vmatpush1.msra.mxu0 %v2556
  %2635 = vmatprep.subr.mxu0 %v2560
  %2636 = vmatpush1.msra.mxu0 %v2559
  %2637 = vmatprep.subr.mxu0 %v2563
  %2638 = vmatpush1.msra.mxu0 %v2562
  %2639 = vmatprep.subr.mxu0 %v2566
  %2640 = vmatpush1.msra.mxu0 %v2565
  %2641 = vmatprep.subr.mxu0 %v2569
  %2642 = vmatpush1.msra.mxu0 %v2568
  %2643 = vmatprep.subr.mxu0 %v2572
  %2644 = vmatpush1.msra.mxu0 %v2571
  %2645 = vmatprep.subr.mxu0 %v2575
  %2646 = vmatpush1.msra.mxu0 %v2574
  %2647 = vmatprep.subr.mxu0 %v2578
  %2648 = vmatpush1.msra.mxu0 %v2577
  %2649 = vmatprep.subr.mxu0 %v2581
  %2650 = vmatpush1.msra.mxu0 %v2580
  %2651 = vmatprep.subr.mxu0 %v2584
  %2652 = vmatpush1.msra.mxu0 %v2583
  %2653 = vmatprep.subr.mxu0 %v2587
  %2654 = vmatpush1.msra.mxu0 %v2586
  %2655 = vmatprep.subr.mxu0 %v2590
  %2656 = vmatpush1.msra.mxu0 %v2589
  %2657 = vmatprep.subr.mxu0 %v2593
  %2658 = vmatpush1.msra.mxu0 %v2592
  %2659 = vmatprep.mubr.f32.mxu0 %v2484
  %2660 = vmatmul.mubr.f32.gmra.mrb[0].mxu0 %v2483
  %v2661 = vpop.f32.mrb[0].mxu0
  %v2662 = vadd.f32 0.0, %v2661
  %v2663 = vpop.f32.mrb[0].mxu0
  %v2664 = vadd.f32 0.0, %v2663
  %2665 = vmatprep.mubr.f32.mxu0 %v2488
  %2666 = vmatmul.mubr.f32.gmra.mrb[0].mxu0 %v2487
  %v2667 = vpop.f32.mrb[0].mxu0
  %v2668 = vadd.f32 0.0, %v2667
  %v2669 = vpop.f32.mrb[0].mxu0
  %v2670 = vadd.f32 0.0, %v2669
  %2671 = vmatprep.mubr.f32.mxu0 %v2492
  %2672 = vmatmul.mubr.f32.gmra.mrb[0].mxu0 %v2491
  %v2673 = vpop.f32.mrb[0].mxu0
  %v2674 = vadd.f32 0.0, %v2673
  %v2675 = vpop.f32.mrb[0].mxu0
  %v2676 = vadd.f32 0.0, %v2675
  %2677 = vmatprep.mubr.f32.mxu0 %v2496
  %2678 = vmatmul.mubr.f32.gmra.mrb[0].mxu0 %v2495
  %v2679 = vpop.f32.mrb[0].mxu0
  %v2680 = vadd.f32 0.0, %v2679
  %v2681 = vpop.f32.mrb[0].mxu0
  %v2682 = vadd.f32 0.0, %v2681
  %2683 = vmatprep.mubr.f32.mxu0 %v2486
  %2684 = vmatmul.mubr.f32.gmra.mrb[0].mxu0 %v2485
  %v2685 = vpop.f32.mrb[0].mxu0
  %v2686 = vadd.f32 0.0, %v2685
  %v2687 = vpop.f32.mrb[0].mxu0
  %v2688 = vadd.f32 0.0, %v2687
  %2689 = vmatprep.mubr.f32.mxu0 %v2490
  %2690 = vmatmul.mubr.f32.gmra.mrb[0].mxu0 %v2489
  %v2691 = vpop.f32.mrb[0].mxu0
  %v2692 = vadd.f32 0.0, %v2691
  %v2693 = vpop.f32.mrb[0].mxu0
  %v2694 = vadd.f32 0.0, %v2693
  %2695 = vmatprep.mubr.f32.mxu0 %v2494
  %2696 = vmatmul.mubr.f32.gmra.mrb[0].mxu0 %v2493
  %v2697 = vpop.f32.mrb[0].mxu0
  %v2698 = vadd.f32 0.0, %v2697
  %v2699 = vpop.f32.mrb[0].mxu0
  %v2700 = vadd.f32 0.0, %v2699
  %2701 = vmatprep.mubr.f32.mxu0 %v2498
  %2702 = vmatmul.mubr.f32.gmra.mrb[0].mxu0 %v2497
  %v2703 = vpop.f32.mrb[0].mxu0
  %v2704 = vadd.f32 0.0, %v2703
  %v2705 = vpop.f32.mrb[0].mxu0
  %v2706 = vadd.f32 0.0, %v2705
  %2707 = vdwg.mxu0
  %2708 = vmatprep.subr.mxu0 0.0
  %2709 = vmatpush1.msra.mxu0 %v2501
  %2710 = vmatprep.subr.mxu0 0.0
  %2711 = vmatpush1.msra.mxu0 %v2504
  %2712 = vmatprep.subr.mxu0 0.0
  %2713 = vmatpush1.msra.mxu0 %v2507
  %2714 = vmatprep.subr.mxu0 0.0
  %2715 = vmatpush1.msra.mxu0 %v2510
  %2716 = vmatprep.subr.mxu0 0.0
  %2717 = vmatpush1.msra.mxu0 %v2513
  %2718 = vmatprep.subr.mxu0 0.0
  %2719 = vmatpush1.msra.mxu0 %v2516
  %2720 = vmatprep.subr.mxu0 0.0
  %2721 = vmatpush1.msra.mxu0 %v2519
  %2722 = vmatprep.subr.mxu0 0.0
  %2723 = vmatpush1.msra.mxu0 %v2522
  %2724 = vmatprep.subr.mxu0 0.0
  %2725 = vmatpush1.msra.mxu0 %v2525
  %2726 = vmatprep.subr.mxu0 0.0
  %2727 = vmatpush1.msra.mxu0 %v2528
  %2728 = vmatprep.subr.mxu0 0.0
  %2729 = vmatpush1.msra.mxu0 %v2531
  %2730 = vmatprep.subr.mxu0 0.0
  %2731 = vmatpush1.msra.mxu0 %v2534
  %2732 = vmatprep.subr.mxu0 0.0
  %2733 = vmatpush1.msra.mxu0 %v2537
  %2734 = vmatprep.subr.mxu0 0.0
  %2735 = vmatpush1.msra.mxu0 %v2540
  %2736 = vmatprep.subr.mxu0 0.0
  %2737 = vmatpush1.msra.mxu0 %v2543
  %2738 = vmatprep.subr.mxu0 0.0
  %2739 = vmatpush1.msra.mxu0 %v2546
  %2740 = vmatprep.subr.mxu0 0.0
  %2741 = vmatpush1.msra.mxu0 %v2549
  %2742 = vmatprep.subr.mxu0 0.0
  %2743 = vmatpush1.msra.mxu0 %v2552
  %2744 = vmatprep.subr.mxu0 0.0
  %2745 = vmatpush1.msra.mxu0 %v2555
  %2746 = vmatprep.subr.mxu0 0.0
  %2747 = vmatpush1.msra.mxu0 %v2558
  %2748 = vmatprep.subr.mxu0 0.0
  %2749 = vmatpush1.msra.mxu0 %v2561
  %2750 = vmatprep.subr.mxu0 0.0
  %2751 = vmatpush1.msra.mxu0 %v2564
  %2752 = vmatprep.subr.mxu0 0.0
  %2753 = vmatpush1.msra.mxu0 %v2567
  %2754 = vmatprep.subr.mxu0 0.0
  %2755 = vmatpush1.msra.mxu0 %v2570
  %2756 = vmatprep.subr.mxu0 0.0
  %2757 = vmatpush1.msra.mxu0 %v2573
  %2758 = vmatprep.subr.mxu0 0.0
  %2759 = vmatpush1.msra.mxu0 %v2576
  %2760 = vmatprep.subr.mxu0 0.0
  %2761 = vmatpush1.msra.mxu0 %v2579
  %2762 = vmatprep.subr.mxu0 0.0
  %2763 = vmatpush1.msra.mxu0 %v2582
  %2764 = vmatprep.subr.mxu0 0.0
  %2765 = vmatpush1.msra.mxu0 %v2585
  %2766 = vmatprep.subr.mxu0 0.0
  %2767 = vmatpush1.msra.mxu0 %v2588
  %2768 = vmatprep.subr.mxu0 0.0
  %2769 = vmatpush1.msra.mxu0 %v2591
  %2770 = vmatprep.subr.mxu0 0.0
  %2771 = vmatpush1.msra.mxu0 %v2594
  %2772 = vmatprep.mubr.f32.mxu0 %v2484
  %2773 = vmatmul.mubr.f32.gmra.mrb[0].mxu0 %v2483
  %v2774 = vpop.f32.mrb[0].mxu0
  %v2775 = vadd.f32 0.0, %v2774
  %v2776 = vpop.f32.mrb[0].mxu0
  %2777 = vmatprep.mubr.f32.mxu0 %v2488
  %2778 = vmatmul.mubr.f32.gmra.mrb[0].mxu0 %v2487
  %v2779 = vpop.f32.mrb[0].mxu0
  %v2780 = vadd.f32 0.0, %v2779
  %v2781 = vpop.f32.mrb[0].mxu0
  %2782 = vmatprep.mubr.f32.mxu0 %v2492
  %2783 = vmatmul.mubr.f32.gmra.mrb[0].mxu0 %v2491
  %v2784 = vpop.f32.mrb[0].mxu0
  %v2785 = vadd.f32 0.0, %v2784
  %v2786 = vpop.f32.mrb[0].mxu0
  %2787 = vmatprep.mubr.f32.mxu0 %v2496
  %2788 = vmatmul.mubr.f32.gmra.mrb[0].mxu0 %v2495
  %v2789 = vpop.f32.mrb[0].mxu0
  %v2790 = vadd.f32 0.0, %v2789
  %v2791 = vpop.f32.mrb[0].mxu0
  %2792 = vmatprep.mubr.f32.mxu0 %v2486
  %2793 = vmatmul.mubr.f32.gmra.mrb[0].mxu0 %v2485
  %v2794 = vpop.f32.mrb[0].mxu0
  %v2795 = vadd.f32 0.0, %v2794
  %v2796 = vpop.f32.mrb[0].mxu0
  %2797 = vmatprep.mubr.f32.mxu0 %v2490
  %2798 = vmatmul.mubr.f32.gmra.mrb[0].mxu0 %v2489
  %v2799 = vpop.f32.mrb[0].mxu0
  %v2800 = vadd.f32 0.0, %v2799
  %v2801 = vpop.f32.mrb[0].mxu0
  %2802 = vmatprep.mubr.f32.mxu0 %v2494
  %2803 = vmatmul.mubr.f32.gmra.mrb[0].mxu0 %v2493
  %v2804 = vpop.f32.mrb[0].mxu0
  %v2805 = vadd.f32 0.0, %v2804
  %v2806 = vpop.f32.mrb[0].mxu0
  %2807 = vmatprep.mubr.f32.mxu0 %v2498
  %2808 = vmatmul.mubr.f32.gmra.mrb[0].mxu0 %v2497
  %v2809 = vpop.f32.mrb[0].mxu0
  %v2810 = vadd.f32 0.0, %v2809
  %v2811 = vpop.f32.mrb[0].mxu0
  %2812 = vdwg.mxu0
  %2821 = vrot.lane.b32.xlu0 %v2662, 112
  %v2822 = vpop.permute.xlu0 %2821
  %2823 = vrot.lane.b32.xlu0 %v2668, 112
  %v2824 = vpop.permute.xlu0 %2823
  %2825 = vrot.lane.b32.xlu0 %v2674, 112
  %v2826 = vpop.permute.xlu0 %2825
  %2827 = vrot.lane.b32.xlu0 %v2680, 112
  %v2828 = vpop.permute.xlu0 %2827
  %2829 = vrot.lane.b32.xlu0 %v2686, 112
  %v2830 = vpop.permute.xlu0 %2829
  %2831 = vrot.lane.b32.xlu0 %v2692, 112
  %v2832 = vpop.permute.xlu0 %2831
  %2833 = vrot.lane.b32.xlu0 %v2698, 112
  %v2834 = vpop.permute.xlu0 %2833
  %2835 = vrot.lane.b32.xlu0 %v2704, 112
  %v2836 = vpop.permute.xlu0 %2835
  %v2845 = vmax.f32 %v2662, %v2822
  %v2846 = vmax.f32 %v2668, %v2824
  %v2847 = vmax.f32 %v2674, %v2826
  %v2848 = vmax.f32 %v2680, %v2828
  %v2849 = vmax.f32 %v2686, %v2830
  %v2850 = vmax.f32 %v2692, %v2832
  %v2851 = vmax.f32 %v2698, %v2834
  %v2852 = vmax.f32 %v2704, %v2836
  %2861 = vrot.lane.b32.xlu0 %v2664, 112
  %v2862 = vpop.permute.xlu0 %2861
  %2863 = vrot.lane.b32.xlu0 %v2670, 112
  %v2864 = vpop.permute.xlu0 %2863
  %2865 = vrot.lane.b32.xlu0 %v2676, 112
  %v2866 = vpop.permute.xlu0 %2865
  %2867 = vrot.lane.b32.xlu0 %v2682, 112
  %v2868 = vpop.permute.xlu0 %2867
  %2869 = vrot.lane.b32.xlu0 %v2688, 112
  %v2870 = vpop.permute.xlu0 %2869
  %2871 = vrot.lane.b32.xlu0 %v2694, 112
  %v2872 = vpop.permute.xlu0 %2871
  %2873 = vrot.lane.b32.xlu0 %v2700, 112
  %v2874 = vpop.permute.xlu0 %2873
  %2875 = vrot.lane.b32.xlu0 %v2706, 112
  %v2876 = vpop.permute.xlu0 %2875
  %v2885 = vmax.f32 %v2664, %v2862
  %v2886 = vmax.f32 %v2670, %v2864
  %v2887 = vmax.f32 %v2676, %v2866
  %v2888 = vmax.f32 %v2682, %v2868
  %v2889 = vmax.f32 %v2688, %v2870
  %v2890 = vmax.f32 %v2694, %v2872
  %v2891 = vmax.f32 %v2700, %v2874
  %v2892 = vmax.f32 %v2706, %v2876
  %2901 = vrot.lane.b32.xlu0 %v2845, 96
  %v2902 = vpop.permute.xlu0 %2901
  %2903 = vrot.lane.b32.xlu0 %v2846, 96
  %v2904 = vpop.permute.xlu0 %2903
  %2905 = vrot.lane.b32.xlu0 %v2847, 96
  %v2906 = vpop.permute.xlu0 %2905
  %2907 = vrot.lane.b32.xlu0 %v2848, 96
  %v2908 = vpop.permute.xlu0 %2907
  %2909 = vrot.lane.b32.xlu0 %v2849, 96
  %v2910 = vpop.permute.xlu0 %2909
  %2911 = vrot.lane.b32.xlu0 %v2850, 96
  %v2912 = vpop.permute.xlu0 %2911
  %2913 = vrot.lane.b32.xlu0 %v2851, 96
  %v2914 = vpop.permute.xlu0 %2913
  %2915 = vrot.lane.b32.xlu0 %v2852, 96
  %v2916 = vpop.permute.xlu0 %2915
  %v2925 = vmax.f32 %v2845, %v2902
  %v2926 = vmax.f32 %v2846, %v2904
  %v2927 = vmax.f32 %v2847, %v2906
  %v2928 = vmax.f32 %v2848, %v2908
  %v2929 = vmax.f32 %v2849, %v2910
  %v2930 = vmax.f32 %v2850, %v2912
  %v2931 = vmax.f32 %v2851, %v2914
  %v2932 = vmax.f32 %v2852, %v2916
  %2941 = vrot.lane.b32.xlu0 %v2885, 96
  %v2942 = vpop.permute.xlu0 %2941
  %2943 = vrot.lane.b32.xlu0 %v2886, 96
  %v2944 = vpop.permute.xlu0 %2943
  %2945 = vrot.lane.b32.xlu0 %v2887, 96
  %v2946 = vpop.permute.xlu0 %2945
  %2947 = vrot.lane.b32.xlu0 %v2888, 96
  %v2948 = vpop.permute.xlu0 %2947
  %2949 = vrot.lane.b32.xlu0 %v2889, 96
  %v2950 = vpop.permute.xlu0 %2949
  %2951 = vrot.lane.b32.xlu0 %v2890, 96
  %v2952 = vpop.permute.xlu0 %2951
  %2953 = vrot.lane.b32.xlu0 %v2891, 96
  %v2954 = vpop.permute.xlu0 %2953
  %2955 = vrot.lane.b32.xlu0 %v2892, 96
  %v2956 = vpop.permute.xlu0 %2955
  %v2965 = vmax.f32 %v2885, %v2942
  %v2966 = vmax.f32 %v2886, %v2944
  %v2967 = vmax.f32 %v2887, %v2946
  %v2968 = vmax.f32 %v2888, %v2948
  %v2969 = vmax.f32 %v2889, %v2950
  %v2970 = vmax.f32 %v2890, %v2952
  %v2971 = vmax.f32 %v2891, %v2954
  %v2972 = vmax.f32 %v2892, %v2956
  %2981 = vrot.lane.b32.xlu0 %v2925, 64
  %v2982 = vpop.permute.xlu0 %2981
  %2983 = vrot.lane.b32.xlu0 %v2926, 64
  %v2984 = vpop.permute.xlu0 %2983
  %2985 = vrot.lane.b32.xlu0 %v2927, 64
  %v2986 = vpop.permute.xlu0 %2985
  %2987 = vrot.lane.b32.xlu0 %v2928, 64
  %v2988 = vpop.permute.xlu0 %2987
  %2989 = vrot.lane.b32.xlu0 %v2929, 64
  %v2990 = vpop.permute.xlu0 %2989
  %2991 = vrot.lane.b32.xlu0 %v2930, 64
  %v2992 = vpop.permute.xlu0 %2991
  %2993 = vrot.lane.b32.xlu0 %v2931, 64
  %v2994 = vpop.permute.xlu0 %2993
  %2995 = vrot.lane.b32.xlu0 %v2932, 64
  %v2996 = vpop.permute.xlu0 %2995
  %v3005 = vmax.f32 %v2925, %v2982
  %v3006 = vmax.f32 %v2926, %v2984
  %v3007 = vmax.f32 %v2927, %v2986
  %v3008 = vmax.f32 %v2928, %v2988
  %v3009 = vmax.f32 %v2929, %v2990
  %v3010 = vmax.f32 %v2930, %v2992
  %v3011 = vmax.f32 %v2931, %v2994
  %v3012 = vmax.f32 %v2932, %v2996
  %3021 = vrot.lane.b32.xlu0 %v2965, 64
  %v3022 = vpop.permute.xlu0 %3021
  %3023 = vrot.lane.b32.xlu0 %v2966, 64
  %v3024 = vpop.permute.xlu0 %3023
  %3025 = vrot.lane.b32.xlu0 %v2967, 64
  %v3026 = vpop.permute.xlu0 %3025
  %3027 = vrot.lane.b32.xlu0 %v2968, 64
  %v3028 = vpop.permute.xlu0 %3027
  %3029 = vrot.lane.b32.xlu0 %v2969, 64
  %v3030 = vpop.permute.xlu0 %3029
  %3031 = vrot.lane.b32.xlu0 %v2970, 64
  %v3032 = vpop.permute.xlu0 %3031
  %3033 = vrot.lane.b32.xlu0 %v2971, 64
  %v3034 = vpop.permute.xlu0 %3033
  %3035 = vrot.lane.b32.xlu0 %v2972, 64
  %v3036 = vpop.permute.xlu0 %3035
  %v3045 = vmax.f32 %v2965, %v3022
  %v3046 = vmax.f32 %v2966, %v3024
  %v3047 = vmax.f32 %v2967, %v3026
  %v3048 = vmax.f32 %v2968, %v3028
  %v3049 = vmax.f32 %v2969, %v3030
  %v3050 = vmax.f32 %v2970, %v3032
  %v3051 = vmax.f32 %v2971, %v3034
  %v3052 = vmax.f32 %v2972, %v3036
  %v3053 = vmax.f32 %v3005, %v3045
  %v3054 = vmax.f32 %v3006, %v3046
  %v3055 = vmax.f32 %v3007, %v3047
  %v3056 = vmax.f32 %v3008, %v3048
  %v3057 = vmax.f32 %v3009, %v3049
  %v3058 = vmax.f32 %v3010, %v3050
  %v3059 = vmax.f32 %v3011, %v3051
  %v3060 = vmax.f32 %v3012, %v3052
  %3069 = vrot.lane.b32.xlu0 %v3053, 16
  %v3070 = vpop.permute.xlu0 %3069
  %3071 = vrot.lane.b32.xlu0 %v3054, 16
  %v3072 = vpop.permute.xlu0 %3071
  %3073 = vrot.lane.b32.xlu0 %v3055, 16
  %v3074 = vpop.permute.xlu0 %3073
  %3075 = vrot.lane.b32.xlu0 %v3056, 16
  %v3076 = vpop.permute.xlu0 %3075
  %3077 = vrot.lane.b32.xlu0 %v3057, 16
  %v3078 = vpop.permute.xlu0 %3077
  %3079 = vrot.lane.b32.xlu0 %v3058, 16
  %v3080 = vpop.permute.xlu0 %3079
  %3081 = vrot.lane.b32.xlu0 %v3059, 16
  %v3082 = vpop.permute.xlu0 %3081
  %3083 = vrot.lane.b32.xlu0 %v3060, 16
  %v3084 = vpop.permute.xlu0 %3083
  %v3093 = vsel %vm882, %v2775, %v3070
  %v3094 = vsel %vm882, %v2780, %v3072
  %v3095 = vsel %vm882, %v2785, %v3074
  %v3096 = vsel %vm882, %v2790, %v3076
  %v3097 = vsel %vm882, %v2795, %v3078
  %v3098 = vsel %vm882, %v2800, %v3080
  %v3099 = vsel %vm882, %v2805, %v3082
  %v3100 = vsel %vm882, %v2810, %v3084
  %3101 = vst.msk [vmem:[%s12] sm:$0xff] %vm1910, %v3093
  %3102 = vst.msk [vmem:[%s12 + $0x8] sm:$0xff] %vm1910, %v3094
  %3103 = vst.msk [vmem:[%s12 + $0x10] sm:$0xff] %vm1910, %v3095
  %3104 = vst.msk [vmem:[%s12 + $0x18] sm:$0xff] %vm1910, %v3096
  %3105 = vst.msk [vmem:[%s12 + $0x20] sm:$0xff] %vm1910, %v3097
  %3106 = vst.msk [vmem:[%s12 + $0x28] sm:$0xff] %vm1910, %v3098
  %3107 = vst.msk [vmem:[%s12 + $0x30] sm:$0xff] %vm1910, %v3099
  %3108 = vst.msk [vmem:[%s12 + $0x38] sm:$0xff] %vm1910, %v3100
  // Predicated region
  $region50: #{scale_specific_processor.1} parent=0 // pred_check
    _
  $region51: #{scale_specific_processor.1} parent=0 // pred_check_branch
    %3110 = sbr.rel (0) target = $region53
  $region52: #{scale_specific_processor.1} parent=0 // pred_region
    _
  $region53: #{scale_specific_processor.1} parent=0 // pred_fallthru
    _
  // Predicated region
  $region54: #{scale_specific_processor.1} parent=0 // pred_check
    _
  $region55: #{scale_specific_processor.1} parent=0 // pred_check_branch
    %3112 = sbr.rel (0) target = $region57
  $region56: #{scale_specific_processor.1} parent=0 // pred_region
    _
  $region57: #{scale_specific_processor.1} parent=0 // pred_fallthru
    _
  // Predicated region
  $region58: #{scale_specific_processor.1} parent=0 // pred_check
    _
  $region59: #{scale_specific_processor.1} parent=0 // pred_check_branch
    %3114 = sbr.rel (0) target = $region61
  $region60: #{scale_specific_processor.1} parent=0 // pred_region
    _
  $region61: #{scale_specific_processor.1} parent=0 // pred_fallthru
    _
  // Predicated region
  $region62: #{scale_specific_processor.1} parent=0 // pred_check
    _
  $region63: #{scale_specific_processor.1} parent=0 // pred_check_branch
    %3116 = sbr.rel (0) target = $region65
  $region64: #{scale_specific_processor.1} parent=0 // pred_region
    _
  $region65: #{scale_specific_processor.1} parent=0 // pred_fallthru
    _

</llo_original>
